<compile_context>
chip_gen: v7x
topology: tpu7x:2x2x1
jax: 0.10.0
libtpu: 0.0.40
codegen_flags: <defaults>
</compile_context>

<pallas_src>
import functools

import jax
import jax.numpy as jnp
from jax.experimental import pallas as pl
from jax.experimental.pallas import tpu as pltpu

# ----------------------------- configuration --------------------------------
LAYERS = [1, 1]          # 2 layers
DEPTH = 2                # model scale depth
BASE = 8                 # base_multiplier (small for the demo)
IN_CH = 4                # dataset == 'GID' -> 4 input channels
NUM_CLASSES = 5
OPS_NUM = 3              # cell(512, 512).ops_num
MULTI = {0: 1, 1: 2, 2: 4, 3: 8}
EPS = 1e-5
# connections: [[src_layer, src_depth], [dst_layer, dst_depth]]; src_layer==-1 -> stem2 output
CONNECTIONS = [
    [[-1, 0], [0, 0]],
    [[0, 0], [0, 1]],
    [[0, 0], [1, 0]],
    [[0, 1], [1, 1]],
    [[1, 0], [1, 1]],
]

LANE = 128               # vreg lane width / output-channel padding


def _round_up(x, m):
    return (x + m - 1) // m * m


def _tpu_defaults():
    """Generation-aware tile caps / K alignment / VMEM limit / megacore split."""
    kind = ''
    try:
        kind = jax.devices()[0].device_kind.lower()
    except Exception:
        pass
    if ('v5 lite' in kind) or ('v5e' in kind):
        # 128 MiB VMEM, 128x128 MXU, 1 TensorCore
        return dict(tm_max=1024, tk_max=512, kalign=128,
                    vmem=64 * 1024 * 1024, min_m_tiles=1)
    if 'v6' in kind:
        # 128 MiB VMEM, 256x256 MXU, 1 TensorCore
        return dict(tm_max=1024, tk_max=512, kalign=256,
                    vmem=64 * 1024 * 1024, min_m_tiles=1)
    if 'v7' in kind or '7x' in kind:
        # 64 MiB VMEM, 256x256 MXU, 2 TensorCores -> force >= 2 M tiles
        return dict(tm_max=512, tk_max=256, kalign=256,
                    vmem=32 * 1024 * 1024, min_m_tiles=2)
    # v4 / v5p / unknown: conservative caps; those parts also have 2 TCs.
    return dict(tm_max=512, tk_max=256, kalign=128,
                vmem=32 * 1024 * 1024, min_m_tiles=2)


_CFG = _tpu_defaults()
TM_MAX = _CFG['tm_max']
TK_MAX = _CFG['tk_max']
KALIGN = _CFG['kalign']
VMEM_LIMIT = _CFG['vmem']
MIN_M_TILES = _CFG['min_m_tiles']


def _choose_kp(K):
    """Padded K: either one lane-aligned strip (<= TK_MAX) or a multiple of
    TK_MAX for the multi-step accumulator path."""
    kp = _round_up(K, LANE)
    if kp > LANE:
        kp = _round_up(K, KALIGN)        # 256-align K for 256x256-MXU parts
    if kp > TK_MAX:
        kp = _round_up(K, TK_MAX)
    return kp


# ----------------------------- Pallas kernels --------------------------------
def _matmul_1pass_kernel(*refs, n_branches, relu_flags, npad, has_identity):
    """Single-K-step path: out = sum_b maybe_relu(x @ w_band_b + bias_b)
    (+ coef * x_id).  No scratch accumulator, no pl.when."""
    if has_identity:
        x_ref, w_ref, b_ref, xid_ref, coef_ref, o_ref = refs
    else:
        x_ref, w_ref, b_ref, o_ref = refs
    acc = jnp.dot(x_ref[...], w_ref[...],
                  preferred_element_type=jnp.float32) + b_ref[...]
    out = None
    for b in range(n_branches):
        y = acc[:, b * npad:(b + 1) * npad]
        if relu_flags[b]:
            y = jnp.maximum(y, 0.0)
        out = y if out is None else out + y
    if has_identity:
        out = out + coef_ref[...] * xid_ref[...].astype(jnp.float32)
    o_ref[...] = out.astype(o_ref.dtype)


def _matmul_kacc_kernel(x_ref, w_ref, b_ref, o_ref, acc_ref, *,
                        n_branches, relu_flags, npad, tk):
    """Multi-K-step path: f32 VMEM accumulator, bias folded into the k==0 init,
    weight fully VMEM-resident and sliced in-kernel (constant index_map)."""
    k = pl.program_id(1)

    @pl.when(k == 0)
    def _():
        acc_ref[...] = jnp.broadcast_to(b_ref[...], acc_ref.shape)

    koff = pl.multiple_of(k * tk, tk)
    acc_ref[...] += jnp.dot(x_ref[...], w_ref[pl.ds(koff, tk), :],
                            preferred_element_type=jnp.float32)

    @pl.when(k == pl.num_programs(1) - 1)
    def _():
        acc = acc_ref[...]
        out = None
        for b in range(n_branches):
            y = acc[:, b * npad:(b + 1) * npad]
            if relu_flags[b]:
                y = jnp.maximum(y, 0.0)
            out = y if out is None else out + y
        o_ref[...] = out.astype(o_ref.dtype)


def pallas_fused_matmul(x_cols, w_pad, bias, relu_flags, npad, *,
                        x_id=None, id_coef=None, out_dtype=jnp.bfloat16):
    """Tiled, pipelined multi-branch matmul.

    x_cols : (M, K)           activations / im2col patches (cast to bf16)
    w_pad  : (kp, B*npad)     K-padded branch-concatenated weights (bf16, BN/alpha folded)
    bias   : (B*npad,)        folded per-branch bias (f32)
    x_id   : optional (M, npad)  identity-add input (added as coef * x_id in the epilogue)
    id_coef: optional (1, npad)  f32 coefficient row for the identity add
    Returns (M, npad) in out_dtype; caller slices the valid channels.
    """
    M, K = x_cols.shape
    kp, wtot = w_pad.shape
    nb = len(relu_flags)
    assert wtot == nb * npad and kp >= K and kp % LANE == 0

    # >= MIN_M_TILES M tiles (v7x megacore), tm a multiple of 16 (bf16 packing)
    tm = min(TM_MAX, max(16, _round_up(-(-M // MIN_M_TILES), 16)))
    mp = _round_up(M, tm)
    tk = kp if kp <= TK_MAX else TK_MAX
    assert kp % tk == 0
    nk = kp // tk

    xp = jnp.pad(x_cols.astype(jnp.bfloat16), ((0, mp - M), (0, kp - K)))
    wb = w_pad.astype(jnp.bfloat16)
    bp = bias.reshape(1, wtot).astype(jnp.float32)

    relu_flags = tuple(bool(r) for r in relu_flags)
    extra = {}
    if hasattr(pl, "CostEstimate"):
        extra["cost_estimate"] = pl.CostEstimate(
            flops=int(2 * mp * kp * wtot), transcendentals=0,
            bytes_accessed=int(mp * kp * 2 + kp * wtot * 2 + mp * npad * 2 + wtot * 4))
    cparams = pltpu.CompilerParams(
        dimension_semantics=("parallel",) if nk == 1 else ("parallel", "arbitrary"),
        vmem_limit_bytes=VMEM_LIMIT)

    if nk == 1:
        has_id = x_id is not None
        kern = functools.partial(_matmul_1pass_kernel, n_branches=nb,
                                 relu_flags=relu_flags, npad=npad,
                                 has_identity=has_id)
        in_specs = [
            pl.BlockSpec((tm, kp), lambda i: (i, 0)),       # patches
            pl.BlockSpec((kp, wtot), lambda i: (0, 0)),     # weights (resident)
            pl.BlockSpec((1, wtot), lambda i: (0, 0)),      # bias row
        ]
        args = [xp, wb, bp]
        if has_id:
            xidp = jnp.pad(x_id.astype(jnp.bfloat16), ((0, mp - M), (0, 0)))
            in_specs += [pl.BlockSpec((tm, npad), lambda i: (i, 0)),
                         pl.BlockSpec((1, npad), lambda i: (0, 0))]
            args += [xidp, id_coef.astype(jnp.float32)]
        out = pl.pallas_call(
            kern,
            out_shape=jax.ShapeDtypeStruct((mp, npad), out_dtype),
            grid_spec=pltpu.PrefetchScalarGridSpec(
                num_scalar_prefetch=0, grid=(mp // tm,),
                in_specs=in_specs,
                out_specs=pl.BlockSpec((tm, npad), lambda i: (i, 0))),
            compiler_params=cparams, **extra,
        )(*args)
    else:
        if x_id is not None:
            # TODO(synk): identity add in the multi-K finalize; not hit at this config.
            raise NotImplementedError("identity add assumes a single K tile")
        kern = functools.partial(_matmul_kacc_kernel, n_branches=nb,
                                 relu_flags=relu_flags, npad=npad, tk=tk)
        out = pl.pallas_call(
            kern,
            out_shape=jax.ShapeDtypeStruct((mp, npad), out_dtype),
            grid_spec=pltpu.PrefetchScalarGridSpec(
                num_scalar_prefetch=0, grid=(mp // tm, nk),
                in_specs=[pl.BlockSpec((tm, tk), lambda i, k: (i, k)),
                          pl.BlockSpec((kp, wtot), lambda i, k: (0, 0)),   # weight resident
                          pl.BlockSpec((1, wtot), lambda i, k: (0, 0))],
                out_specs=pl.BlockSpec((tm, npad), lambda i, k: (i, 0)),
                scratch_shapes=[pltpu.VMEM((tm, wtot), jnp.float32)]),
            compiler_params=cparams, **extra,
        )(xp, wb, bp)
    return out[:M]


# ----------------------------- JAX glue ---------------------------------------
def im2col(x, kh, kw, stride, pad):
    """NHWC -> (N*Ho*Wo, kh*kw*C) patches (PyTorch floor-mode output size).
    # TODO(synk): in-kernel halo'd im2col (BlockSpec over NHWC tiles) would cut
    # the 9x patch HBM traffic for 3x3 convs; patches are kept bf16 instead."""
    N, H, W, C = x.shape
    xp = jnp.pad(x, ((0, 0), (pad, pad), (pad, pad), (0, 0)))
    Ho = (H + 2 * pad - kh) // stride + 1
    Wo = (W + 2 * pad - kw) // stride + 1
    cols = []
    for i in range(kh):
        for j in range(kw):
            cols.append(xp[:, i:i + stride * Ho:stride, j:j + stride * Wo:stride, :])
    patches = jnp.concatenate(cols, axis=-1)
    return patches.reshape(N * Ho * Wo, kh * kw * C), N, Ho, Wo


def fold_bn(p):
    """Fold eval-mode BN into (scale, bias)."""
    cout = p['w'].shape[-1]
    conv_b = p['b'] if 'b' in p else jnp.zeros((cout,), jnp.float32)
    if 'gamma' in p:
        s = p['gamma'] * jax.lax.rsqrt(p['var'] + EPS)
        bias = (conv_b - p['mean']) * s + p['beta']
    else:
        s = jnp.ones((cout,), jnp.float32)
        bias = conv_b
    return s, bias


def upsample_bilinear_ac(x, out_h, out_w):
    """Bilinear upsample, align_corners=True (matches nn.Upsample). Plain XLA."""
    N, H, W, C = x.shape
    if (out_h, out_w) == (H, W):
        return x

    def axis_coords(out_size, in_size):
        if out_size == 1 or in_size == 1:
            idx0 = jnp.zeros((out_size,), jnp.int32)
            return idx0, idx0, jnp.zeros((out_size,), jnp.float32)
        src = jnp.arange(out_size, dtype=jnp.float32) * (in_size - 1) / (out_size - 1)
        i0 = jnp.clip(jnp.floor(src).astype(jnp.int32), 0, in_size - 2)
        i1 = i0 + 1
        frac = src - i0.astype(jnp.float32)
        return i0, i1, frac

    h0, h1, fh = axis_coords(out_h, H)
    w0, w1, fw = axis_coords(out_w, W)
    xf = x.astype(jnp.float32)
    xh0, xh1 = xf[:, h0], xf[:, h1]
    x00, x01 = xh0[:, :, w0], xh0[:, :, w1]
    x10, x11 = xh1[:, :, w0], xh1[:, :, w1]
    fh = fh[None, :, None, None]
    fw = fw[None, None, :, None]
    return (x00 * (1 - fh) * (1 - fw) + x01 * (1 - fh) * fw
            + x10 * fh * (1 - fw) + x11 * fh * fw)


# -------------------- one-time weight preparation (hoisted out of jit) ----------
def prep_conv(p):
    """Conv + folded BN -> K-padded, lane-padded bf16 weight matrix + f32 bias."""
    kh, kw, cin, cout = p['w'].shape
    scale, bias = fold_bn(p)
    K = kh * kw * cin
    npad = _round_up(cout, LANE)
    kp = _choose_kp(K)
    w = p['w'].reshape(K, cout) * scale[None, :]
    w_pad = jnp.zeros((kp, npad), jnp.float32).at[:K, :cout].set(w).astype(jnp.bfloat16)
    b_pad = jnp.zeros((npad,), jnp.float32).at[:cout].set(bias)
    return dict(w=w_pad, b=b_pad, kh=kh, kw=kw, cin=cin, cout=cout, npad=npad)


def prep_fusion_node(plist):
    """Merge the Fusion 1x1 convs feeding one node into a block-diagonal weight.
    # TODO(synk): a branch grid axis (per-branch K segments via scalar prefetch)
    # would remove the zero-block MXU work at larger channel counts."""
    cout = plist[0]['w'].shape[3]
    npad = _round_up(cout, LANE)
    B = len(plist)
    cins = tuple(p['w'].shape[2] for p in plist)
    K = sum(cins)
    kp = _choose_kp(K)
    w_full = jnp.zeros((kp, B * npad), jnp.float32)
    b_full = jnp.zeros((B * npad,), jnp.float32)
    roff = 0
    for b, p in enumerate(plist):
        cin = p['w'].shape[2]
        scale, bias = fold_bn(p)
        wb = p['w'].reshape(cin, cout) * scale[None, :]
        w_full = w_full.at[roff:roff + cin, b * npad:b * npad + cout].set(wb)
        b_full = b_full.at[b * npad:b * npad + cout].set(bias)
        roff += cin
    return dict(w=w_full.astype(jnp.bfloat16), b=b_full, cout=cout, npad=npad,
                B=B, cins=cins)


def prep_cell(p3, p1):
    """MixedCell branch blocks (alpha-independent parts only).  The 1x1-conv
    weights ride in the centre rows (4C:5C) of the 3x3 patch matrix."""
    C = p3['w'].shape[3]
    K = 9 * C
    npad = _round_up(C, LANE)
    kp = _choose_kp(K)
    s3, b3 = fold_bn(p3)
    s1, b1 = fold_bn(p1)
    w3 = p3['w'].reshape(9 * C, C) * s3[None, :]
    w1 = p1['w'].reshape(C, C) * s1[None, :]
    w3blk = jnp.zeros((kp, npad), jnp.float32).at[:9 * C, :C].set(w3)
    w1blk = jnp.zeros((kp, npad), jnp.float32).at[4 * C:5 * C, :C].set(w1)
    b3p = jnp.zeros((npad,), jnp.float32).at[:C].set(b3)
    b1p = jnp.zeros((npad,), jnp.float32).at[:C].set(b1)
    return dict(w3=w3blk, w1=w1blk, b3=b3p, b1=b1p, C=C, npad=npad)


def prepare(params):
    """All alpha-independent weight prep, run ONCE outside the jitted forward."""
    prep = {
        'stem0': prep_conv(params['stem0']),
        'stem1': prep_conv(params['stem1']),
        'stem2': prep_conv(params['stem2']),
        'last0': prep_conv(params['last0']),
        'last1': prep_conv(params['last1']),
        'last2': prep_conv(params['last2']),
    }
    for i in range(len(LAYERS)):
        for j in range(DEPTH):
            plist = []
            for conn in CONNECTIONS:
                if conn[1] == [i, j]:
                    src = conn[0]
                    plist.append(params[f'fusion_{i}_{j}_{src[0]}_{src[1]}'])
            if plist:
                prep[f'fusion_{i}_{j}'] = prep_fusion_node(plist)
            prep[f'cell_{i}_{j}'] = prep_cell(params[f'cell_{i}_{j}_conv3'],
                                              params[f'cell_{i}_{j}_conv1'])
    return prep


# ----------------------------- forward building blocks --------------------------
def conv_bn(x, cp, stride, pad, relu):
    """Conv + folded BN + optional ReLU as one tiled Pallas matmul."""
    patches, N, Ho, Wo = im2col(x, cp['kh'], cp['kw'], stride, pad)
    y = pallas_fused_matmul(patches, cp['w'], cp['b'], (relu,), cp['npad'])
    cout = cp['cout']
    # TODO(synk): carrying the lane-padded channel count to the next layer
    # (skipping this slice) trades MXU work for DMA at larger channel counts.
    return y[:, :cout].reshape(N, Ho, Wo, cout)


def apply_fusions_merged(xs, fp):
    """Sum over connections of Fusion(1x1 conv + BN + ReLU), merged into ONE
    multi-branch Pallas matmul (inputs concatenated along K, block-diagonal
    weights, per-branch ReLU + sum in the epilogue)."""
    cout, npad, B = fp['cout'], fp['npad'], fp['B']
    assert len(xs) == B
    cols, shape0 = [], None
    for x_src, cin in zip(xs, fp['cins']):
        if cout > cin:                 # down: 1x1 conv on strided subsample
            s = cout // cin
            x_src = x_src[:, ::s, ::s, :]
        elif cout < cin:
            # TODO(synk): up-fusion (1x1 conv + bilinear upsample) is not merged;
            # it does not occur for the given CONNECTIONS.
            raise NotImplementedError("up-fusion not used by CONNECTIONS")
        if shape0 is None:
            shape0 = x_src.shape[:3]
        assert x_src.shape[:3] == shape0
        cols.append(x_src.reshape(-1, cin))
    x_cols = jnp.concatenate(cols, axis=1) if len(cols) > 1 else cols[0]
    y = pallas_fused_matmul(x_cols, fp['w'], fp['b'], (True,) * B, npad)
    N, Hd, Wd = shape0
    return y[:, :cout].reshape(N, Hd, Wd, cout)


def apply_cell(x, cp, alpha):
    """MixedCell: alpha0*x + alpha1*ReLU(BN(conv3x3(x))) + alpha2*ReLU(BN(conv1x1(x))),
    fused into a single 2-band Pallas matmul; the identity branch is added in
    the epilogue (coef row * lane-padded x), not via an eye() MXU band.
    Valid because softmax(alpha) > 0, so alpha*ReLU(y) == ReLU(alpha*y)."""
    N, H, W, C = x.shape
    M = N * H * W
    npad = cp['npad']
    patches3, _, _, _ = im2col(x, 3, 3, 1, 1)                    # (M, 9C)
    w_full = jnp.concatenate([alpha[1] * cp['w3'], alpha[2] * cp['w1']],
                             axis=1).astype(jnp.bfloat16)
    b_full = jnp.concatenate([alpha[1] * cp['b3'], alpha[2] * cp['b1']])
    x_id = jnp.pad(x.reshape(M, C).astype(jnp.bfloat16), ((0, 0), (0, npad - C)))
    coef = jnp.full((1, npad), alpha[0], jnp.float32)
    y = pallas_fused_matmul(patches3, w_full, b_full, (True, True), npad,
                            x_id=x_id, id_coef=coef)
    return y[:, :C].reshape(N, H, W, C)


# ----------------------------- parameters -------------------------------------
def make_params(key):
    kc = [0]

    def nk():
        kc[0] += 1
        return jax.random.fold_in(key, kc[0])

    def conv_bn_p(cin, cout, k, bias=True, bn=True):
        p = {'w': 0.1 * jax.random.normal(nk(), (k, k, cin, cout), jnp.float32)}
        if bias:
            p['b'] = 0.01 * jax.random.normal(nk(), (cout,), jnp.float32)
        if bn:
            p['gamma'] = 1.0 + 0.1 * jax.random.normal(nk(), (cout,), jnp.float32)
            p['beta'] = 0.01 * jax.random.normal(nk(), (cout,), jnp.float32)
            p['mean'] = 0.05 * jax.random.normal(nk(), (cout,), jnp.float32)
            p['var'] = 1.0 + 0.1 * jnp.abs(jax.random.normal(nk(), (cout,), jnp.float32))
        return p

    params = {}
    half = BASE // 2
    params['stem0'] = conv_bn_p(IN_CH, half, 3)
    params['stem1'] = conv_bn_p(half, half, 3)
    params['stem2'] = conv_bn_p(half, BASE, 3)

    num_last = 0
    for i in range(len(LAYERS)):
        for j in range(DEPTH):
            cch = BASE * MULTI[j]
            params[f'cell_{i}_{j}_conv3'] = conv_bn_p(cch, cch, 3, bias=False)
            params[f'cell_{i}_{j}_conv1'] = conv_bn_p(cch, cch, 1, bias=False)
            num_connect = 0
            for conn in CONNECTIONS:
                if conn[1] == [i, j]:
                    num_connect += 1
                    src = conn[0]
                    cin = BASE * (MULTI[0] if src[0] == -1 else MULTI[src[1]])
                    params[f'fusion_{i}_{j}_{src[0]}_{src[1]}'] = conv_bn_p(cin, cch, 1, bias=False)
            if i == len(LAYERS) - 1 and num_connect != 0:
                num_last += cch

    params['last0'] = conv_bn_p(num_last, 256, 3, bias=False)
    params['last1'] = conv_bn_p(256, 256, 3, bias=False)
    params['last2'] = conv_bn_p(256, NUM_CLASSES, 1, bias=True, bn=False)
    params['alphas'] = 0.001 * jax.random.normal(
        nk(), (len(LAYERS), DEPTH, OPS_NUM), jnp.float32)
    return params


# ----------------------------- forward -----------------------------------------
def forward(x_nchw, prep, alphas):
    x = jnp.transpose(x_nchw, (0, 2, 3, 1)).astype(jnp.bfloat16)   # NCHW -> NHWC, bf16

    t = conv_bn(x, prep['stem0'], stride=2, pad=1, relu=True)
    t = conv_bn(t, prep['stem1'], stride=1, pad=1, relu=True)
    pre = conv_bn(t, prep['stem2'], stride=2, pad=1, relu=True)

    norm_alphas = jax.nn.softmax(alphas, axis=-1)

    features = [[None] * DEPTH for _ in range(len(LAYERS))]
    for i in range(len(LAYERS)):
        for j in range(DEPTH):
            srcs = []
            for conn in CONNECTIONS:
                if conn[1] == [i, j]:
                    src = conn[0]
                    inp = pre if src[0] == -1 else features[src[0]][src[1]]
                    if inp is None:
                        continue
                    srcs.append(inp)
            if srcs:
                fp = prep[f'fusion_{i}_{j}']
                acc = apply_fusions_merged(srcs, fp)
                features[i][j] = apply_cell(acc, prep[f'cell_{i}_{j}'],
                                            norm_alphas[i, j])

    last = [f for f in features[len(LAYERS) - 1] if f is not None]
    H0, W0 = last[0].shape[1], last[0].shape[2]
    last = [upsample_bilinear_ac(f, H0, W0) for f in last]
    res = jnp.concatenate([l.astype(jnp.bfloat16) for l in last], axis=-1)

    # last_conv: conv3x3+BN (+Dropout=id), conv3x3+BN (+Dropout=id), conv1x1(+bias)
    res = conv_bn(res, prep['last0'], stride=1, pad=1, relu=False)
    res = conv_bn(res, prep['last1'], stride=1, pad=1, relu=False)   # multi-K path
    res = conv_bn(res, prep['last2'], stride=1, pad=0, relu=False)

    res = upsample_bilinear_ac(res, x.shape[1], x.shape[2])
    return jnp.transpose(res, (0, 3, 1, 2)).astype(jnp.float32)      # back to NCHW


# ----------------------------- main ---------------------------------------------
if __name__ == "__main__":
    key = jax.random.PRNGKey(0)
    params = make_params(key)
    x = jax.random.normal(jax.random.fold_in(key, 1000), (2, IN_CH, 16, 16), jnp.float32)

    prep = prepare(params)                                  # hoisted, runs once
    fwd = jax.jit(lambda xin, a: forward(xin, prep, a))
    out = jax.block_until_ready(fwd(x, params['alphas']))

    assert out.shape == (2, NUM_CLASSES, 16, 16), out.shape
    assert bool(jnp.all(jnp.isfinite(out)))
    print("KERNEL_OK")
</pallas_src>

<mosaic_0001>
module attributes {stable_mosaic.version = 11 : i64} {
  func.func @_matmul_1pass_kernel(%arg0: i32, %arg1: memref<64x128xbf16, #tpu.memory_space<vmem>>, %arg2: memref<128x128xbf16, #tpu.memory_space<vmem>>, %arg3: memref<1x128xf32, #tpu.memory_space<vmem>>, %arg4: memref<64x128xbf16, #tpu.memory_space<vmem>>) attributes {dimension_semantics = [#tpu.dimension_semantics<parallel>], iteration_bounds = array<i64: 2>, scalar_prefetch = 0 : i64, scratch_operands = 0 : i64, tpu.core_type = #tpu.core_type<tc>, window_params = [{transform_indices = @transform_0, window_bounds = array<i64: 64, 128>}, {pipeline_mode = #tpu.pipeline_mode<synchronous>, transform_indices = @transform_1, window_bounds = array<i64: 128, 128>}, {pipeline_mode = #tpu.pipeline_mode<synchronous>, transform_indices = @transform_2, window_bounds = array<i64: 1, 128>}, {transform_indices = @transform_3, window_bounds = array<i64: 64, 128>}]} {
    %c0 = arith.constant 0 : index
    %c0_0 = arith.constant 0 : index
    %0 = vector.load %arg1[%c0, %c0_0] : memref<64x128xbf16, #tpu.memory_space<vmem>>, vector<64x128xbf16>
    %c0_1 = arith.constant 0 : index
    %c0_2 = arith.constant 0 : index
    %1 = vector.load %arg2[%c0_1, %c0_2] : memref<128x128xbf16, #tpu.memory_space<vmem>>, vector<128x128xbf16>
    %cst = arith.constant dense<0.000000e+00> : vector<64x128xf32>
    %2 = tpu.matmul %0, %1, %cst {dimension_numbers = #tpu.dot_dimension_numbers<[1], [0], [0], [1], [0, 0, 1, 1], [], []>} : vector<64x128xbf16>, vector<128x128xbf16>, vector<64x128xf32> -> vector<64x128xf32>
    %c0_3 = arith.constant 0 : index
    %c0_4 = arith.constant 0 : index
    %3 = vector.load %arg3[%c0_3, %c0_4] : memref<1x128xf32, #tpu.memory_space<vmem>>, vector<1x128xf32>
    %4 = vector.broadcast %3 : vector<1x128xf32> to vector<64x128xf32>
    %5 = arith.addf %2, %4 : vector<64x128xf32>
    %cst_5 = arith.constant 0.000000e+00 : f32
    %6 = vector.broadcast %cst_5 : f32 to vector<64x128xf32>
    %7 = arith.maximumf %5, %6 : vector<64x128xf32>
    %8 = arith.truncf %7 : vector<64x128xf32> to vector<64x128xbf16>
    %c0_6 = arith.constant 0 : index
    %c0_7 = arith.constant 0 : index
    %9 = vector.load %arg4[%c0_6, %c0_7] : memref<64x128xbf16, #tpu.memory_space<vmem>>, vector<64x128xbf16>
    tpu.vector_store %arg4[%c0_6, %c0_7], %8 {strides = array<i32>} : memref<64x128xbf16, #tpu.memory_space<vmem>>, vector<64x128xbf16>,
    return
  }
  func.func @transform_0(%arg0: i32) -> (i32, i32) {
    %c0_i32 = arith.constant 0 : i32
    %c0_i32_0 = arith.constant 0 : i32
    return %arg0, %c0_i32 : i32, i32
  }
  func.func @transform_1(%arg0: i32) -> (i32, i32) {
    %c0_i32 = arith.constant 0 : i32
    %c0_i32_0 = arith.constant 0 : i32
    %c0_i32_1 = arith.constant 0 : i32
    return %c0_i32, %c0_i32_0 : i32, i32
  }
  func.func @transform_2(%arg0: i32) -> (i32, i32) {
    %c0_i32 = arith.constant 0 : i32
    %c0_i32_0 = arith.constant 0 : i32
    %c0_i32_1 = arith.constant 0 : i32
    return %c0_i32, %c0_i32_0 : i32, i32
  }
  func.func @transform_3(%arg0: i32) -> (i32, i32) {
    %c0_i32 = arith.constant 0 : i32
    %c0_i32_0 = arith.constant 0 : i32
    return %arg0, %c0_i32 : i32, i32
  }
}

module attributes {stable_mosaic.version = 11 : i64} {
  func.func @_matmul_1pass_kernel(%arg0: i32, %arg1: memref<16x128xbf16, #tpu.memory_space<vmem>>, %arg2: memref<128x128xbf16, #tpu.memory_space<vmem>>, %arg3: memref<1x128xf32, #tpu.memory_space<vmem>>, %arg4: memref<16x128xbf16, #tpu.memory_space<vmem>>) attributes {dimension_semantics = [#tpu.dimension_semantics<parallel>], iteration_bounds = array<i64: 2>, scalar_prefetch = 0 : i64, scratch_operands = 0 : i64, tpu.core_type = #tpu.core_type<tc>, window_params = [{transform_indices = @transform_0, window_bounds = array<i64: 16, 128>}, {pipeline_mode = #tpu.pipeline_mode<synchronous>, transform_indices = @transform_1, window_bounds = array<i64: 128, 128>}, {pipeline_mode = #tpu.pipeline_mode<synchronous>, transform_indices = @transform_2, window_bounds = array<i64: 1, 128>}, {transform_indices = @transform_3, window_bounds = array<i64: 16, 128>}]} {
    %c0 = arith.constant 0 : index
    %c0_0 = arith.constant 0 : index
    %0 = vector.load %arg1[%c0, %c0_0] : memref<16x128xbf16, #tpu.memory_space<vmem>>, vector<16x128xbf16>
    %c0_1 = arith.constant 0 : index
    %c0_2 = arith.constant 0 : index
    %1 = vector.load %arg2[%c0_1, %c0_2] : memref<128x128xbf16, #tpu.memory_space<vmem>>, vector<128x128xbf16>
    %cst = arith.constant dense<0.000000e+00> : vector<16x128xf32>
    %2 = tpu.matmul %0, %1, %cst {dimension_numbers = #tpu.dot_dimension_numbers<[1], [0], [0], [1], [0, 0, 1, 1], [], []>} : vector<16x128xbf16>, vector<128x128xbf16>, vector<16x128xf32> -> vector<16x128xf32>
    %c0_3 = arith.constant 0 : index
    %c0_4 = arith.constant 0 : index
    %3 = vector.load %arg3[%c0_3, %c0_4] : memref<1x128xf32, #tpu.memory_space<vmem>>, vector<1x128xf32>
    %4 = vector.broadcast %3 : vector<1x128xf32> to vector<16x128xf32>
    %5 = arith.addf %2, %4 : vector<16x128xf32>
    %cst_5 = arith.constant 0.000000e+00 : f32
    %6 = vector.broadcast %cst_5 : f32 to vector<16x128xf32>
    %7 = arith.maximumf %5, %6 : vector<16x128xf32>
    %8 = arith.truncf %7 : vector<16x128xf32> to vector<16x128xbf16>
    %c0_6 = arith.constant 0 : index
    %c0_7 = arith.constant 0 : index
    %9 = vector.load %arg4[%c0_6, %c0_7] : memref<16x128xbf16, #tpu.memory_space<vmem>>, vector<16x128xbf16>
    tpu.vector_store %arg4[%c0_6, %c0_7], %8 {strides = array<i32>} : memref<16x128xbf16, #tpu.memory_space<vmem>>, vector<16x128xbf16>,
    return
  }
  func.func @transform_0(%arg0: i32) -> (i32, i32) {
    %c0_i32 = arith.constant 0 : i32
    %c0_i32_0 = arith.constant 0 : i32
    return %arg0, %c0_i32 : i32, i32
  }
  func.func @transform_1(%arg0: i32) -> (i32, i32) {
    %c0_i32 = arith.constant 0 : i32
    %c0_i32_0 = arith.constant 0 : i32
    %c0_i32_1 = arith.constant 0 : i32
    return %c0_i32, %c0_i32_0 : i32, i32
  }
  func.func @transform_2(%arg0: i32) -> (i32, i32) {
    %c0_i32 = arith.constant 0 : i32
    %c0_i32_0 = arith.constant 0 : i32
    %c0_i32_1 = arith.constant 0 : i32
    return %c0_i32, %c0_i32_0 : i32, i32
  }
  func.func @transform_3(%arg0: i32) -> (i32, i32) {
    %c0_i32 = arith.constant 0 : i32
    %c0_i32_0 = arith.constant 0 : i32
    return %arg0, %c0_i32 : i32, i32
  }
}

module attributes {stable_mosaic.version = 11 : i64} {
  func.func @_matmul_1pass_kernel(%arg0: i32, %arg1: memref<16x128xbf16, #tpu.memory_space<vmem>>, %arg2: memref<128x256xbf16, #tpu.memory_space<vmem>>, %arg3: memref<1x256xf32, #tpu.memory_space<vmem>>, %arg4: memref<16x128xbf16, #tpu.memory_space<vmem>>, %arg5: memref<1x128xf32, #tpu.memory_space<vmem>>, %arg6: memref<16x128xbf16, #tpu.memory_space<vmem>>) attributes {dimension_semantics = [#tpu.dimension_semantics<parallel>], iteration_bounds = array<i64: 2>, scalar_prefetch = 0 : i64, scratch_operands = 0 : i64, tpu.core_type = #tpu.core_type<tc>, window_params = [{transform_indices = @transform_0, window_bounds = array<i64: 16, 128>}, {pipeline_mode = #tpu.pipeline_mode<synchronous>, transform_indices = @transform_1, window_bounds = array<i64: 128, 256>}, {pipeline_mode = #tpu.pipeline_mode<synchronous>, transform_indices = @transform_2, window_bounds = array<i64: 1, 256>}, {transform_indices = @transform_3, window_bounds = array<i64: 16, 128>}, {pipeline_mode = #tpu.pipeline_mode<synchronous>, transform_indices = @transform_4, window_bounds = array<i64: 1, 128>}, {transform_indices = @transform_5, window_bounds = array<i64: 16, 128>}]} {
    %c0 = arith.constant 0 : index
    %c0_0 = arith.constant 0 : index
    %0 = vector.load %arg1[%c0, %c0_0] : memref<16x128xbf16, #tpu.memory_space<vmem>>, vector<16x128xbf16>
    %c0_1 = arith.constant 0 : index
    %c0_2 = arith.constant 0 : index
    %1 = vector.load %arg2[%c0_1, %c0_2] : memref<128x256xbf16, #tpu.memory_space<vmem>>, vector<128x256xbf16>
    %cst = arith.constant dense<0.000000e+00> : vector<16x256xf32>
    %2 = tpu.matmul %0, %1, %cst {dimension_numbers = #tpu.dot_dimension_numbers<[1], [0], [0], [1], [0, 0, 1, 1], [], []>} : vector<16x128xbf16>, vector<128x256xbf16>, vector<16x256xf32> -> vector<16x256xf32>
    %c0_3 = arith.constant 0 : index
    %c0_4 = arith.constant 0 : index
    %3 = vector.load %arg3[%c0_3, %c0_4] : memref<1x256xf32, #tpu.memory_space<vmem>>, vector<1x256xf32>
    %4 = vector.broadcast %3 : vector<1x256xf32> to vector<16x256xf32>
    %5 = arith.addf %2, %4 : vector<16x256xf32>
    %6 = vector.extract_strided_slice %5 {offsets = [0, 0], sizes = [16, 128], strides = [1, 1]} : vector<16x256xf32> to vector<16x128xf32>
    %cst_5 = arith.constant 0.000000e+00 : f32
    %7 = vector.broadcast %cst_5 : f32 to vector<16x128xf32>
    %8 = arith.maximumf %6, %7 : vector<16x128xf32>
    %9 = vector.extract_strided_slice %5 {offsets = [0, 128], sizes = [16, 128], strides = [1, 1]} : vector<16x256xf32> to vector<16x128xf32>
    %cst_6 = arith.constant 0.000000e+00 : f32
    %10 = vector.broadcast %cst_6 : f32 to vector<16x128xf32>
    %11 = arith.maximumf %9, %10 : vector<16x128xf32>
    %12 = arith.addf %8, %11 : vector<16x128xf32>
    %c0_7 = arith.constant 0 : index
    %c0_8 = arith.constant 0 : index
    %13 = vector.load %arg5[%c0_7, %c0_8] : memref<1x128xf32, #tpu.memory_space<vmem>>, vector<1x128xf32>
    %c0_9 = arith.constant 0 : index
    %c0_10 = arith.constant 0 : index
    %14 = vector.load %arg4[%c0_9, %c0_10] : memref<16x128xbf16, #tpu.memory_space<vmem>>, vector<16x128xbf16>
    %15 = arith.extf %14 : vector<16x128xbf16> to vector<16x128xf32>
    %16 = vector.broadcast %13 : vector<1x128xf32> to vector<16x128xf32>
    %17 = arith.mulf %16, %15 : vector<16x128xf32>
    %18 = arith.addf %12, %17 : vector<16x128xf32>
    %19 = arith.truncf %18 : vector<16x128xf32> to vector<16x128xbf16>
    %c0_11 = arith.constant 0 : index
    %c0_12 = arith.constant 0 : index
    %20 = vector.load %arg6[%c0_11, %c0_12] : memref<16x128xbf16, #tpu.memory_space<vmem>>, vector<16x128xbf16>
    tpu.vector_store %arg6[%c0_11, %c0_12], %19 {strides = array<i32>} : memref<16x128xbf16, #tpu.memory_space<vmem>>, vector<16x128xbf16>,
    return
  }
  func.func @transform_0(%arg0: i32) -> (i32, i32) {
    %c0_i32 = arith.constant 0 : i32
    %c0_i32_0 = arith.constant 0 : i32
    return %arg0, %c0_i32 : i32, i32
  }
  func.func @transform_1(%arg0: i32) -> (i32, i32) {
    %c0_i32 = arith.constant 0 : i32
    %c0_i32_0 = arith.constant 0 : i32
    %c0_i32_1 = arith.constant 0 : i32
    return %c0_i32, %c0_i32_0 : i32, i32
  }
  func.func @transform_2(%arg0: i32) -> (i32, i32) {
    %c0_i32 = arith.constant 0 : i32
    %c0_i32_0 = arith.constant 0 : i32
    %c0_i32_1 = arith.constant 0 : i32
    return %c0_i32, %c0_i32_0 : i32, i32
  }
  func.func @transform_3(%arg0: i32) -> (i32, i32) {
    %c0_i32 = arith.constant 0 : i32
    %c0_i32_0 = arith.constant 0 : i32
    return %arg0, %c0_i32 : i32, i32
  }
  func.func @transform_4(%arg0: i32) -> (i32, i32) {
    %c0_i32 = arith.constant 0 : i32
    %c0_i32_0 = arith.constant 0 : i32
    %c0_i32_1 = arith.constant 0 : i32
    return %c0_i32, %c0_i32_0 : i32, i32
  }
  func.func @transform_5(%arg0: i32) -> (i32, i32) {
    %c0_i32 = arith.constant 0 : i32
    %c0_i32_0 = arith.constant 0 : i32
    return %arg0, %c0_i32 : i32, i32
  }
}

module attributes {stable_mosaic.version = 11 : i64} {
  func.func @_matmul_1pass_kernel(%arg0: i32, %arg1: memref<16x128xbf16, #tpu.memory_space<vmem>>, %arg2: memref<128x128xbf16, #tpu.memory_space<vmem>>, %arg3: memref<1x128xf32, #tpu.memory_space<vmem>>, %arg4: memref<16x128xbf16, #tpu.memory_space<vmem>>) attributes {dimension_semantics = [#tpu.dimension_semantics<parallel>], iteration_bounds = array<i64: 1>, scalar_prefetch = 0 : i64, scratch_operands = 0 : i64, tpu.core_type = #tpu.core_type<tc>, window_params = [{transform_indices = @transform_0, window_bounds = array<i64: 16, 128>}, {pipeline_mode = #tpu.pipeline_mode<synchronous>, transform_indices = @transform_1, window_bounds = array<i64: 128, 128>}, {pipeline_mode = #tpu.pipeline_mode<synchronous>, transform_indices = @transform_2, window_bounds = array<i64: 1, 128>}, {transform_indices = @transform_3, window_bounds = array<i64: 16, 128>}]} {
    %c0 = arith.constant 0 : index
    %c0_0 = arith.constant 0 : index
    %0 = vector.load %arg1[%c0, %c0_0] : memref<16x128xbf16, #tpu.memory_space<vmem>>, vector<16x128xbf16>
    %c0_1 = arith.constant 0 : index
    %c0_2 = arith.constant 0 : index
    %1 = vector.load %arg2[%c0_1, %c0_2] : memref<128x128xbf16, #tpu.memory_space<vmem>>, vector<128x128xbf16>
    %cst = arith.constant dense<0.000000e+00> : vector<16x128xf32>
    %2 = tpu.matmul %0, %1, %cst {dimension_numbers = #tpu.dot_dimension_numbers<[1], [0], [0], [1], [0, 0, 1, 1], [], []>} : vector<16x128xbf16>, vector<128x128xbf16>, vector<16x128xf32> -> vector<16x128xf32>
    %c0_3 = arith.constant 0 : index
    %c0_4 = arith.constant 0 : index
    %3 = vector.load %arg3[%c0_3, %c0_4] : memref<1x128xf32, #tpu.memory_space<vmem>>, vector<1x128xf32>
    %4 = vector.broadcast %3 : vector<1x128xf32> to vector<16x128xf32>
    %5 = arith.addf %2, %4 : vector<16x128xf32>
    %cst_5 = arith.constant 0.000000e+00 : f32
    %6 = vector.broadcast %cst_5 : f32 to vector<16x128xf32>
    %7 = arith.maximumf %5, %6 : vector<16x128xf32>
    %8 = arith.truncf %7 : vector<16x128xf32> to vector<16x128xbf16>
    %c0_6 = arith.constant 0 : index
    %c0_7 = arith.constant 0 : index
    %9 = vector.load %arg4[%c0_6, %c0_7] : memref<16x128xbf16, #tpu.memory_space<vmem>>, vector<16x128xbf16>
    tpu.vector_store %arg4[%c0_6, %c0_7], %8 {strides = array<i32>} : memref<16x128xbf16, #tpu.memory_space<vmem>>, vector<16x128xbf16>,
    return
  }
  func.func @transform_0(%arg0: i32) -> (i32, i32) {
    %c0_i32 = arith.constant 0 : i32
    %c0_i32_0 = arith.constant 0 : i32
    return %arg0, %c0_i32 : i32, i32
  }
  func.func @transform_1(%arg0: i32) -> (i32, i32) {
    %c0_i32 = arith.constant 0 : i32
    %c0_i32_0 = arith.constant 0 : i32
    %c0_i32_1 = arith.constant 0 : i32
    return %c0_i32, %c0_i32_0 : i32, i32
  }
  func.func @transform_2(%arg0: i32) -> (i32, i32) {
    %c0_i32 = arith.constant 0 : i32
    %c0_i32_0 = arith.constant 0 : i32
    %c0_i32_1 = arith.constant 0 : i32
    return %c0_i32, %c0_i32_0 : i32, i32
  }
  func.func @transform_3(%arg0: i32) -> (i32, i32) {
    %c0_i32 = arith.constant 0 : i32
    %c0_i32_0 = arith.constant 0 : i32
    return %arg0, %c0_i32 : i32, i32
  }
}

module attributes {stable_mosaic.version = 11 : i64} {
  func.func @_matmul_1pass_kernel(%arg0: i32, %arg1: memref<16x256xbf16, #tpu.memory_space<vmem>>, %arg2: memref<256x256xbf16, #tpu.memory_space<vmem>>, %arg3: memref<1x256xf32, #tpu.memory_space<vmem>>, %arg4: memref<16x128xbf16, #tpu.memory_space<vmem>>, %arg5: memref<1x128xf32, #tpu.memory_space<vmem>>, %arg6: memref<16x128xbf16, #tpu.memory_space<vmem>>) attributes {dimension_semantics = [#tpu.dimension_semantics<parallel>], iteration_bounds = array<i64: 1>, scalar_prefetch = 0 : i64, scratch_operands = 0 : i64, tpu.core_type = #tpu.core_type<tc>, window_params = [{transform_indices = @transform_0, window_bounds = array<i64: 16, 256>}, {pipeline_mode = #tpu.pipeline_mode<synchronous>, transform_indices = @transform_1, window_bounds = array<i64: 256, 256>}, {pipeline_mode = #tpu.pipeline_mode<synchronous>, transform_indices = @transform_2, window_bounds = array<i64: 1, 256>}, {transform_indices = @transform_3, window_bounds = array<i64: 16, 128>}, {pipeline_mode = #tpu.pipeline_mode<synchronous>, transform_indices = @transform_4, window_bounds = array<i64: 1, 128>}, {transform_indices = @transform_5, window_bounds = array<i64: 16, 128>}]} {
    %c0 = arith.constant 0 : index
    %c0_0 = arith.constant 0 : index
    %0 = vector.load %arg1[%c0, %c0_0] : memref<16x256xbf16, #tpu.memory_space<vmem>>, vector<16x256xbf16>
    %c0_1 = arith.constant 0 : index
    %c0_2 = arith.constant 0 : index
    %1 = vector.load %arg2[%c0_1, %c0_2] : memref<256x256xbf16, #tpu.memory_space<vmem>>, vector<256x256xbf16>
    %cst = arith.constant dense<0.000000e+00> : vector<16x256xf32>
    %2 = tpu.matmul %0, %1, %cst {dimension_numbers = #tpu.dot_dimension_numbers<[1], [0], [0], [1], [0, 0, 1, 1], [], []>} : vector<16x256xbf16>, vector<256x256xbf16>, vector<16x256xf32> -> vector<16x256xf32>
    %c0_3 = arith.constant 0 : index
    %c0_4 = arith.constant 0 : index
    %3 = vector.load %arg3[%c0_3, %c0_4] : memref<1x256xf32, #tpu.memory_space<vmem>>, vector<1x256xf32>
    %4 = vector.broadcast %3 : vector<1x256xf32> to vector<16x256xf32>
    %5 = arith.addf %2, %4 : vector<16x256xf32>
    %6 = vector.extract_strided_slice %5 {offsets = [0, 0], sizes = [16, 128], strides = [1, 1]} : vector<16x256xf32> to vector<16x128xf32>
    %cst_5 = arith.constant 0.000000e+00 : f32
    %7 = vector.broadcast %cst_5 : f32 to vector<16x128xf32>
    %8 = arith.maximumf %6, %7 : vector<16x128xf32>
    %9 = vector.extract_strided_slice %5 {offsets = [0, 128], sizes = [16, 128], strides = [1, 1]} : vector<16x256xf32> to vector<16x128xf32>
    %cst_6 = arith.constant 0.000000e+00 : f32
    %10 = vector.broadcast %cst_6 : f32 to vector<16x128xf32>
    %11 = arith.maximumf %9, %10 : vector<16x128xf32>
    %12 = arith.addf %8, %11 : vector<16x128xf32>
    %c0_7 = arith.constant 0 : index
    %c0_8 = arith.constant 0 : index
    %13 = vector.load %arg5[%c0_7, %c0_8] : memref<1x128xf32, #tpu.memory_space<vmem>>, vector<1x128xf32>
    %c0_9 = arith.constant 0 : index
    %c0_10 = arith.constant 0 : index
    %14 = vector.load %arg4[%c0_9, %c0_10] : memref<16x128xbf16, #tpu.memory_space<vmem>>, vector<16x128xbf16>
    %15 = arith.extf %14 : vector<16x128xbf16> to vector<16x128xf32>
    %16 = vector.broadcast %13 : vector<1x128xf32> to vector<16x128xf32>
    %17 = arith.mulf %16, %15 : vector<16x128xf32>
    %18 = arith.addf %12, %17 : vector<16x128xf32>
    %19 = arith.truncf %18 : vector<16x128xf32> to vector<16x128xbf16>
    %c0_11 = arith.constant 0 : index
    %c0_12 = arith.constant 0 : index
    %20 = vector.load %arg6[%c0_11, %c0_12] : memref<16x128xbf16, #tpu.memory_space<vmem>>, vector<16x128xbf16>
    tpu.vector_store %arg6[%c0_11, %c0_12], %19 {strides = array<i32>} : memref<16x128xbf16, #tpu.memory_space<vmem>>, vector<16x128xbf16>,
    return
  }
  func.func @transform_0(%arg0: i32) -> (i32, i32) {
    %c0_i32 = arith.constant 0 : i32
    %c0_i32_0 = arith.constant 0 : i32
    return %arg0, %c0_i32 : i32, i32
  }
  func.func @transform_1(%arg0: i32) -> (i32, i32) {
    %c0_i32 = arith.constant 0 : i32
    %c0_i32_0 = arith.constant 0 : i32
    %c0_i32_1 = arith.constant 0 : i32
    return %c0_i32, %c0_i32_0 : i32, i32
  }
  func.func @transform_2(%arg0: i32) -> (i32, i32) {
    %c0_i32 = arith.constant 0 : i32
    %c0_i32_0 = arith.constant 0 : i32
    %c0_i32_1 = arith.constant 0 : i32
    return %c0_i32, %c0_i32_0 : i32, i32
  }
  func.func @transform_3(%arg0: i32) -> (i32, i32) {
    %c0_i32 = arith.constant 0 : i32
    %c0_i32_0 = arith.constant 0 : i32
    return %arg0, %c0_i32 : i32, i32
  }
  func.func @transform_4(%arg0: i32) -> (i32, i32) {
    %c0_i32 = arith.constant 0 : i32
    %c0_i32_0 = arith.constant 0 : i32
    %c0_i32_1 = arith.constant 0 : i32
    return %c0_i32, %c0_i32_0 : i32, i32
  }
  func.func @transform_5(%arg0: i32) -> (i32, i32) {
    %c0_i32 = arith.constant 0 : i32
    %c0_i32_0 = arith.constant 0 : i32
    return %arg0, %c0_i32 : i32, i32
  }
}

module attributes {stable_mosaic.version = 11 : i64} {
  func.func @_matmul_1pass_kernel(%arg0: i32, %arg1: memref<16x128xbf16, #tpu.memory_space<vmem>>, %arg2: memref<128x256xbf16, #tpu.memory_space<vmem>>, %arg3: memref<1x256xf32, #tpu.memory_space<vmem>>, %arg4: memref<16x128xbf16, #tpu.memory_space<vmem>>) attributes {dimension_semantics = [#tpu.dimension_semantics<parallel>], iteration_bounds = array<i64: 1>, scalar_prefetch = 0 : i64, scratch_operands = 0 : i64, tpu.core_type = #tpu.core_type<tc>, window_params = [{transform_indices = @transform_0, window_bounds = array<i64: 16, 128>}, {pipeline_mode = #tpu.pipeline_mode<synchronous>, transform_indices = @transform_1, window_bounds = array<i64: 128, 256>}, {pipeline_mode = #tpu.pipeline_mode<synchronous>, transform_indices = @transform_2, window_bounds = array<i64: 1, 256>}, {transform_indices = @transform_3, window_bounds = array<i64: 16, 128>}]} {
    %c0 = arith.constant 0 : index
    %c0_0 = arith.constant 0 : index
    %0 = vector.load %arg1[%c0, %c0_0] : memref<16x128xbf16, #tpu.memory_space<vmem>>, vector<16x128xbf16>
    %c0_1 = arith.constant 0 : index
    %c0_2 = arith.constant 0 : index
    %1 = vector.load %arg2[%c0_1, %c0_2] : memref<128x256xbf16, #tpu.memory_space<vmem>>, vector<128x256xbf16>
    %cst = arith.constant dense<0.000000e+00> : vector<16x256xf32>
    %2 = tpu.matmul %0, %1, %cst {dimension_numbers = #tpu.dot_dimension_numbers<[1], [0], [0], [1], [0, 0, 1, 1], [], []>} : vector<16x128xbf16>, vector<128x256xbf16>, vector<16x256xf32> -> vector<16x256xf32>
    %c0_3 = arith.constant 0 : index
    %c0_4 = arith.constant 0 : index
    %3 = vector.load %arg3[%c0_3, %c0_4] : memref<1x256xf32, #tpu.memory_space<vmem>>, vector<1x256xf32>
    %4 = vector.broadcast %3 : vector<1x256xf32> to vector<16x256xf32>
    %5 = arith.addf %2, %4 : vector<16x256xf32>
    %6 = vector.extract_strided_slice %5 {offsets = [0, 0], sizes = [16, 128], strides = [1, 1]} : vector<16x256xf32> to vector<16x128xf32>
    %cst_5 = arith.constant 0.000000e+00 : f32
    %7 = vector.broadcast %cst_5 : f32 to vector<16x128xf32>
    %8 = arith.maximumf %6, %7 : vector<16x128xf32>
    %9 = vector.extract_strided_slice %5 {offsets = [0, 128], sizes = [16, 128], strides = [1, 1]} : vector<16x256xf32> to vector<16x128xf32>
    %cst_6 = arith.constant 0.000000e+00 : f32
    %10 = vector.broadcast %cst_6 : f32 to vector<16x128xf32>
    %11 = arith.maximumf %9, %10 : vector<16x128xf32>
    %12 = arith.addf %8, %11 : vector<16x128xf32>
    %13 = arith.truncf %12 : vector<16x128xf32> to vector<16x128xbf16>
    %c0_7 = arith.constant 0 : index
    %c0_8 = arith.constant 0 : index
    %14 = vector.load %arg4[%c0_7, %c0_8] : memref<16x128xbf16, #tpu.memory_space<vmem>>, vector<16x128xbf16>
    tpu.vector_store %arg4[%c0_7, %c0_8], %13 {strides = array<i32>} : memref<16x128xbf16, #tpu.memory_space<vmem>>, vector<16x128xbf16>,
    return
  }
  func.func @transform_0(%arg0: i32) -> (i32, i32) {
    %c0_i32 = arith.constant 0 : i32
    %c0_i32_0 = arith.constant 0 : i32
    return %arg0, %c0_i32 : i32, i32
  }
  func.func @transform_1(%arg0: i32) -> (i32, i32) {
    %c0_i32 = arith.constant 0 : i32
    %c0_i32_0 = arith.constant 0 : i32
    %c0_i32_1 = arith.constant 0 : i32
    return %c0_i32, %c0_i32_0 : i32, i32
  }
  func.func @transform_2(%arg0: i32) -> (i32, i32) {
    %c0_i32 = arith.constant 0 : i32
    %c0_i32_0 = arith.constant 0 : i32
    %c0_i32_1 = arith.constant 0 : i32
    return %c0_i32, %c0_i32_0 : i32, i32
  }
  func.func @transform_3(%arg0: i32) -> (i32, i32) {
    %c0_i32 = arith.constant 0 : i32
    %c0_i32_0 = arith.constant 0 : i32
    return %arg0, %c0_i32 : i32, i32
  }
}

module attributes {stable_mosaic.version = 11 : i64} {
  func.func @_matmul_1pass_kernel(%arg0: i32, %arg1: memref<16x256xbf16, #tpu.memory_space<vmem>>, %arg2: memref<256x256xbf16, #tpu.memory_space<vmem>>, %arg3: memref<1x256xf32, #tpu.memory_space<vmem>>, %arg4: memref<16x256xbf16, #tpu.memory_space<vmem>>) attributes {dimension_semantics = [#tpu.dimension_semantics<parallel>], iteration_bounds = array<i64: 2>, scalar_prefetch = 0 : i64, scratch_operands = 0 : i64, tpu.core_type = #tpu.core_type<tc>, window_params = [{transform_indices = @transform_0, window_bounds = array<i64: 16, 256>}, {pipeline_mode = #tpu.pipeline_mode<synchronous>, transform_indices = @transform_1, window_bounds = array<i64: 256, 256>}, {pipeline_mode = #tpu.pipeline_mode<synchronous>, transform_indices = @transform_2, window_bounds = array<i64: 1, 256>}, {transform_indices = @transform_3, window_bounds = array<i64: 16, 256>}]} {
    %c0 = arith.constant 0 : index
    %c0_0 = arith.constant 0 : index
    %0 = vector.load %arg1[%c0, %c0_0] : memref<16x256xbf16, #tpu.memory_space<vmem>>, vector<16x256xbf16>
    %c0_1 = arith.constant 0 : index
    %c0_2 = arith.constant 0 : index
    %1 = vector.load %arg2[%c0_1, %c0_2] : memref<256x256xbf16, #tpu.memory_space<vmem>>, vector<256x256xbf16>
    %cst = arith.constant dense<0.000000e+00> : vector<16x256xf32>
    %2 = tpu.matmul %0, %1, %cst {dimension_numbers = #tpu.dot_dimension_numbers<[1], [0], [0], [1], [0, 0, 1, 1], [], []>} : vector<16x256xbf16>, vector<256x256xbf16>, vector<16x256xf32> -> vector<16x256xf32>
    %c0_3 = arith.constant 0 : index
    %c0_4 = arith.constant 0 : index
    %3 = vector.load %arg3[%c0_3, %c0_4] : memref<1x256xf32, #tpu.memory_space<vmem>>, vector<1x256xf32>
    %4 = vector.broadcast %3 : vector<1x256xf32> to vector<16x256xf32>
    %5 = arith.addf %2, %4 : vector<16x256xf32>
    %6 = arith.truncf %5 : vector<16x256xf32> to vector<16x256xbf16>
    %c0_5 = arith.constant 0 : index
    %c0_6 = arith.constant 0 : index
    %7 = vector.load %arg4[%c0_5, %c0_6] : memref<16x256xbf16, #tpu.memory_space<vmem>>, vector<16x256xbf16>
    tpu.vector_store %arg4[%c0_5, %c0_6], %6 {strides = array<i32>} : memref<16x256xbf16, #tpu.memory_space<vmem>>, vector<16x256xbf16>,
    return
  }
  func.func @transform_0(%arg0: i32) -> (i32, i32) {
    %c0_i32 = arith.constant 0 : i32
    %c0_i32_0 = arith.constant 0 : i32
    return %arg0, %c0_i32 : i32, i32
  }
  func.func @transform_1(%arg0: i32) -> (i32, i32) {
    %c0_i32 = arith.constant 0 : i32
    %c0_i32_0 = arith.constant 0 : i32
    %c0_i32_1 = arith.constant 0 : i32
    return %c0_i32, %c0_i32_0 : i32, i32
  }
  func.func @transform_2(%arg0: i32) -> (i32, i32) {
    %c0_i32 = arith.constant 0 : i32
    %c0_i32_0 = arith.constant 0 : i32
    %c0_i32_1 = arith.constant 0 : i32
    return %c0_i32, %c0_i32_0 : i32, i32
  }
  func.func @transform_3(%arg0: i32) -> (i32, i32) {
    %c0_i32 = arith.constant 0 : i32
    %c0_i32_0 = arith.constant 0 : i32
    return %arg0, %c0_i32 : i32, i32
  }
}

module attributes {stable_mosaic.version = 11 : i64} {
  func.func @_matmul_kacc_kernel(%arg0: i32, %arg1: i32, %arg2: memref<16x256xbf16, #tpu.memory_space<vmem>>, %arg3: memref<2304x256xbf16, #tpu.memory_space<vmem>>, %arg4: memref<1x256xf32, #tpu.memory_space<vmem>>, %arg5: memref<16x256xbf16, #tpu.memory_space<vmem>>, %arg6: memref<16x256xf32, #tpu.memory_space<vmem>>) attributes {dimension_semantics = [#tpu.dimension_semantics<parallel>, #tpu.dimension_semantics<arbitrary>], iteration_bounds = array<i64: 2, 9>, scalar_prefetch = 0 : i64, scratch_operands = 1 : i64, tpu.core_type = #tpu.core_type<tc>, window_params = [{transform_indices = @transform_0, window_bounds = array<i64: 16, 256>}, {pipeline_mode = #tpu.pipeline_mode<synchronous>, transform_indices = @transform_1, window_bounds = array<i64: 2304, 256>}, {pipeline_mode = #tpu.pipeline_mode<synchronous>, transform_indices = @transform_2, window_bounds = array<i64: 1, 256>}, {transform_indices = @transform_3, window_bounds = array<i64: 16, 256>}]} {
    %c0_i32 = arith.constant 0 : i32
    %0 = arith.cmpi eq, %arg1, %c0_i32 : i32
    %1 = arith.extui %0 : i1 to i32
    %c0_i32_0 = arith.constant 0 : i32
    %2 = arith.cmpi ne, %1, %c0_i32_0 : i32
    scf.if %2 {
      %c0_8 = arith.constant 0 : index
      %c0_9 = arith.constant 0 : index
      %15 = vector.load %arg4[%c0_8, %c0_9] : memref<1x256xf32, #tpu.memory_space<vmem>>, vector<1x256xf32>
      %16 = vector.shape_cast %15 : vector<1x256xf32> to vector<1x256xf32>
      %17 = vector.broadcast %16 : vector<1x256xf32> to vector<16x256xf32>
      %c0_10 = arith.constant 0 : index
      %c0_11 = arith.constant 0 : index
      %18 = vector.load %arg6[%c0_10, %c0_11] : memref<16x256xf32, #tpu.memory_space<vmem>>, vector<16x256xf32>
      tpu.vector_store %arg6[%c0_10, %c0_11], %17 {strides = array<i32>} : memref<16x256xf32, #tpu.memory_space<vmem>>, vector<16x256xf32>,
    } else {
    }
    %c256_i32 = arith.constant 256 : i32
    %3 = arith.muli %arg1, %c256_i32 : i32
    %4 = tpu.assume_multiple %3, 256 : i32
    %c0 = arith.constant 0 : index
    %c0_1 = arith.constant 0 : index
    %5 = vector.load %arg6[%c0, %c0_1] : memref<16x256xf32, #tpu.memory_space<vmem>>, vector<16x256xf32>
    %c0_2 = arith.constant 0 : index
    %c0_3 = arith.constant 0 : index
    %6 = vector.load %arg2[%c0_2, %c0_3] : memref<16x256xbf16, #tpu.memory_space<vmem>>, vector<16x256xbf16>
    %7 = arith.index_cast %4 : i32 to index
    %c0_4 = arith.constant 0 : index
    %8 = vector.load %arg3[%7, %c0_4] : memref<2304x256xbf16, #tpu.memory_space<vmem>>, vector<256x256xbf16>
    %cst = arith.constant dense<0.000000e+00> : vector<16x256xf32>
    %9 = tpu.matmul %6, %8, %cst {dimension_numbers = #tpu.dot_dimension_numbers<[1], [0], [0], [1], [0, 0, 1, 1], [], []>} : vector<16x256xbf16>, vector<256x256xbf16>, vector<16x256xf32> -> vector<16x256xf32>
    %10 = arith.addf %5, %9 : vector<16x256xf32>
    %c0_5 = arith.constant 0 : index
    %c0_6 = arith.constant 0 : index
    %11 = vector.load %arg6[%c0_5, %c0_6] : memref<16x256xf32, #tpu.memory_space<vmem>>, vector<16x256xf32>
    tpu.vector_store %arg6[%c0_5, %c0_6], %10 {strides = array<i32>} : memref<16x256xf32, #tpu.memory_space<vmem>>, vector<16x256xf32>,
    %c8_i32 = arith.constant 8 : i32
    %12 = arith.cmpi eq, %arg1, %c8_i32 : i32
    %13 = arith.extui %12 : i1 to i32
    %c0_i32_7 = arith.constant 0 : i32
    %14 = arith.cmpi ne, %13, %c0_i32_7 : i32
    scf.if %14 {
      %c0_8 = arith.constant 0 : index
      %c0_9 = arith.constant 0 : index
      %15 = vector.load %arg6[%c0_8, %c0_9] : memref<16x256xf32, #tpu.memory_space<vmem>>, vector<16x256xf32>
      %16 = arith.truncf %15 : vector<16x256xf32> to vector<16x256xbf16>
      %c0_10 = arith.constant 0 : index
      %c0_11 = arith.constant 0 : index
      %17 = vector.load %arg5[%c0_10, %c0_11] : memref<16x256xbf16, #tpu.memory_space<vmem>>, vector<16x256xbf16>
      tpu.vector_store %arg5[%c0_10, %c0_11], %16 {strides = array<i32>} : memref<16x256xbf16, #tpu.memory_space<vmem>>, vector<16x256xbf16>,
    } else {
    }
    return
  }
  func.func @transform_0(%arg0: i32, %arg1: i32) -> (i32, i32) {
    %c0_i32 = arith.constant 0 : i32
    return %arg0, %arg1 : i32, i32
  }
  func.func @transform_1(%arg0: i32, %arg1: i32) -> (i32, i32) {
    %c0_i32 = arith.constant 0 : i32
    %c0_i32_0 = arith.constant 0 : i32
    %c0_i32_1 = arith.constant 0 : i32
    return %c0_i32, %c0_i32_0 : i32, i32
  }
  func.func @transform_2(%arg0: i32, %arg1: i32) -> (i32, i32) {
    %c0_i32 = arith.constant 0 : i32
    %c0_i32_0 = arith.constant 0 : i32
    %c0_i32_1 = arith.constant 0 : i32
    return %c0_i32, %c0_i32_0 : i32, i32
  }
  func.func @transform_3(%arg0: i32, %arg1: i32) -> (i32, i32) {
    %c0_i32 = arith.constant 0 : i32
    %c0_i32_0 = arith.constant 0 : i32
    return %arg0, %c0_i32 : i32, i32
  }
}

module attributes {stable_mosaic.version = 11 : i64} {
  func.func @_matmul_1pass_kernel(%arg0: i32, %arg1: memref<16x256xbf16, #tpu.memory_space<vmem>>, %arg2: memref<256x128xbf16, #tpu.memory_space<vmem>>, %arg3: memref<1x128xf32, #tpu.memory_space<vmem>>, %arg4: memref<16x128xbf16, #tpu.memory_space<vmem>>) attributes {dimension_semantics = [#tpu.dimension_semantics<parallel>], iteration_bounds = array<i64: 2>, scalar_prefetch = 0 : i64, scratch_operands = 0 : i64, tpu.core_type = #tpu.core_type<tc>, window_params = [{transform_indices = @transform_0, window_bounds = array<i64: 16, 256>}, {pipeline_mode = #tpu.pipeline_mode<synchronous>, transform_indices = @transform_1, window_bounds = array<i64: 256, 128>}, {pipeline_mode = #tpu.pipeline_mode<synchronous>, transform_indices = @transform_2, window_bounds = array<i64: 1, 128>}, {transform_indices = @transform_3, window_bounds = array<i64: 16, 128>}]} {
    %c0 = arith.constant 0 : index
    %c0_0 = arith.constant 0 : index
    %0 = vector.load %arg1[%c0, %c0_0] : memref<16x256xbf16, #tpu.memory_space<vmem>>, vector<16x256xbf16>
    %c0_1 = arith.constant 0 : index
    %c0_2 = arith.constant 0 : index
    %1 = vector.load %arg2[%c0_1, %c0_2] : memref<256x128xbf16, #tpu.memory_space<vmem>>, vector<256x128xbf16>
    %cst = arith.constant dense<0.000000e+00> : vector<16x128xf32>
    %2 = tpu.matmul %0, %1, %cst {dimension_numbers = #tpu.dot_dimension_numbers<[1], [0], [0], [1], [0, 0, 1, 1], [], []>} : vector<16x256xbf16>, vector<256x128xbf16>, vector<16x128xf32> -> vector<16x128xf32>
    %c0_3 = arith.constant 0 : index
    %c0_4 = arith.constant 0 : index
    %3 = vector.load %arg3[%c0_3, %c0_4] : memref<1x128xf32, #tpu.memory_space<vmem>>, vector<1x128xf32>
    %4 = vector.broadcast %3 : vector<1x128xf32> to vector<16x128xf32>
    %5 = arith.addf %2, %4 : vector<16x128xf32>
    %6 = arith.truncf %5 : vector<16x128xf32> to vector<16x128xbf16>
    %c0_5 = arith.constant 0 : index
    %c0_6 = arith.constant 0 : index
    %7 = vector.load %arg4[%c0_5, %c0_6] : memref<16x128xbf16, #tpu.memory_space<vmem>>, vector<16x128xbf16>
    tpu.vector_store %arg4[%c0_5, %c0_6], %6 {strides = array<i32>} : memref<16x128xbf16, #tpu.memory_space<vmem>>, vector<16x128xbf16>,
    return
  }
  func.func @transform_0(%arg0: i32) -> (i32, i32) {
    %c0_i32 = arith.constant 0 : i32
    %c0_i32_0 = arith.constant 0 : i32
    return %arg0, %c0_i32 : i32, i32
  }
  func.func @transform_1(%arg0: i32) -> (i32, i32) {
    %c0_i32 = arith.constant 0 : i32
    %c0_i32_0 = arith.constant 0 : i32
    %c0_i32_1 = arith.constant 0 : i32
    return %c0_i32, %c0_i32_0 : i32, i32
  }
  func.func @transform_2(%arg0: i32) -> (i32, i32) {
    %c0_i32 = arith.constant 0 : i32
    %c0_i32_0 = arith.constant 0 : i32
    %c0_i32_1 = arith.constant 0 : i32
    return %c0_i32, %c0_i32_0 : i32, i32
  }
  func.func @transform_3(%arg0: i32) -> (i32, i32) {
    %c0_i32 = arith.constant 0 : i32
    %c0_i32_0 = arith.constant 0 : i32
    return %arg0, %c0_i32 : i32, i32
  }
}

</mosaic_0001>

<llo_original>
// kernel: _lambda_.14
$region0: #{_lambda_.14}
  #allocation0 [shape = 'u32[]', space=smem, size = 0x4, offset = 0x4, fixed_abs, tag = 'smem constant byte address 0x4 - core index']
  #allocation1 [shape = 'u32[144,128]{1,0:T(1,128)}', space=vmem, size = 0x12000, scoped, tag = 'internal scratch']
  %s0 = inlined_call_operand.vmem [shape: bf16[128,128], index: 0, kind: input, shape index: {}]
  %s1 = inlined_call_operand.vmem [shape: bf16[128,128], index: 1, kind: input, shape index: {}]
  %s2 = inlined_call_operand.vmem [shape: f32[1,128], index: 2, kind: input, shape index: {}]
  %s3 = inlined_call_operand.vmem [shape: bf16[128,128], index: 3, kind: output, shape index: {}]
  %s4 = sld [smem:[#allocation0]]
  $region45: #{_lambda_.14} parent=0
    _
  %s6 = ssub.s32 1, %s4
  %s7 = scalar_select 0, %s6, %s4
  loop: start=0, step=1, limit=4
  $region2: #{_lambda_.14} parent=0 // loop_pre_header
    _
  $region3: #{_lambda_.14} parent=0 // loop_header
    %s9 = sphi 0, %s13
    %p10 = scmp.ge.s32.totalorder %s9, 4
    %s19 = sphi 0, %s21
    %s22 = sphi 0, %s19
    %s23 = sphi 0, %s22
    %s39 = sphi 0, %s23
    %s43 = sphi 0, %s43
    %s45 = sphi 0, %s43
    %s46 = sphi 0, %s45
    %s60 = sphi 0, %s46
    %s64 = sphi 0, %s64
    %s66 = sphi 0, %s64
    %s67 = sphi 0, %s66
    %s81 = sphi 0, %s67
    %s87 = sphi 0, %s89
    %s90 = sphi 0, %s87
    %s91 = sphi 0, %s90
    %s107 = sphi 0, %s91
  $region4: #{_lambda_.14} parent=0 // loop_header_branch
    %12 = sbr.rel (%p10) target = $region8
  $region5: #{_lambda_.14} parent=0 // loop_body
    %s14 = ssub.s32 %s9, 1
    %s15 = ssub.s32 %s9, 2
    %s16 = sadd.s32 %s9, 1
    %s17 = ssub.s32 %s9, %s16
    %p18 = scmp.eq.s32.totalorder %s17, 0
    %s20 = sadd.s32 %s19, 1
    %s21 = scalar_select %p18, %s19, %s20
    %p24 = pneg %p18
    %p25 = scmp.eq.s32.totalorder %s9, 1
    %p26 = por %p24, %p25
    %p27 = scmp.ne.s32.totalorder %s19, %s22
    %p28 = scmp.eq.s32.totalorder %s9, 0
    %p29 = por %p27, %p28
    %p30 = scmp.ne.s32.totalorder %s19, %s22
    %p31 = scmp.eq.s32.totalorder %s14, 1
    %p32 = por %p30, %p31
    %p33 = scmp.ne.s32.totalorder %s22, %s23
    %p34 = scmp.eq.s32.totalorder %s14, 0
    %p35 = por %p33, %p34
    %p36 = scmp.ne.s32.totalorder %s22, %s23
    %p37 = scmp.eq.s32.totalorder %s15, 1
    %p38 = por %p36, %p37
    %p40 = scmp.ne.s32.totalorder %s23, %s39
    %p41 = scmp.eq.s32.totalorder %s15, 0
    %p42 = por %p40, %p41
    %s44 = sadd.s32 %s43, 1
    %p47 = scmp.eq.s32.totalorder %s9, 1
    %p48 = scmp.ne.s32.totalorder %s43, %s45
    %p49 = scmp.eq.s32.totalorder %s9, 0
    %p50 = por %p48, %p49
    %p51 = scmp.ne.s32.totalorder %s43, %s45
    %p52 = scmp.eq.s32.totalorder %s14, 1
    %p53 = por %p51, %p52
    %p54 = scmp.ne.s32.totalorder %s45, %s46
    %p55 = scmp.eq.s32.totalorder %s14, 0
    %p56 = por %p54, %p55
    %p57 = scmp.ne.s32.totalorder %s45, %s46
    %p58 = scmp.eq.s32.totalorder %s15, 1
    %p59 = por %p57, %p58
    %p61 = scmp.ne.s32.totalorder %s46, %s60
    %p62 = scmp.eq.s32.totalorder %s15, 0
    %p63 = por %p61, %p62
    %s65 = sadd.s32 %s64, 1
    %p68 = scmp.eq.s32.totalorder %s9, 1
    %p69 = scmp.ne.s32.totalorder %s64, %s66
    %p70 = scmp.eq.s32.totalorder %s9, 0
    %p71 = por %p69, %p70
    %p72 = scmp.ne.s32.totalorder %s64, %s66
    %p73 = scmp.eq.s32.totalorder %s14, 1
    %p74 = por %p72, %p73
    %p75 = scmp.ne.s32.totalorder %s66, %s67
    %p76 = scmp.eq.s32.totalorder %s14, 0
    %p77 = por %p75, %p76
    %p78 = scmp.ne.s32.totalorder %s66, %s67
    %p79 = scmp.eq.s32.totalorder %s15, 1
    %p80 = por %p78, %p79
    %p82 = scmp.ne.s32.totalorder %s67, %s81
    %p83 = scmp.eq.s32.totalorder %s15, 0
    %p84 = por %p82, %p83
    %s85 = ssub.s32 %s9, %s16
    %p86 = scmp.eq.s32.totalorder %s85, 0
    %s88 = sadd.s32 %s87, 1
    %s89 = scalar_select %p86, %s87, %s88
    %p92 = pneg %p86
    %p93 = scmp.eq.s32.totalorder %s9, 1
    %p94 = por %p92, %p93
    %p95 = scmp.ne.s32.totalorder %s87, %s90
    %p96 = scmp.eq.s32.totalorder %s9, 0
    %p97 = por %p95, %p96
    %p98 = scmp.ne.s32.totalorder %s87, %s90
    %p99 = scmp.eq.s32.totalorder %s14, 1
    %p100 = por %p98, %p99
    %p101 = scmp.ne.s32.totalorder %s90, %s91
    %p102 = scmp.eq.s32.totalorder %s14, 0
    %p103 = por %p101, %p102
    %p104 = scmp.ne.s32.totalorder %s90, %s91
    %p105 = scmp.eq.s32.totalorder %s15, 1
    %p106 = por %p104, %p105
    %p108 = scmp.ne.s32.totalorder %s91, %s107
    %p109 = scmp.eq.s32.totalorder %s15, 0
    %p110 = por %p108, %p109
    %p111 = scmp.le.s32.totalorder 1, %s9
    %p112 = scmp.lt.s32.totalorder %s9, 3
    %p113 = pnand %p111, %p112
    %p114 = pneg %p113
    // Predicated region
    $region9: #{_lambda_.14} parent=5 // pred_check
      _
    $region10: #{_lambda_.14} parent=5 // pred_check_branch
      %116 = sbr.rel (%p113) target = $region12
    $region11: #{_lambda_.14} parent=5 // pred_region
      %s117 = ssub.s32 %s9, 1
      // Predicated region
      $region13: #{_lambda_.14} parent=11 // pred_check
        %p118 = pneg %p56
      $region14: #{_lambda_.14} parent=11 // pred_check_branch
        %120 = sbr.rel (%p118) target = $region16
      $region15: #{_lambda_.14} parent=11 // pred_region
        _
      $region16: #{_lambda_.14} parent=11 // pred_fallthru
        _
      // Predicated region
      $region17: #{_lambda_.14} parent=11 // pred_check
        %p121 = pneg %p77
      $region18: #{_lambda_.14} parent=11 // pred_check_branch
        %123 = sbr.rel (%p121) target = $region20
      $region19: #{_lambda_.14} parent=11 // pred_region
        _
      $region20: #{_lambda_.14} parent=11 // pred_fallthru
        _
    $region12: #{_lambda_.14} parent=5 // pred_fallthru
      _
    %p124 = scmp.lt.s32.totalorder %s9, 2
    // Predicated region
    $region21: #{_lambda_.14} parent=5 // pred_check
      %p125 = pneg %p124
    $region22: #{_lambda_.14} parent=5 // pred_check_branch
      %127 = sbr.rel (%p125) target = $region24
    $region23: #{_lambda_.14} parent=5 // pred_region
      // Predicated region
      $region25: #{_lambda_.14} parent=23 // pred_check
        %p128 = pneg %p29
      $region26: #{_lambda_.14} parent=23 // pred_check_branch
        %130 = sbr.rel (%p128) target = $region28
      $region27: #{_lambda_.14} parent=23 // pred_region
        %s131 = smul.u32 8, %s9
        %p132 = scmp.lt.s32.totalorder %s131, 15
        %s133 = scalar_select %p132, %s131, 15
        %s134 = smul.addr %s133, 4
        %s135 = scalar_lea.vmem %s0, %s134
        %s136 = smul.u32 8, %s9
      $region28: #{_lambda_.14} parent=23 // pred_fallthru
        _
    $region24: #{_lambda_.14} parent=5 // pred_fallthru
      _
    %p137 = scmp.le.s32.totalorder 1, %s9
    %p138 = scmp.lt.s32.totalorder %s9, 3
    %p139 = pnand %p137, %p138
    %p140 = pneg %p139
    // Predicated region
    $region29: #{_lambda_.14} parent=5 // pred_check
      _
    $region30: #{_lambda_.14} parent=5 // pred_check_branch
      %142 = sbr.rel (%p139) target = $region32
    $region31: #{_lambda_.14} parent=5 // pred_region
      %s143 = ssub.s32 %s9, 1
      %s144 = smul.u32 8, %s14
      %p145 = scmp.lt.s32.totalorder %s144, 15
      %s146 = scalar_select %p145, %s144, 15
      %s147 = smul.addr %s146, 4
      %s148 = scalar_lea.vmem %s0, %s147
      %p149 = pneg %p35
      %p150 = pneg %p32
      %p151 = pneg %p56
      %p152 = pneg %p53
      %p153 = pneg %p77
      %p154 = pneg %p74
      %p155 = pneg %p103
      %p156 = pneg %p100
      %s157 = smul.u32 8, %s14
      %p158 = scmp.lt.s32.totalorder %s157, 15
      %s159 = scalar_select %p158, %s157, 15
      %s160 = smul.addr %s159, 4
      %s161 = scalar_lea.vmem %s3, %s160
      %s162 = smul.u32 8, %s14
      %p163 = scmp.lt.s32.totalorder %s162, 15
      %s164 = scalar_select %p163, %s162, 15
      %s165 = smul.addr %s164, 4
      %s166 = scalar_lea.vmem %s0, %s165
      %s167 = smul.u32 8, %s14
      %s168 = smul.u32 8, %s14
      %p169 = scmp.lt.s32.totalorder %s168, 15
      %s170 = scalar_select %p169, %s168, 15
      %s171 = smul.addr %s170, 4
      %s172 = scalar_lea.vmem %s3, %s171
      %s173 = smul.u32 8, %s14
      %v175 = vld [vmem:[%s166] sm:$0xf]
      %v176 = vld [vmem:[%s166 + $0x4] sm:$0xf]
      %v177 = vld [vmem:[%s166 + $0x8] sm:$0xf]
      %v178 = vld [vmem:[%s166 + $0xc] sm:$0xf]
      %v179 = vld [vmem:[%s166 + $0x10] sm:$0xf]
      %v180 = vld [vmem:[%s166 + $0x14] sm:$0xf]
      %v181 = vld [vmem:[%s166 + $0x18] sm:$0xf]
      %v182 = vld [vmem:[%s166 + $0x1c] sm:$0xf]
      %v183 = vld [vmem:[%s1] sm:$0xf]
      %v184 = vld [vmem:[%s1 + $0x4] sm:$0xf]
      %v185 = vld [vmem:[%s1 + $0x8] sm:$0xf]
      %v186 = vld [vmem:[%s1 + $0xc] sm:$0xf]
      %v187 = vld [vmem:[%s1 + $0x10] sm:$0xf]
      %v188 = vld [vmem:[%s1 + $0x14] sm:$0xf]
      %v189 = vld [vmem:[%s1 + $0x18] sm:$0xf]
      %v190 = vld [vmem:[%s1 + $0x1c] sm:$0xf]
      %v191 = vld [vmem:[%s1 + $0x20] sm:$0xf]
      %v192 = vld [vmem:[%s1 + $0x24] sm:$0xf]
      %v193 = vld [vmem:[%s1 + $0x28] sm:$0xf]
      %v194 = vld [vmem:[%s1 + $0x2c] sm:$0xf]
      %v195 = vld [vmem:[%s1 + $0x30] sm:$0xf]
      %v196 = vld [vmem:[%s1 + $0x34] sm:$0xf]
      %v197 = vld [vmem:[%s1 + $0x38] sm:$0xf]
      %v198 = vld [vmem:[%s1 + $0x3c] sm:$0xf]
      %v199 = vld [vmem:[%s2] sm:$0x1]
      %v201 = vlaneseq
      %v202 = vshrl.u32 %v201, 7
      %v203 = vsub.s32 0, %v202
      %v204 = vrot.slane %v199, %v203
      %v214 = vunpack.c.l.b16 %v175
      %v215 = vunpack.c.l.b16 %v176
      %v216 = vunpack.c.l.b16 %v177
      %v217 = vunpack.c.l.b16 %v178
      %v218 = vunpack.c.l.b16 %v179
      %v219 = vunpack.c.l.b16 %v180
      %v220 = vunpack.c.l.b16 %v181
      %v221 = vunpack.c.l.b16 %v182
      %v222 = vpack.c.b16 %v215, %v214
      %v223 = vpack.c.b16 %v217, %v216
      %v224 = vpack.c.b16 %v219, %v218
      %v225 = vpack.c.b16 %v221, %v220
      %v246 = vunpack.c.l.b16 %v183
      %v247 = vunpack.c.l.b16 %v184
      %v248 = vunpack.c.l.b16 %v185
      %v249 = vunpack.c.l.b16 %v186
      %v250 = vunpack.c.l.b16 %v187
      %v251 = vunpack.c.l.b16 %v188
      %v252 = vunpack.c.l.b16 %v189
      %v253 = vunpack.c.l.b16 %v190
      %v254 = vunpack.c.l.b16 %v191
      %v255 = vunpack.c.l.b16 %v192
      %v256 = vunpack.c.l.b16 %v193
      %v257 = vunpack.c.l.b16 %v194
      %v258 = vunpack.c.l.b16 %v195
      %v259 = vunpack.c.l.b16 %v196
      %v260 = vunpack.c.l.b16 %v197
      %v261 = vunpack.c.l.b16 %v198
      %v262 = vpack.c.b16 %v247, %v246
      %v263 = vpack.c.b16 %v249, %v248
      %v264 = vpack.c.b16 %v251, %v250
      %v265 = vpack.c.b16 %v253, %v252
      %v266 = vpack.c.b16 %v255, %v254
      %v267 = vpack.c.b16 %v257, %v256
      %v268 = vpack.c.b16 %v259, %v258
      %v269 = vpack.c.b16 %v261, %v260
      %278 = vmatprep.subr.bf16.mxu0 0
      %279 = vmatpush1.bf16.msra.mxu0 %v262
      %280 = vmatprep.subr.bf16.mxu0 0
      %281 = vmatpush1.bf16.msra.mxu0 %v263
      %282 = vmatprep.subr.bf16.mxu0 0
      %283 = vmatpush1.bf16.msra.mxu0 %v264
      %284 = vmatprep.subr.bf16.mxu0 0
      %285 = vmatpush1.bf16.msra.mxu0 %v265
      %286 = vmatprep.subr.bf16.mxu0 0
      %287 = vmatpush1.bf16.msra.mxu0 %v266
      %288 = vmatprep.subr.bf16.mxu0 0
      %289 = vmatpush1.bf16.msra.mxu0 %v267
      %290 = vmatprep.subr.bf16.mxu0 0
      %291 = vmatpush1.bf16.msra.mxu0 %v268
      %292 = vmatprep.subr.bf16.mxu0 0
      %293 = vmatpush1.bf16.msra.mxu0 %v269
      %294 = vmatprep.subr.bf16.mxu0 0
      %295 = vmatpush1.bf16.msra.mxu0 0
      %296 = vmatprep.subr.bf16.mxu0 0
      %297 = vmatpush1.bf16.msra.mxu0 0
      %298 = vmatprep.subr.bf16.mxu0 0
      %299 = vmatpush1.bf16.msra.mxu0 0
      %300 = vmatprep.subr.bf16.mxu0 0
      %301 = vmatpush1.bf16.msra.mxu0 0
      %302 = vmatprep.subr.bf16.mxu0 0
      %303 = vmatpush1.bf16.msra.mxu0 0
      %304 = vmatprep.subr.bf16.mxu0 0
      %305 = vmatpush1.bf16.msra.mxu0 0
      %306 = vmatprep.subr.bf16.mxu0 0
      %307 = vmatpush1.bf16.msra.mxu0 0
      %308 = vmatprep.subr.bf16.mxu0 0
      %309 = vmatpush1.bf16.msra.mxu0 0
      %310 = vmatprep.mubr.bf16.mxu0 0
      %311 = vmatmul.mubr.bf16.gmra.mrb[0].mxu0 %v222
      %v312 = vpop.f32.mrb[0].mxu0
      %v313 = vadd.f32 %v204, %v312
      %v314 = vpop.f32.mrb[0].mxu0
      %v315 = vpop.f32.mrb[0].mxu0
      %v316 = vadd.f32 %v204, %v315
      %v317 = vpop.f32.mrb[0].mxu0
      %318 = vmatprep.mubr.bf16.mxu0 0
      %319 = vmatmul.mubr.bf16.gmra.mrb[0].mxu0 %v223
      %v320 = vpop.f32.mrb[0].mxu0
      %v321 = vadd.f32 %v204, %v320
      %v322 = vpop.f32.mrb[0].mxu0
      %v323 = vpop.f32.mrb[0].mxu0
      %v324 = vadd.f32 %v204, %v323
      %v325 = vpop.f32.mrb[0].mxu0
      %326 = vmatprep.mubr.bf16.mxu0 0
      %327 = vmatmul.mubr.bf16.gmra.mrb[0].mxu0 %v224
      %v328 = vpop.f32.mrb[0].mxu0
      %v329 = vadd.f32 %v204, %v328
      %v330 = vpop.f32.mrb[0].mxu0
      %v331 = vpop.f32.mrb[0].mxu0
      %v332 = vadd.f32 %v204, %v331
      %v333 = vpop.f32.mrb[0].mxu0
      %334 = vmatprep.mubr.bf16.mxu0 0
      %335 = vmatmul.mubr.bf16.gmra.mrb[0].mxu0 %v225
      %v336 = vpop.f32.mrb[0].mxu0
      %v337 = vadd.f32 %v204, %v336
      %v338 = vpop.f32.mrb[0].mxu0
      %v339 = vpop.f32.mrb[0].mxu0
      %v340 = vadd.f32 %v204, %v339
      %v341 = vpop.f32.mrb[0].mxu0
      %342 = vdwg.mxu0
      %v343 = vmax.f32 %v313, 0.0
      %v344 = vmax.f32 %v316, 0.0
      %v345 = vmax.f32 %v321, 0.0
      %v346 = vmax.f32 %v324, 0.0
      %v347 = vmax.f32 %v329, 0.0
      %v348 = vmax.f32 %v332, 0.0
      %v349 = vmax.f32 %v337, 0.0
      %v350 = vmax.f32 %v340, 0.0
      %v351 = vpack.c.bf16 %v344, %v343
      %v352 = vpack.c.bf16 %v346, %v345
      %v353 = vpack.c.bf16 %v348, %v347
      %v354 = vpack.c.bf16 %v350, %v349
      %v359 = vunpack.c.l.b16 %v351
      %v360 = vunpack.c.h.b16 %v351
      %v361 = vunpack.c.l.b16 %v352
      %v362 = vunpack.c.h.b16 %v352
      %v363 = vunpack.c.l.b16 %v353
      %v364 = vunpack.c.h.b16 %v353
      %v365 = vunpack.c.l.b16 %v354
      %v366 = vunpack.c.h.b16 %v354
      %v367 = vpack.c.b16 %v359, %v359
      %v368 = vpack.c.b16 %v360, %v360
      %v369 = vpack.c.b16 %v361, %v361
      %v370 = vpack.c.b16 %v362, %v362
      %v371 = vpack.c.b16 %v363, %v363
      %v372 = vpack.c.b16 %v364, %v364
      %v373 = vpack.c.b16 %v365, %v365
      %v374 = vpack.c.b16 %v366, %v366
      %383 = vst [vmem:[%s172] sm:$0xf] %v367
      %384 = vst [vmem:[%s172 + $0x4] sm:$0xf] %v368
      %385 = vst [vmem:[%s172 + $0x8] sm:$0xf] %v369
      %386 = vst [vmem:[%s172 + $0xc] sm:$0xf] %v370
      %387 = vst [vmem:[%s172 + $0x10] sm:$0xf] %v371
      %388 = vst [vmem:[%s172 + $0x14] sm:$0xf] %v372
      %389 = vst [vmem:[%s172 + $0x18] sm:$0xf] %v373
      %390 = vst [vmem:[%s172 + $0x1c] sm:$0xf] %v374
      %s391 = smul.u32 8, %s14
      %p392 = scmp.lt.s32.totalorder %s391, 15
      %s393 = scalar_select %p392, %s391, 15
      %s394 = smul.addr %s393, 4
      %s395 = scalar_lea.vmem %s3, %s394
      // Predicated region
      $region33: #{_lambda_.14} parent=31 // pred_check
        %p396 = pneg %p100
      $region34: #{_lambda_.14} parent=31 // pred_check_branch
        %398 = sbr.rel (%p396) target = $region36
      $region35: #{_lambda_.14} parent=31 // pred_region
        %s399 = smul.u32 8, %s14
      $region36: #{_lambda_.14} parent=31 // pred_fallthru
        _
    $region32: #{_lambda_.14} parent=5 // pred_fallthru
      _
    %p400 = scmp.le.s32.totalorder 2, %s9
    // Predicated region
    $region37: #{_lambda_.14} parent=5 // pred_check
      %p401 = pneg %p400
    $region38: #{_lambda_.14} parent=5 // pred_check_branch
      %403 = sbr.rel (%p401) target = $region40
    $region39: #{_lambda_.14} parent=5 // pred_region
      %s404 = ssub.s32 %s9, 2
      // Predicated region
      $region41: #{_lambda_.14} parent=39 // pred_check
        %p405 = pneg %p106
      $region42: #{_lambda_.14} parent=39 // pred_check_branch
        %407 = sbr.rel (%p405) target = $region44
      $region43: #{_lambda_.14} parent=39 // pred_region
        %s408 = smul.u32 8, %s15
        %p409 = scmp.lt.s32.totalorder %s408, 15
        %s410 = scalar_select %p409, %s408, 15
        %s411 = smul.addr %s410, 4
        %s412 = scalar_lea.vmem %s3, %s411
      $region44: #{_lambda_.14} parent=39 // pred_fallthru
        _
    $region40: #{_lambda_.14} parent=5 // pred_fallthru
      _
  $region6: #{_lambda_.14} parent=0 // loop_footer
    %s13 = sadd.s32 1, %s9
  $region7: #{_lambda_.14} parent=0 // loop_footer_branch
    %8 = sbr.rel target = $region3
  $region8: #{_lambda_.14} parent=0 // loop_exit
    _

// kernel: _lambda_.16
$region0: #{_lambda_.16}
  #allocation0 [shape = 'u32[]', space=smem, size = 0x4, offset = 0x4, fixed_abs, tag = 'smem constant byte address 0x4 - core index']
  #allocation1 [shape = 'u32[144,128]{1,0:T(1,128)}', space=vmem, size = 0x12000, scoped, tag = 'internal scratch']
  %s0 = inlined_call_operand.vmem [shape: bf16[32,128], index: 0, kind: input, shape index: {}]
  %s1 = inlined_call_operand.vmem [shape: bf16[128,128], index: 1, kind: input, shape index: {}]
  %s2 = inlined_call_operand.vmem [shape: f32[1,128], index: 2, kind: input, shape index: {}]
  %s3 = inlined_call_operand.vmem [shape: bf16[32,128], index: 3, kind: output, shape index: {}]
  %s4 = sld [smem:[#allocation0]]
  $region45: #{_lambda_.16} parent=0
    _
  %s6 = ssub.s32 1, %s4
  %s7 = scalar_select 0, %s6, %s4
  loop: start=0, step=1, limit=4
  $region2: #{_lambda_.16} parent=0 // loop_pre_header
    _
  $region3: #{_lambda_.16} parent=0 // loop_header
    %s9 = sphi 0, %s13
    %p10 = scmp.ge.s32.totalorder %s9, 4
    %s19 = sphi 0, %s21
    %s22 = sphi 0, %s19
    %s23 = sphi 0, %s22
    %s39 = sphi 0, %s23
    %s43 = sphi 0, %s43
    %s45 = sphi 0, %s43
    %s46 = sphi 0, %s45
    %s60 = sphi 0, %s46
    %s64 = sphi 0, %s64
    %s66 = sphi 0, %s64
    %s67 = sphi 0, %s66
    %s81 = sphi 0, %s67
    %s87 = sphi 0, %s89
    %s90 = sphi 0, %s87
    %s91 = sphi 0, %s90
    %s107 = sphi 0, %s91
  $region4: #{_lambda_.16} parent=0 // loop_header_branch
    %12 = sbr.rel (%p10) target = $region8
  $region5: #{_lambda_.16} parent=0 // loop_body
    %s14 = ssub.s32 %s9, 1
    %s15 = ssub.s32 %s9, 2
    %s16 = sadd.s32 %s9, 1
    %s17 = ssub.s32 %s9, %s16
    %p18 = scmp.eq.s32.totalorder %s17, 0
    %s20 = sadd.s32 %s19, 1
    %s21 = scalar_select %p18, %s19, %s20
    %p24 = pneg %p18
    %p25 = scmp.eq.s32.totalorder %s9, 1
    %p26 = por %p24, %p25
    %p27 = scmp.ne.s32.totalorder %s19, %s22
    %p28 = scmp.eq.s32.totalorder %s9, 0
    %p29 = por %p27, %p28
    %p30 = scmp.ne.s32.totalorder %s19, %s22
    %p31 = scmp.eq.s32.totalorder %s14, 1
    %p32 = por %p30, %p31
    %p33 = scmp.ne.s32.totalorder %s22, %s23
    %p34 = scmp.eq.s32.totalorder %s14, 0
    %p35 = por %p33, %p34
    %p36 = scmp.ne.s32.totalorder %s22, %s23
    %p37 = scmp.eq.s32.totalorder %s15, 1
    %p38 = por %p36, %p37
    %p40 = scmp.ne.s32.totalorder %s23, %s39
    %p41 = scmp.eq.s32.totalorder %s15, 0
    %p42 = por %p40, %p41
    %s44 = sadd.s32 %s43, 1
    %p47 = scmp.eq.s32.totalorder %s9, 1
    %p48 = scmp.ne.s32.totalorder %s43, %s45
    %p49 = scmp.eq.s32.totalorder %s9, 0
    %p50 = por %p48, %p49
    %p51 = scmp.ne.s32.totalorder %s43, %s45
    %p52 = scmp.eq.s32.totalorder %s14, 1
    %p53 = por %p51, %p52
    %p54 = scmp.ne.s32.totalorder %s45, %s46
    %p55 = scmp.eq.s32.totalorder %s14, 0
    %p56 = por %p54, %p55
    %p57 = scmp.ne.s32.totalorder %s45, %s46
    %p58 = scmp.eq.s32.totalorder %s15, 1
    %p59 = por %p57, %p58
    %p61 = scmp.ne.s32.totalorder %s46, %s60
    %p62 = scmp.eq.s32.totalorder %s15, 0
    %p63 = por %p61, %p62
    %s65 = sadd.s32 %s64, 1
    %p68 = scmp.eq.s32.totalorder %s9, 1
    %p69 = scmp.ne.s32.totalorder %s64, %s66
    %p70 = scmp.eq.s32.totalorder %s9, 0
    %p71 = por %p69, %p70
    %p72 = scmp.ne.s32.totalorder %s64, %s66
    %p73 = scmp.eq.s32.totalorder %s14, 1
    %p74 = por %p72, %p73
    %p75 = scmp.ne.s32.totalorder %s66, %s67
    %p76 = scmp.eq.s32.totalorder %s14, 0
    %p77 = por %p75, %p76
    %p78 = scmp.ne.s32.totalorder %s66, %s67
    %p79 = scmp.eq.s32.totalorder %s15, 1
    %p80 = por %p78, %p79
    %p82 = scmp.ne.s32.totalorder %s67, %s81
    %p83 = scmp.eq.s32.totalorder %s15, 0
    %p84 = por %p82, %p83
    %s85 = ssub.s32 %s9, %s16
    %p86 = scmp.eq.s32.totalorder %s85, 0
    %s88 = sadd.s32 %s87, 1
    %s89 = scalar_select %p86, %s87, %s88
    %p92 = pneg %p86
    %p93 = scmp.eq.s32.totalorder %s9, 1
    %p94 = por %p92, %p93
    %p95 = scmp.ne.s32.totalorder %s87, %s90
    %p96 = scmp.eq.s32.totalorder %s9, 0
    %p97 = por %p95, %p96
    %p98 = scmp.ne.s32.totalorder %s87, %s90
    %p99 = scmp.eq.s32.totalorder %s14, 1
    %p100 = por %p98, %p99
    %p101 = scmp.ne.s32.totalorder %s90, %s91
    %p102 = scmp.eq.s32.totalorder %s14, 0
    %p103 = por %p101, %p102
    %p104 = scmp.ne.s32.totalorder %s90, %s91
    %p105 = scmp.eq.s32.totalorder %s15, 1
    %p106 = por %p104, %p105
    %p108 = scmp.ne.s32.totalorder %s91, %s107
    %p109 = scmp.eq.s32.totalorder %s15, 0
    %p110 = por %p108, %p109
    %p111 = scmp.le.s32.totalorder 1, %s9
    %p112 = scmp.lt.s32.totalorder %s9, 3
    %p113 = pnand %p111, %p112
    %p114 = pneg %p113
    // Predicated region
    $region9: #{_lambda_.16} parent=5 // pred_check
      _
    $region10: #{_lambda_.16} parent=5 // pred_check_branch
      %116 = sbr.rel (%p113) target = $region12
    $region11: #{_lambda_.16} parent=5 // pred_region
      %s117 = ssub.s32 %s9, 1
      // Predicated region
      $region13: #{_lambda_.16} parent=11 // pred_check
        %p118 = pneg %p56
      $region14: #{_lambda_.16} parent=11 // pred_check_branch
        %120 = sbr.rel (%p118) target = $region16
      $region15: #{_lambda_.16} parent=11 // pred_region
        _
      $region16: #{_lambda_.16} parent=11 // pred_fallthru
        _
      // Predicated region
      $region17: #{_lambda_.16} parent=11 // pred_check
        %p121 = pneg %p77
      $region18: #{_lambda_.16} parent=11 // pred_check_branch
        %123 = sbr.rel (%p121) target = $region20
      $region19: #{_lambda_.16} parent=11 // pred_region
        _
      $region20: #{_lambda_.16} parent=11 // pred_fallthru
        _
    $region12: #{_lambda_.16} parent=5 // pred_fallthru
      _
    %p124 = scmp.lt.s32.totalorder %s9, 2
    // Predicated region
    $region21: #{_lambda_.16} parent=5 // pred_check
      %p125 = pneg %p124
    $region22: #{_lambda_.16} parent=5 // pred_check_branch
      %127 = sbr.rel (%p125) target = $region24
    $region23: #{_lambda_.16} parent=5 // pred_region
      // Predicated region
      $region25: #{_lambda_.16} parent=23 // pred_check
        %p128 = pneg %p29
      $region26: #{_lambda_.16} parent=23 // pred_check_branch
        %130 = sbr.rel (%p128) target = $region28
      $region27: #{_lambda_.16} parent=23 // pred_region
        %s131 = smul.u32 2, %s9
        %p132 = scmp.lt.s32.totalorder %s131, 3
        %s133 = scalar_select %p132, %s131, 3
        %s134 = smul.addr %s133, 4
        %s135 = scalar_lea.vmem %s0, %s134
        %s136 = smul.u32 2, %s9
      $region28: #{_lambda_.16} parent=23 // pred_fallthru
        _
    $region24: #{_lambda_.16} parent=5 // pred_fallthru
      _
    %p137 = scmp.le.s32.totalorder 1, %s9
    %p138 = scmp.lt.s32.totalorder %s9, 3
    %p139 = pnand %p137, %p138
    %p140 = pneg %p139
    // Predicated region
    $region29: #{_lambda_.16} parent=5 // pred_check
      _
    $region30: #{_lambda_.16} parent=5 // pred_check_branch
      %142 = sbr.rel (%p139) target = $region32
    $region31: #{_lambda_.16} parent=5 // pred_region
      %s143 = ssub.s32 %s9, 1
      %s144 = smul.u32 2, %s14
      %p145 = scmp.lt.s32.totalorder %s144, 3
      %s146 = scalar_select %p145, %s144, 3
      %s147 = smul.addr %s146, 4
      %s148 = scalar_lea.vmem %s0, %s147
      %p149 = pneg %p35
      %p150 = pneg %p32
      %p151 = pneg %p56
      %p152 = pneg %p53
      %p153 = pneg %p77
      %p154 = pneg %p74
      %p155 = pneg %p103
      %p156 = pneg %p100
      %s157 = smul.u32 2, %s14
      %p158 = scmp.lt.s32.totalorder %s157, 3
      %s159 = scalar_select %p158, %s157, 3
      %s160 = smul.addr %s159, 4
      %s161 = scalar_lea.vmem %s3, %s160
      %s162 = smul.u32 2, %s14
      %p163 = scmp.lt.s32.totalorder %s162, 3
      %s164 = scalar_select %p163, %s162, 3
      %s165 = smul.addr %s164, 4
      %s166 = scalar_lea.vmem %s0, %s165
      %s167 = smul.u32 2, %s14
      %s168 = smul.u32 2, %s14
      %p169 = scmp.lt.s32.totalorder %s168, 3
      %s170 = scalar_select %p169, %s168, 3
      %s171 = smul.addr %s170, 4
      %s172 = scalar_lea.vmem %s3, %s171
      %s173 = smul.u32 2, %s14
      %v175 = vld [vmem:[%s166] sm:$0xf]
      %v176 = vld [vmem:[%s166 + $0x4] sm:$0xf]
      %v177 = vld [vmem:[%s1] sm:$0xf]
      %v178 = vld [vmem:[%s1 + $0x4] sm:$0xf]
      %v179 = vld [vmem:[%s1 + $0x8] sm:$0xf]
      %v180 = vld [vmem:[%s1 + $0xc] sm:$0xf]
      %v181 = vld [vmem:[%s1 + $0x10] sm:$0xf]
      %v182 = vld [vmem:[%s1 + $0x14] sm:$0xf]
      %v183 = vld [vmem:[%s1 + $0x18] sm:$0xf]
      %v184 = vld [vmem:[%s1 + $0x1c] sm:$0xf]
      %v185 = vld [vmem:[%s1 + $0x20] sm:$0xf]
      %v186 = vld [vmem:[%s1 + $0x24] sm:$0xf]
      %v187 = vld [vmem:[%s1 + $0x28] sm:$0xf]
      %v188 = vld [vmem:[%s1 + $0x2c] sm:$0xf]
      %v189 = vld [vmem:[%s1 + $0x30] sm:$0xf]
      %v190 = vld [vmem:[%s1 + $0x34] sm:$0xf]
      %v191 = vld [vmem:[%s1 + $0x38] sm:$0xf]
      %v192 = vld [vmem:[%s1 + $0x3c] sm:$0xf]
      %v193 = vld [vmem:[%s2] sm:$0x1]
      %v195 = vlaneseq
      %v196 = vshrl.u32 %v195, 7
      %v197 = vsub.s32 0, %v196
      %v198 = vrot.slane %v193, %v197
      %v202 = vunpack.c.l.b16 %v175
      %v203 = vunpack.c.l.b16 %v176
      %v204 = vpack.c.b16 %v203, %v202
      %v222 = vunpack.c.l.b16 %v177
      %v223 = vunpack.c.l.b16 %v178
      %v224 = vunpack.c.l.b16 %v179
      %v225 = vunpack.c.l.b16 %v180
      %v226 = vunpack.c.l.b16 %v181
      %v227 = vunpack.c.l.b16 %v182
      %v228 = vunpack.c.l.b16 %v183
      %v229 = vunpack.c.l.b16 %v184
      %v230 = vunpack.c.l.b16 %v185
      %v231 = vunpack.c.l.b16 %v186
      %v232 = vunpack.c.l.b16 %v187
      %v233 = vunpack.c.l.b16 %v188
      %v234 = vunpack.c.l.b16 %v189
      %v235 = vunpack.c.l.b16 %v190
      %v236 = vunpack.c.l.b16 %v191
      %v237 = vunpack.c.l.b16 %v192
      %v238 = vpack.c.b16 %v223, %v222
      %v239 = vpack.c.b16 %v225, %v224
      %v240 = vpack.c.b16 %v227, %v226
      %v241 = vpack.c.b16 %v229, %v228
      %v242 = vpack.c.b16 %v231, %v230
      %v243 = vpack.c.b16 %v233, %v232
      %v244 = vpack.c.b16 %v235, %v234
      %v245 = vpack.c.b16 %v237, %v236
      %254 = vmatprep.subr.bf16.mxu0 0
      %255 = vmatpush1.bf16.msra.mxu0 %v238
      %256 = vmatprep.subr.bf16.mxu0 0
      %257 = vmatpush1.bf16.msra.mxu0 %v239
      %258 = vmatprep.subr.bf16.mxu0 0
      %259 = vmatpush1.bf16.msra.mxu0 %v240
      %260 = vmatprep.subr.bf16.mxu0 0
      %261 = vmatpush1.bf16.msra.mxu0 %v241
      %262 = vmatprep.subr.bf16.mxu0 0
      %263 = vmatpush1.bf16.msra.mxu0 %v242
      %264 = vmatprep.subr.bf16.mxu0 0
      %265 = vmatpush1.bf16.msra.mxu0 %v243
      %266 = vmatprep.subr.bf16.mxu0 0
      %267 = vmatpush1.bf16.msra.mxu0 %v244
      %268 = vmatprep.subr.bf16.mxu0 0
      %269 = vmatpush1.bf16.msra.mxu0 %v245
      %270 = vmatprep.subr.bf16.mxu0 0
      %271 = vmatpush1.bf16.msra.mxu0 0
      %272 = vmatprep.subr.bf16.mxu0 0
      %273 = vmatpush1.bf16.msra.mxu0 0
      %274 = vmatprep.subr.bf16.mxu0 0
      %275 = vmatpush1.bf16.msra.mxu0 0
      %276 = vmatprep.subr.bf16.mxu0 0
      %277 = vmatpush1.bf16.msra.mxu0 0
      %278 = vmatprep.subr.bf16.mxu0 0
      %279 = vmatpush1.bf16.msra.mxu0 0
      %280 = vmatprep.subr.bf16.mxu0 0
      %281 = vmatpush1.bf16.msra.mxu0 0
      %282 = vmatprep.subr.bf16.mxu0 0
      %283 = vmatpush1.bf16.msra.mxu0 0
      %284 = vmatprep.subr.bf16.mxu0 0
      %285 = vmatpush1.bf16.msra.mxu0 0
      %286 = vmatprep.mubr.bf16.mxu0 0
      %287 = vmatmul.mubr.bf16.gmra.mrb[0].mxu0 %v204
      %v288 = vpop.f32.mrb[0].mxu0
      %v289 = vadd.f32 %v198, %v288
      %v290 = vpop.f32.mrb[0].mxu0
      %v291 = vpop.f32.mrb[0].mxu0
      %v292 = vadd.f32 %v198, %v291
      %v293 = vpop.f32.mrb[0].mxu0
      %294 = vdwg.mxu0
      %v295 = vmax.f32 %v289, 0.0
      %v296 = vmax.f32 %v292, 0.0
      %v297 = vpack.c.bf16 %v296, %v295
      %v299 = vunpack.c.l.b16 %v297
      %v300 = vunpack.c.h.b16 %v297
      %v301 = vpack.c.b16 %v299, %v299
      %v302 = vpack.c.b16 %v300, %v300
      %305 = vst [vmem:[%s172] sm:$0xf] %v301
      %306 = vst [vmem:[%s172 + $0x4] sm:$0xf] %v302
      %s307 = smul.u32 2, %s14
      %p308 = scmp.lt.s32.totalorder %s307, 3
      %s309 = scalar_select %p308, %s307, 3
      %s310 = smul.addr %s309, 4
      %s311 = scalar_lea.vmem %s3, %s310
      // Predicated region
      $region33: #{_lambda_.16} parent=31 // pred_check
        %p312 = pneg %p100
      $region34: #{_lambda_.16} parent=31 // pred_check_branch
        %314 = sbr.rel (%p312) target = $region36
      $region35: #{_lambda_.16} parent=31 // pred_region
        %s315 = smul.u32 2, %s14
      $region36: #{_lambda_.16} parent=31 // pred_fallthru
        _
    $region32: #{_lambda_.16} parent=5 // pred_fallthru
      _
    %p316 = scmp.le.s32.totalorder 2, %s9
    // Predicated region
    $region37: #{_lambda_.16} parent=5 // pred_check
      %p317 = pneg %p316
    $region38: #{_lambda_.16} parent=5 // pred_check_branch
      %319 = sbr.rel (%p317) target = $region40
    $region39: #{_lambda_.16} parent=5 // pred_region
      %s320 = ssub.s32 %s9, 2
      // Predicated region
      $region41: #{_lambda_.16} parent=39 // pred_check
        %p321 = pneg %p106
      $region42: #{_lambda_.16} parent=39 // pred_check_branch
        %323 = sbr.rel (%p321) target = $region44
      $region43: #{_lambda_.16} parent=39 // pred_region
        %s324 = smul.u32 2, %s15
        %p325 = scmp.lt.s32.totalorder %s324, 3
        %s326 = scalar_select %p325, %s324, 3
        %s327 = smul.addr %s326, 4
        %s328 = scalar_lea.vmem %s3, %s327
      $region44: #{_lambda_.16} parent=39 // pred_fallthru
        _
    $region40: #{_lambda_.16} parent=5 // pred_fallthru
      _
  $region6: #{_lambda_.16} parent=0 // loop_footer
    %s13 = sadd.s32 1, %s9
  $region7: #{_lambda_.16} parent=0 // loop_footer_branch
    %8 = sbr.rel target = $region3
  $region8: #{_lambda_.16} parent=0 // loop_exit
    _

// kernel: _lambda_.18
$region0: #{_lambda_.18}
  #allocation0 [shape = 'u32[]', space=smem, size = 0x4, offset = 0x4, fixed_abs, tag = 'smem constant byte address 0x4 - core index']
  #allocation1 [shape = 'u32[144,128]{1,0:T(1,128)}', space=vmem, size = 0x12000, scoped, tag = 'internal scratch']
  %s0 = inlined_call_operand.vmem [shape: bf16[32,128], index: 0, kind: input, shape index: {}]
  %s1 = inlined_call_operand.vmem [shape: bf16[128,256], index: 1, kind: input, shape index: {}]
  %s2 = inlined_call_operand.vmem [shape: f32[1,256], index: 2, kind: input, shape index: {}]
  %s3 = inlined_call_operand.vmem [shape: bf16[32,128], index: 3, kind: input, shape index: {}]
  %s4 = inlined_call_operand.vmem [shape: f32[1,128], index: 4, kind: input, shape index: {}]
  %s5 = inlined_call_operand.vmem [shape: bf16[32,128], index: 5, kind: output, shape index: {}]
  %s6 = sld [smem:[#allocation0]]
  $region53: #{_lambda_.18} parent=0
    _
  %s8 = ssub.s32 1, %s6
  %s9 = scalar_select 0, %s8, %s6
  loop: start=0, step=1, limit=4
  $region2: #{_lambda_.18} parent=0 // loop_pre_header
    _
  $region3: #{_lambda_.18} parent=0 // loop_header
    %s11 = sphi 0, %s15
    %p12 = scmp.ge.s32.totalorder %s11, 4
    %s21 = sphi 0, %s23
    %s24 = sphi 0, %s21
    %s25 = sphi 0, %s24
    %s41 = sphi 0, %s25
    %s45 = sphi 0, %s45
    %s47 = sphi 0, %s45
    %s48 = sphi 0, %s47
    %s62 = sphi 0, %s48
    %s66 = sphi 0, %s66
    %s68 = sphi 0, %s66
    %s69 = sphi 0, %s68
    %s83 = sphi 0, %s69
    %s89 = sphi 0, %s91
    %s92 = sphi 0, %s89
    %s93 = sphi 0, %s92
    %s109 = sphi 0, %s93
    %s113 = sphi 0, %s113
    %s115 = sphi 0, %s113
    %s116 = sphi 0, %s115
    %s130 = sphi 0, %s116
    %s136 = sphi 0, %s138
    %s139 = sphi 0, %s136
    %s140 = sphi 0, %s139
    %s156 = sphi 0, %s140
  $region4: #{_lambda_.18} parent=0 // loop_header_branch
    %14 = sbr.rel (%p12) target = $region8
  $region5: #{_lambda_.18} parent=0 // loop_body
    %s16 = ssub.s32 %s11, 1
    %s17 = ssub.s32 %s11, 2
    %s18 = sadd.s32 %s11, 1
    %s19 = ssub.s32 %s11, %s18
    %p20 = scmp.eq.s32.totalorder %s19, 0
    %s22 = sadd.s32 %s21, 1
    %s23 = scalar_select %p20, %s21, %s22
    %p26 = pneg %p20
    %p27 = scmp.eq.s32.totalorder %s11, 1
    %p28 = por %p26, %p27
    %p29 = scmp.ne.s32.totalorder %s21, %s24
    %p30 = scmp.eq.s32.totalorder %s11, 0
    %p31 = por %p29, %p30
    %p32 = scmp.ne.s32.totalorder %s21, %s24
    %p33 = scmp.eq.s32.totalorder %s16, 1
    %p34 = por %p32, %p33
    %p35 = scmp.ne.s32.totalorder %s24, %s25
    %p36 = scmp.eq.s32.totalorder %s16, 0
    %p37 = por %p35, %p36
    %p38 = scmp.ne.s32.totalorder %s24, %s25
    %p39 = scmp.eq.s32.totalorder %s17, 1
    %p40 = por %p38, %p39
    %p42 = scmp.ne.s32.totalorder %s25, %s41
    %p43 = scmp.eq.s32.totalorder %s17, 0
    %p44 = por %p42, %p43
    %s46 = sadd.s32 %s45, 1
    %p49 = scmp.eq.s32.totalorder %s11, 1
    %p50 = scmp.ne.s32.totalorder %s45, %s47
    %p51 = scmp.eq.s32.totalorder %s11, 0
    %p52 = por %p50, %p51
    %p53 = scmp.ne.s32.totalorder %s45, %s47
    %p54 = scmp.eq.s32.totalorder %s16, 1
    %p55 = por %p53, %p54
    %p56 = scmp.ne.s32.totalorder %s47, %s48
    %p57 = scmp.eq.s32.totalorder %s16, 0
    %p58 = por %p56, %p57
    %p59 = scmp.ne.s32.totalorder %s47, %s48
    %p60 = scmp.eq.s32.totalorder %s17, 1
    %p61 = por %p59, %p60
    %p63 = scmp.ne.s32.totalorder %s48, %s62
    %p64 = scmp.eq.s32.totalorder %s17, 0
    %p65 = por %p63, %p64
    %s67 = sadd.s32 %s66, 1
    %p70 = scmp.eq.s32.totalorder %s11, 1
    %p71 = scmp.ne.s32.totalorder %s66, %s68
    %p72 = scmp.eq.s32.totalorder %s11, 0
    %p73 = por %p71, %p72
    %p74 = scmp.ne.s32.totalorder %s66, %s68
    %p75 = scmp.eq.s32.totalorder %s16, 1
    %p76 = por %p74, %p75
    %p77 = scmp.ne.s32.totalorder %s68, %s69
    %p78 = scmp.eq.s32.totalorder %s16, 0
    %p79 = por %p77, %p78
    %p80 = scmp.ne.s32.totalorder %s68, %s69
    %p81 = scmp.eq.s32.totalorder %s17, 1
    %p82 = por %p80, %p81
    %p84 = scmp.ne.s32.totalorder %s69, %s83
    %p85 = scmp.eq.s32.totalorder %s17, 0
    %p86 = por %p84, %p85
    %s87 = ssub.s32 %s11, %s18
    %p88 = scmp.eq.s32.totalorder %s87, 0
    %s90 = sadd.s32 %s89, 1
    %s91 = scalar_select %p88, %s89, %s90
    %p94 = pneg %p88
    %p95 = scmp.eq.s32.totalorder %s11, 1
    %p96 = por %p94, %p95
    %p97 = scmp.ne.s32.totalorder %s89, %s92
    %p98 = scmp.eq.s32.totalorder %s11, 0
    %p99 = por %p97, %p98
    %p100 = scmp.ne.s32.totalorder %s89, %s92
    %p101 = scmp.eq.s32.totalorder %s16, 1
    %p102 = por %p100, %p101
    %p103 = scmp.ne.s32.totalorder %s92, %s93
    %p104 = scmp.eq.s32.totalorder %s16, 0
    %p105 = por %p103, %p104
    %p106 = scmp.ne.s32.totalorder %s92, %s93
    %p107 = scmp.eq.s32.totalorder %s17, 1
    %p108 = por %p106, %p107
    %p110 = scmp.ne.s32.totalorder %s93, %s109
    %p111 = scmp.eq.s32.totalorder %s17, 0
    %p112 = por %p110, %p111
    %s114 = sadd.s32 %s113, 1
    %p117 = scmp.eq.s32.totalorder %s11, 1
    %p118 = scmp.ne.s32.totalorder %s113, %s115
    %p119 = scmp.eq.s32.totalorder %s11, 0
    %p120 = por %p118, %p119
    %p121 = scmp.ne.s32.totalorder %s113, %s115
    %p122 = scmp.eq.s32.totalorder %s16, 1
    %p123 = por %p121, %p122
    %p124 = scmp.ne.s32.totalorder %s115, %s116
    %p125 = scmp.eq.s32.totalorder %s16, 0
    %p126 = por %p124, %p125
    %p127 = scmp.ne.s32.totalorder %s115, %s116
    %p128 = scmp.eq.s32.totalorder %s17, 1
    %p129 = por %p127, %p128
    %p131 = scmp.ne.s32.totalorder %s116, %s130
    %p132 = scmp.eq.s32.totalorder %s17, 0
    %p133 = por %p131, %p132
    %s134 = ssub.s32 %s11, %s18
    %p135 = scmp.eq.s32.totalorder %s134, 0
    %s137 = sadd.s32 %s136, 1
    %s138 = scalar_select %p135, %s136, %s137
    %p141 = pneg %p135
    %p142 = scmp.eq.s32.totalorder %s11, 1
    %p143 = por %p141, %p142
    %p144 = scmp.ne.s32.totalorder %s136, %s139
    %p145 = scmp.eq.s32.totalorder %s11, 0
    %p146 = por %p144, %p145
    %p147 = scmp.ne.s32.totalorder %s136, %s139
    %p148 = scmp.eq.s32.totalorder %s16, 1
    %p149 = por %p147, %p148
    %p150 = scmp.ne.s32.totalorder %s139, %s140
    %p151 = scmp.eq.s32.totalorder %s16, 0
    %p152 = por %p150, %p151
    %p153 = scmp.ne.s32.totalorder %s139, %s140
    %p154 = scmp.eq.s32.totalorder %s17, 1
    %p155 = por %p153, %p154
    %p157 = scmp.ne.s32.totalorder %s140, %s156
    %p158 = scmp.eq.s32.totalorder %s17, 0
    %p159 = por %p157, %p158
    %p160 = scmp.le.s32.totalorder 1, %s11
    %p161 = scmp.lt.s32.totalorder %s11, 3
    %p162 = pnand %p160, %p161
    %p163 = pneg %p162
    // Predicated region
    $region9: #{_lambda_.18} parent=5 // pred_check
      _
    $region10: #{_lambda_.18} parent=5 // pred_check_branch
      %165 = sbr.rel (%p162) target = $region12
    $region11: #{_lambda_.18} parent=5 // pred_region
      %s166 = ssub.s32 %s11, 1
      // Predicated region
      $region13: #{_lambda_.18} parent=11 // pred_check
        %p167 = pneg %p58
      $region14: #{_lambda_.18} parent=11 // pred_check_branch
        %169 = sbr.rel (%p167) target = $region16
      $region15: #{_lambda_.18} parent=11 // pred_region
        _
      $region16: #{_lambda_.18} parent=11 // pred_fallthru
        _
      // Predicated region
      $region17: #{_lambda_.18} parent=11 // pred_check
        %p170 = pneg %p79
      $region18: #{_lambda_.18} parent=11 // pred_check_branch
        %172 = sbr.rel (%p170) target = $region20
      $region19: #{_lambda_.18} parent=11 // pred_region
        _
      $region20: #{_lambda_.18} parent=11 // pred_fallthru
        _
      // Predicated region
      $region21: #{_lambda_.18} parent=11 // pred_check
        %p173 = pneg %p126
      $region22: #{_lambda_.18} parent=11 // pred_check_branch
        %175 = sbr.rel (%p173) target = $region24
      $region23: #{_lambda_.18} parent=11 // pred_region
        _
      $region24: #{_lambda_.18} parent=11 // pred_fallthru
        _
    $region12: #{_lambda_.18} parent=5 // pred_fallthru
      _
    %p176 = scmp.lt.s32.totalorder %s11, 2
    // Predicated region
    $region25: #{_lambda_.18} parent=5 // pred_check
      %p177 = pneg %p176
    $region26: #{_lambda_.18} parent=5 // pred_check_branch
      %179 = sbr.rel (%p177) target = $region28
    $region27: #{_lambda_.18} parent=5 // pred_region
      // Predicated region
      $region29: #{_lambda_.18} parent=27 // pred_check
        %p180 = pneg %p31
      $region30: #{_lambda_.18} parent=27 // pred_check_branch
        %182 = sbr.rel (%p180) target = $region32
      $region31: #{_lambda_.18} parent=27 // pred_region
        %s183 = smul.u32 2, %s11
        %p184 = scmp.lt.s32.totalorder %s183, 3
        %s185 = scalar_select %p184, %s183, 3
        %s186 = smul.addr %s185, 4
        %s187 = scalar_lea.vmem %s0, %s186
        %s188 = smul.u32 2, %s11
      $region32: #{_lambda_.18} parent=27 // pred_fallthru
        _
      // Predicated region
      $region33: #{_lambda_.18} parent=27 // pred_check
        %p189 = pneg %p99
      $region34: #{_lambda_.18} parent=27 // pred_check_branch
        %191 = sbr.rel (%p189) target = $region36
      $region35: #{_lambda_.18} parent=27 // pred_region
        %s192 = smul.u32 2, %s11
        %p193 = scmp.lt.s32.totalorder %s192, 3
        %s194 = scalar_select %p193, %s192, 3
        %s195 = smul.addr %s194, 4
        %s196 = scalar_lea.vmem %s3, %s195
        %s197 = smul.u32 2, %s11
      $region36: #{_lambda_.18} parent=27 // pred_fallthru
        _
    $region28: #{_lambda_.18} parent=5 // pred_fallthru
      _
    %p198 = scmp.le.s32.totalorder 1, %s11
    %p199 = scmp.lt.s32.totalorder %s11, 3
    %p200 = pnand %p198, %p199
    %p201 = pneg %p200
    // Predicated region
    $region37: #{_lambda_.18} parent=5 // pred_check
      _
    $region38: #{_lambda_.18} parent=5 // pred_check_branch
      %203 = sbr.rel (%p200) target = $region40
    $region39: #{_lambda_.18} parent=5 // pred_region
      %s204 = ssub.s32 %s11, 1
      %s205 = smul.u32 2, %s16
      %p206 = scmp.lt.s32.totalorder %s205, 3
      %s207 = scalar_select %p206, %s205, 3
      %s208 = smul.addr %s207, 4
      %s209 = scalar_lea.vmem %s0, %s208
      %p210 = pneg %p37
      %p211 = pneg %p34
      %p212 = pneg %p58
      %p213 = pneg %p55
      %p214 = pneg %p79
      %p215 = pneg %p76
      %s216 = smul.u32 2, %s16
      %p217 = scmp.lt.s32.totalorder %s216, 3
      %s218 = scalar_select %p217, %s216, 3
      %s219 = smul.addr %s218, 4
      %s220 = scalar_lea.vmem %s3, %s219
      %p221 = pneg %p105
      %p222 = pneg %p102
      %p223 = pneg %p126
      %p224 = pneg %p123
      %p225 = pneg %p152
      %p226 = pneg %p149
      %s227 = smul.u32 2, %s16
      %p228 = scmp.lt.s32.totalorder %s227, 3
      %s229 = scalar_select %p228, %s227, 3
      %s230 = smul.addr %s229, 4
      %s231 = scalar_lea.vmem %s5, %s230
      %s232 = smul.u32 2, %s16
      %p233 = scmp.lt.s32.totalorder %s232, 3
      %s234 = scalar_select %p233, %s232, 3
      %s235 = smul.addr %s234, 4
      %s236 = scalar_lea.vmem %s0, %s235
      %s237 = smul.u32 2, %s16
      %s238 = smul.u32 2, %s16
      %p239 = scmp.lt.s32.totalorder %s238, 3
      %s240 = scalar_select %p239, %s238, 3
      %s241 = smul.addr %s240, 4
      %s242 = scalar_lea.vmem %s3, %s241
      %s243 = smul.u32 2, %s16
      %s244 = smul.u32 2, %s16
      %p245 = scmp.lt.s32.totalorder %s244, 3
      %s246 = scalar_select %p245, %s244, 3
      %s247 = smul.addr %s246, 4
      %s248 = scalar_lea.vmem %s5, %s247
      %s249 = smul.u32 2, %s16
      %v251 = vld [vmem:[%s236] sm:$0xf]
      %v252 = vld [vmem:[%s236 + $0x4] sm:$0xf]
      %v253 = vld [vmem:[%s1] sm:$0xff]
      %v254 = vld [vmem:[%s1 + $0x8] sm:$0xff]
      %v255 = vld [vmem:[%s1 + $0x10] sm:$0xff]
      %v256 = vld [vmem:[%s1 + $0x18] sm:$0xff]
      %v257 = vld [vmem:[%s1 + $0x20] sm:$0xff]
      %v258 = vld [vmem:[%s1 + $0x28] sm:$0xff]
      %v259 = vld [vmem:[%s1 + $0x30] sm:$0xff]
      %v260 = vld [vmem:[%s1 + $0x38] sm:$0xff]
      %v261 = vld [vmem:[%s1 + $0x40] sm:$0xff]
      %v262 = vld [vmem:[%s1 + $0x48] sm:$0xff]
      %v263 = vld [vmem:[%s1 + $0x50] sm:$0xff]
      %v264 = vld [vmem:[%s1 + $0x58] sm:$0xff]
      %v265 = vld [vmem:[%s1 + $0x60] sm:$0xff]
      %v266 = vld [vmem:[%s1 + $0x68] sm:$0xff]
      %v267 = vld [vmem:[%s1 + $0x70] sm:$0xff]
      %v268 = vld [vmem:[%s1 + $0x78] sm:$0xff]
      %v269 = vld [vmem:[%s2] sm:$0x3]
      %v271 = vlaneseq
      %v272 = vshrl.u32 %v271, 7
      %v273 = vsub.s32 0, %v272
      %v274 = vrot.slane %v269, %v273
      %v275 = vlaneseq
      %v276 = vshrl.u32 %v275, 7
      %v277 = vsub.s32 1, %v276
      %v278 = vrot.slane %v269, %v277
      %v283 = vunpack.c.l.b16 %v251
      %v284 = vunpack.c.l.b16 %v252
      %v285 = vpack.c.b16 %v284, %v283
      %v303 = vunpack.c.l.b16 %v253
      %v304 = vunpack.c.h.b16 %v253
      %v305 = vunpack.c.l.b16 %v254
      %v306 = vunpack.c.h.b16 %v254
      %v307 = vunpack.c.l.b16 %v255
      %v308 = vunpack.c.h.b16 %v255
      %v309 = vunpack.c.l.b16 %v256
      %v310 = vunpack.c.h.b16 %v256
      %v311 = vunpack.c.l.b16 %v257
      %v312 = vunpack.c.h.b16 %v257
      %v313 = vunpack.c.l.b16 %v258
      %v314 = vunpack.c.h.b16 %v258
      %v315 = vunpack.c.l.b16 %v259
      %v316 = vunpack.c.h.b16 %v259
      %v317 = vunpack.c.l.b16 %v260
      %v318 = vunpack.c.h.b16 %v260
      %v319 = vunpack.c.l.b16 %v261
      %v320 = vunpack.c.h.b16 %v261
      %v321 = vunpack.c.l.b16 %v262
      %v322 = vunpack.c.h.b16 %v262
      %v323 = vunpack.c.l.b16 %v263
      %v324 = vunpack.c.h.b16 %v263
      %v325 = vunpack.c.l.b16 %v264
      %v326 = vunpack.c.h.b16 %v264
      %v327 = vunpack.c.l.b16 %v265
      %v328 = vunpack.c.h.b16 %v265
      %v329 = vunpack.c.l.b16 %v266
      %v330 = vunpack.c.h.b16 %v266
      %v331 = vunpack.c.l.b16 %v267
      %v332 = vunpack.c.h.b16 %v267
      %v333 = vunpack.c.l.b16 %v268
      %v334 = vunpack.c.h.b16 %v268
      %v335 = vpack.c.b16 %v305, %v303
      %v336 = vpack.c.b16 %v306, %v304
      %v337 = vpack.c.b16 %v309, %v307
      %v338 = vpack.c.b16 %v310, %v308
      %v339 = vpack.c.b16 %v313, %v311
      %v340 = vpack.c.b16 %v314, %v312
      %v341 = vpack.c.b16 %v317, %v315
      %v342 = vpack.c.b16 %v318, %v316
      %v343 = vpack.c.b16 %v321, %v319
      %v344 = vpack.c.b16 %v322, %v320
      %v345 = vpack.c.b16 %v325, %v323
      %v346 = vpack.c.b16 %v326, %v324
      %v347 = vpack.c.b16 %v329, %v327
      %v348 = vpack.c.b16 %v330, %v328
      %v349 = vpack.c.b16 %v333, %v331
      %v350 = vpack.c.b16 %v334, %v332
      %367 = vmatprep.subr.bf16.mxu0 %v336
      %368 = vmatpush1.bf16.msra.mxu0 %v335
      %369 = vmatprep.subr.bf16.mxu0 %v338
      %370 = vmatpush1.bf16.msra.mxu0 %v337
      %371 = vmatprep.subr.bf16.mxu0 %v340
      %372 = vmatpush1.bf16.msra.mxu0 %v339
      %373 = vmatprep.subr.bf16.mxu0 %v342
      %374 = vmatpush1.bf16.msra.mxu0 %v341
      %375 = vmatprep.subr.bf16.mxu0 %v344
      %376 = vmatpush1.bf16.msra.mxu0 %v343
      %377 = vmatprep.subr.bf16.mxu0 %v346
      %378 = vmatpush1.bf16.msra.mxu0 %v345
      %379 = vmatprep.subr.bf16.mxu0 %v348
      %380 = vmatpush1.bf16.msra.mxu0 %v347
      %381 = vmatprep.subr.bf16.mxu0 %v350
      %382 = vmatpush1.bf16.msra.mxu0 %v349
      %383 = vmatprep.subr.bf16.mxu0 0
      %384 = vmatpush1.bf16.msra.mxu0 0
      %385 = vmatprep.subr.bf16.mxu0 0
      %386 = vmatpush1.bf16.msra.mxu0 0
      %387 = vmatprep.subr.bf16.mxu0 0
      %388 = vmatpush1.bf16.msra.mxu0 0
      %389 = vmatprep.subr.bf16.mxu0 0
      %390 = vmatpush1.bf16.msra.mxu0 0
      %391 = vmatprep.subr.bf16.mxu0 0
      %392 = vmatpush1.bf16.msra.mxu0 0
      %393 = vmatprep.subr.bf16.mxu0 0
      %394 = vmatpush1.bf16.msra.mxu0 0
      %395 = vmatprep.subr.bf16.mxu0 0
      %396 = vmatpush1.bf16.msra.mxu0 0
      %397 = vmatprep.subr.bf16.mxu0 0
      %398 = vmatpush1.bf16.msra.mxu0 0
      %399 = vmatprep.mubr.bf16.mxu0 0
      %400 = vmatmul.mubr.bf16.gmra.mrb[0].mxu0 %v285
      %v401 = vpop.f32.mrb[0].mxu0
      %v402 = vadd.f32 %v274, %v401
      %v403 = vpop.f32.mrb[0].mxu0
      %v404 = vadd.f32 %v278, %v403
      %v405 = vpop.f32.mrb[0].mxu0
      %v406 = vadd.f32 %v274, %v405
      %v407 = vpop.f32.mrb[0].mxu0
      %v408 = vadd.f32 %v278, %v407
      %409 = vdwg.mxu0
      %v410 = vmax.f32 %v402, 0.0
      %v411 = vmax.f32 %v406, 0.0
      %v412 = vmax.f32 %v404, 0.0
      %v413 = vmax.f32 %v408, 0.0
      %v414 = vadd.f32 %v410, %v412
      %v415 = vadd.f32 %v411, %v413
      %v416 = vld [vmem:[%s4] sm:$0x1]
      %v417 = vld [vmem:[%s242] sm:$0xf]
      %v418 = vld [vmem:[%s242 + $0x4] sm:$0xf]
      %v419 = vunpack.c.l.bf16 %v417
      %v420 = vunpack.c.l.bf16 %v418
      %v422 = vlaneseq
      %v423 = vshrl.u32 %v422, 7
      %v424 = vsub.s32 0, %v423
      %v425 = vrot.slane %v416, %v424
      %v427 = vmul.f32 %v425, %v419
      %v428 = vmul.f32 %v425, %v420
      %v429 = vadd.f32 %v414, %v427
      %v430 = vadd.f32 %v415, %v428
      %v431 = vpack.c.bf16 %v430, %v429
      %v433 = vunpack.c.l.b16 %v431
      %v434 = vunpack.c.h.b16 %v431
      %v435 = vpack.c.b16 %v433, %v433
      %v436 = vpack.c.b16 %v434, %v434
      %439 = vst [vmem:[%s248] sm:$0xf] %v435
      %440 = vst [vmem:[%s248 + $0x4] sm:$0xf] %v436
      %s441 = smul.u32 2, %s16
      %p442 = scmp.lt.s32.totalorder %s441, 3
      %s443 = scalar_select %p442, %s441, 3
      %s444 = smul.addr %s443, 4
      %s445 = scalar_lea.vmem %s5, %s444
      // Predicated region
      $region41: #{_lambda_.18} parent=39 // pred_check
        %p446 = pneg %p149
      $region42: #{_lambda_.18} parent=39 // pred_check_branch
        %448 = sbr.rel (%p446) target = $region44
      $region43: #{_lambda_.18} parent=39 // pred_region
        %s449 = smul.u32 2, %s16
      $region44: #{_lambda_.18} parent=39 // pred_fallthru
        _
    $region40: #{_lambda_.18} parent=5 // pred_fallthru
      _
    %p450 = scmp.le.s32.totalorder 2, %s11
    // Predicated region
    $region45: #{_lambda_.18} parent=5 // pred_check
      %p451 = pneg %p450
    $region46: #{_lambda_.18} parent=5 // pred_check_branch
      %453 = sbr.rel (%p451) target = $region48
    $region47: #{_lambda_.18} parent=5 // pred_region
      %s454 = ssub.s32 %s11, 2
      // Predicated region
      $region49: #{_lambda_.18} parent=47 // pred_check
        %p455 = pneg %p155
      $region50: #{_lambda_.18} parent=47 // pred_check_branch
        %457 = sbr.rel (%p455) target = $region52
      $region51: #{_lambda_.18} parent=47 // pred_region
        %s458 = smul.u32 2, %s17
        %p459 = scmp.lt.s32.totalorder %s458, 3
        %s460 = scalar_select %p459, %s458, 3
        %s461 = smul.addr %s460, 4
        %s462 = scalar_lea.vmem %s5, %s461
      $region52: #{_lambda_.18} parent=47 // pred_fallthru
        _
    $region48: #{_lambda_.18} parent=5 // pred_fallthru
      _
  $region6: #{_lambda_.18} parent=0 // loop_footer
    %s15 = sadd.s32 1, %s11
  $region7: #{_lambda_.18} parent=0 // loop_footer_branch
    %10 = sbr.rel target = $region3
  $region8: #{_lambda_.18} parent=0 // loop_exit
    _

// kernel: _lambda_.19
$region0: #{_lambda_.19}
  #allocation0 [shape = 'u32[]', space=smem, size = 0x4, offset = 0x4, fixed_abs, tag = 'smem constant byte address 0x4 - core index']
  #allocation1 [shape = 'u32[144,128]{1,0:T(1,128)}', space=vmem, size = 0x12000, scoped, tag = 'internal scratch']
  %s0 = inlined_call_operand.vmem [shape: bf16[16,128], index: 0, kind: input, shape index: {}]
  %s1 = inlined_call_operand.vmem [shape: bf16[128,128], index: 1, kind: input, shape index: {}]
  %s2 = inlined_call_operand.vmem [shape: f32[1,128], index: 2, kind: input, shape index: {}]
  %s3 = inlined_call_operand.vmem [shape: bf16[16,128], index: 3, kind: output, shape index: {}]
  %s4 = sld [smem:[#allocation0]]
  $region22: #{_lambda_.19} parent=0
    _
  %s6 = ssub.s32 1, %s4
  %s7 = scalar_select 0, %s6, %s4
  // Predicated region
  $region2: #{_lambda_.19} parent=0 // pred_check
    _
  $region3: #{_lambda_.19} parent=0 // pred_check_branch
    %9 = sbr.rel (0) target = $region5
  $region4: #{_lambda_.19} parent=0 // pred_region
    _
  $region5: #{_lambda_.19} parent=0 // pred_fallthru
    _
  // Predicated region
  $region6: #{_lambda_.19} parent=0 // pred_check
    _
  $region7: #{_lambda_.19} parent=0 // pred_check_branch
    %11 = sbr.rel (0) target = $region9
  $region8: #{_lambda_.19} parent=0 // pred_region
    _
  $region9: #{_lambda_.19} parent=0 // pred_fallthru
    _
  // Predicated region
  $region10: #{_lambda_.19} parent=0 // pred_check
    _
  $region11: #{_lambda_.19} parent=0 // pred_check_branch
    %13 = sbr.rel (0) target = $region13
  $region12: #{_lambda_.19} parent=0 // pred_region
    _
  $region13: #{_lambda_.19} parent=0 // pred_fallthru
    _
  %v15 = vld [vmem:[%s0] sm:$0xf]
  %v16 = vld [vmem:[%s0 + $0x4] sm:$0xf]
  %v17 = vld [vmem:[%s1] sm:$0xf]
  %v18 = vld [vmem:[%s1 + $0x4] sm:$0xf]
  %v19 = vld [vmem:[%s1 + $0x8] sm:$0xf]
  %v20 = vld [vmem:[%s1 + $0xc] sm:$0xf]
  %v21 = vld [vmem:[%s1 + $0x10] sm:$0xf]
  %v22 = vld [vmem:[%s1 + $0x14] sm:$0xf]
  %v23 = vld [vmem:[%s1 + $0x18] sm:$0xf]
  %v24 = vld [vmem:[%s1 + $0x1c] sm:$0xf]
  %v25 = vld [vmem:[%s1 + $0x20] sm:$0xf]
  %v26 = vld [vmem:[%s1 + $0x24] sm:$0xf]
  %v27 = vld [vmem:[%s1 + $0x28] sm:$0xf]
  %v28 = vld [vmem:[%s1 + $0x2c] sm:$0xf]
  %v29 = vld [vmem:[%s1 + $0x30] sm:$0xf]
  %v30 = vld [vmem:[%s1 + $0x34] sm:$0xf]
  %v31 = vld [vmem:[%s1 + $0x38] sm:$0xf]
  %v32 = vld [vmem:[%s1 + $0x3c] sm:$0xf]
  %v33 = vld [vmem:[%s2] sm:$0x1]
  %v35 = vlaneseq
  %v36 = vshrl.u32 %v35, 7
  %v37 = vsub.s32 0, %v36
  %v38 = vrot.slane %v33, %v37
  %v42 = vunpack.c.l.b16 %v15
  %v43 = vunpack.c.l.b16 %v16
  %v44 = vpack.c.b16 %v43, %v42
  %v62 = vunpack.c.l.b16 %v17
  %v63 = vunpack.c.l.b16 %v18
  %v64 = vunpack.c.l.b16 %v19
  %v65 = vunpack.c.l.b16 %v20
  %v66 = vunpack.c.l.b16 %v21
  %v67 = vunpack.c.l.b16 %v22
  %v68 = vunpack.c.l.b16 %v23
  %v69 = vunpack.c.l.b16 %v24
  %v70 = vunpack.c.l.b16 %v25
  %v71 = vunpack.c.l.b16 %v26
  %v72 = vunpack.c.l.b16 %v27
  %v73 = vunpack.c.l.b16 %v28
  %v74 = vunpack.c.l.b16 %v29
  %v75 = vunpack.c.l.b16 %v30
  %v76 = vunpack.c.l.b16 %v31
  %v77 = vunpack.c.l.b16 %v32
  %v78 = vpack.c.b16 %v63, %v62
  %v79 = vpack.c.b16 %v65, %v64
  %v80 = vpack.c.b16 %v67, %v66
  %v81 = vpack.c.b16 %v69, %v68
  %v82 = vpack.c.b16 %v71, %v70
  %v83 = vpack.c.b16 %v73, %v72
  %v84 = vpack.c.b16 %v75, %v74
  %v85 = vpack.c.b16 %v77, %v76
  %94 = vmatprep.subr.bf16.mxu0 0
  %95 = vmatpush1.bf16.msra.mxu0 %v78
  %96 = vmatprep.subr.bf16.mxu0 0
  %97 = vmatpush1.bf16.msra.mxu0 %v79
  %98 = vmatprep.subr.bf16.mxu0 0
  %99 = vmatpush1.bf16.msra.mxu0 %v80
  %100 = vmatprep.subr.bf16.mxu0 0
  %101 = vmatpush1.bf16.msra.mxu0 %v81
  %102 = vmatprep.subr.bf16.mxu0 0
  %103 = vmatpush1.bf16.msra.mxu0 %v82
  %104 = vmatprep.subr.bf16.mxu0 0
  %105 = vmatpush1.bf16.msra.mxu0 %v83
  %106 = vmatprep.subr.bf16.mxu0 0
  %107 = vmatpush1.bf16.msra.mxu0 %v84
  %108 = vmatprep.subr.bf16.mxu0 0
  %109 = vmatpush1.bf16.msra.mxu0 %v85
  %110 = vmatprep.subr.bf16.mxu0 0
  %111 = vmatpush1.bf16.msra.mxu0 0
  %112 = vmatprep.subr.bf16.mxu0 0
  %113 = vmatpush1.bf16.msra.mxu0 0
  %114 = vmatprep.subr.bf16.mxu0 0
  %115 = vmatpush1.bf16.msra.mxu0 0
  %116 = vmatprep.subr.bf16.mxu0 0
  %117 = vmatpush1.bf16.msra.mxu0 0
  %118 = vmatprep.subr.bf16.mxu0 0
  %119 = vmatpush1.bf16.msra.mxu0 0
  %120 = vmatprep.subr.bf16.mxu0 0
  %121 = vmatpush1.bf16.msra.mxu0 0
  %122 = vmatprep.subr.bf16.mxu0 0
  %123 = vmatpush1.bf16.msra.mxu0 0
  %124 = vmatprep.subr.bf16.mxu0 0
  %125 = vmatpush1.bf16.msra.mxu0 0
  %126 = vmatprep.mubr.bf16.mxu0 0
  %127 = vmatmul.mubr.bf16.gmra.mrb[0].mxu0 %v44
  %v128 = vpop.f32.mrb[0].mxu0
  %v129 = vadd.f32 %v38, %v128
  %v130 = vpop.f32.mrb[0].mxu0
  %v131 = vpop.f32.mrb[0].mxu0
  %v132 = vadd.f32 %v38, %v131
  %v133 = vpop.f32.mrb[0].mxu0
  %134 = vdwg.mxu0
  %v135 = vmax.f32 %v129, 0.0
  %v136 = vmax.f32 %v132, 0.0
  %v137 = vpack.c.bf16 %v136, %v135
  %v139 = vunpack.c.l.b16 %v137
  %v140 = vunpack.c.h.b16 %v137
  %v141 = vpack.c.b16 %v139, %v139
  %v142 = vpack.c.b16 %v140, %v140
  %145 = vst [vmem:[%s3] sm:$0xf] %v141
  %146 = vst [vmem:[%s3 + $0x4] sm:$0xf] %v142
  // Predicated region
  $region14: #{_lambda_.19} parent=0 // pred_check
    _
  $region15: #{_lambda_.19} parent=0 // pred_check_branch
    %148 = sbr.rel (0) target = $region17
  $region16: #{_lambda_.19} parent=0 // pred_region
    _
  $region17: #{_lambda_.19} parent=0 // pred_fallthru
    _
  // Predicated region
  $region18: #{_lambda_.19} parent=0 // pred_check
    _
  $region19: #{_lambda_.19} parent=0 // pred_check_branch
    %150 = sbr.rel (0) target = $region21
  $region20: #{_lambda_.19} parent=0 // pred_region
    _
  $region21: #{_lambda_.19} parent=0 // pred_fallthru
    _

// kernel: _lambda_.20
$region0: #{_lambda_.20}
  #allocation0 [shape = 'u32[]', space=smem, size = 0x4, offset = 0x4, fixed_abs, tag = 'smem constant byte address 0x4 - core index']
  #allocation1 [shape = 'u32[144,128]{1,0:T(1,128)}', space=vmem, size = 0x12000, scoped, tag = 'internal scratch']
  %s0 = inlined_call_operand.vmem [shape: bf16[16,256], index: 0, kind: input, shape index: {}]
  %s1 = inlined_call_operand.vmem [shape: bf16[256,256], index: 1, kind: input, shape index: {}]
  %s2 = inlined_call_operand.vmem [shape: f32[1,256], index: 2, kind: input, shape index: {}]
  %s3 = inlined_call_operand.vmem [shape: bf16[16,128], index: 3, kind: input, shape index: {}]
  %s4 = inlined_call_operand.vmem [shape: f32[1,128], index: 4, kind: input, shape index: {}]
  %s5 = inlined_call_operand.vmem [shape: bf16[16,128], index: 5, kind: output, shape index: {}]
  %s6 = sld [smem:[#allocation0]]
  $region30: #{_lambda_.20} parent=0
    _
  %s8 = ssub.s32 1, %s6
  %s9 = scalar_select 0, %s8, %s6
  // Predicated region
  $region2: #{_lambda_.20} parent=0 // pred_check
    _
  $region3: #{_lambda_.20} parent=0 // pred_check_branch
    %11 = sbr.rel (0) target = $region5
  $region4: #{_lambda_.20} parent=0 // pred_region
    _
  $region5: #{_lambda_.20} parent=0 // pred_fallthru
    _
  // Predicated region
  $region6: #{_lambda_.20} parent=0 // pred_check
    _
  $region7: #{_lambda_.20} parent=0 // pred_check_branch
    %13 = sbr.rel (0) target = $region9
  $region8: #{_lambda_.20} parent=0 // pred_region
    _
  $region9: #{_lambda_.20} parent=0 // pred_fallthru
    _
  // Predicated region
  $region10: #{_lambda_.20} parent=0 // pred_check
    _
  $region11: #{_lambda_.20} parent=0 // pred_check_branch
    %15 = sbr.rel (0) target = $region13
  $region12: #{_lambda_.20} parent=0 // pred_region
    _
  $region13: #{_lambda_.20} parent=0 // pred_fallthru
    _
  // Predicated region
  $region14: #{_lambda_.20} parent=0 // pred_check
    _
  $region15: #{_lambda_.20} parent=0 // pred_check_branch
    %17 = sbr.rel (0) target = $region17
  $region16: #{_lambda_.20} parent=0 // pred_region
    _
  $region17: #{_lambda_.20} parent=0 // pred_fallthru
    _
  // Predicated region
  $region18: #{_lambda_.20} parent=0 // pred_check
    _
  $region19: #{_lambda_.20} parent=0 // pred_check_branch
    %19 = sbr.rel (0) target = $region21
  $region20: #{_lambda_.20} parent=0 // pred_region
    _
  $region21: #{_lambda_.20} parent=0 // pred_fallthru
    _
  %v20 = vld [vmem:[%s0] sm:$0xff]
  %v21 = vld [vmem:[%s0 + $0x8] sm:$0xff]
  %v22 = vld [vmem:[%s1] sm:$0xff]
  %v23 = vld [vmem:[%s1 + $0x8] sm:$0xff]
  %v24 = vld [vmem:[%s1 + $0x10] sm:$0xff]
  %v25 = vld [vmem:[%s1 + $0x18] sm:$0xff]
  %v26 = vld [vmem:[%s1 + $0x20] sm:$0xff]
  %v27 = vld [vmem:[%s1 + $0x28] sm:$0xff]
  %v28 = vld [vmem:[%s1 + $0x30] sm:$0xff]
  %v29 = vld [vmem:[%s1 + $0x38] sm:$0xff]
  %v30 = vld [vmem:[%s1 + $0x40] sm:$0xff]
  %v31 = vld [vmem:[%s1 + $0x48] sm:$0xff]
  %v32 = vld [vmem:[%s1 + $0x50] sm:$0xff]
  %v33 = vld [vmem:[%s1 + $0x58] sm:$0xff]
  %v34 = vld [vmem:[%s1 + $0x60] sm:$0xff]
  %v35 = vld [vmem:[%s1 + $0x68] sm:$0xff]
  %v36 = vld [vmem:[%s1 + $0x70] sm:$0xff]
  %v37 = vld [vmem:[%s1 + $0x78] sm:$0xff]
  %v38 = vld [vmem:[%s1 + $0x80] sm:$0xff]
  %v39 = vld [vmem:[%s1 + $0x88] sm:$0xff]
  %v40 = vld [vmem:[%s1 + $0x90] sm:$0xff]
  %v41 = vld [vmem:[%s1 + $0x98] sm:$0xff]
  %v42 = vld [vmem:[%s1 + $0xa0] sm:$0xff]
  %v43 = vld [vmem:[%s1 + $0xa8] sm:$0xff]
  %v44 = vld [vmem:[%s1 + $0xb0] sm:$0xff]
  %v45 = vld [vmem:[%s1 + $0xb8] sm:$0xff]
  %v46 = vld [vmem:[%s1 + $0xc0] sm:$0xff]
  %v47 = vld [vmem:[%s1 + $0xc8] sm:$0xff]
  %v48 = vld [vmem:[%s1 + $0xd0] sm:$0xff]
  %v49 = vld [vmem:[%s1 + $0xd8] sm:$0xff]
  %v50 = vld [vmem:[%s1 + $0xe0] sm:$0xff]
  %v51 = vld [vmem:[%s1 + $0xe8] sm:$0xff]
  %v52 = vld [vmem:[%s1 + $0xf0] sm:$0xff]
  %v53 = vld [vmem:[%s1 + $0xf8] sm:$0xff]
  %v54 = vld [vmem:[%s2] sm:$0x3]
  %v56 = vlaneseq
  %v57 = vshrl.u32 %v56, 7
  %v58 = vsub.s32 0, %v57
  %v59 = vrot.slane %v54, %v58
  %v60 = vlaneseq
  %v61 = vshrl.u32 %v60, 7
  %v62 = vsub.s32 1, %v61
  %v63 = vrot.slane %v54, %v62
  %v68 = vunpack.c.l.b16 %v20
  %v69 = vunpack.c.h.b16 %v20
  %v70 = vunpack.c.l.b16 %v21
  %v71 = vunpack.c.h.b16 %v21
  %v72 = vpack.c.b16 %v70, %v68
  %v73 = vpack.c.b16 %v71, %v69
  %v108 = vunpack.c.l.b16 %v22
  %v109 = vunpack.c.h.b16 %v22
  %v110 = vunpack.c.l.b16 %v23
  %v111 = vunpack.c.h.b16 %v23
  %v112 = vunpack.c.l.b16 %v24
  %v113 = vunpack.c.h.b16 %v24
  %v114 = vunpack.c.l.b16 %v25
  %v115 = vunpack.c.h.b16 %v25
  %v116 = vunpack.c.l.b16 %v26
  %v117 = vunpack.c.h.b16 %v26
  %v118 = vunpack.c.l.b16 %v27
  %v119 = vunpack.c.h.b16 %v27
  %v120 = vunpack.c.l.b16 %v28
  %v121 = vunpack.c.h.b16 %v28
  %v122 = vunpack.c.l.b16 %v29
  %v123 = vunpack.c.h.b16 %v29
  %v124 = vunpack.c.l.b16 %v30
  %v125 = vunpack.c.h.b16 %v30
  %v126 = vunpack.c.l.b16 %v31
  %v127 = vunpack.c.h.b16 %v31
  %v128 = vunpack.c.l.b16 %v32
  %v129 = vunpack.c.h.b16 %v32
  %v130 = vunpack.c.l.b16 %v33
  %v131 = vunpack.c.h.b16 %v33
  %v132 = vunpack.c.l.b16 %v34
  %v133 = vunpack.c.h.b16 %v34
  %v134 = vunpack.c.l.b16 %v35
  %v135 = vunpack.c.h.b16 %v35
  %v136 = vunpack.c.l.b16 %v36
  %v137 = vunpack.c.h.b16 %v36
  %v138 = vunpack.c.l.b16 %v37
  %v139 = vunpack.c.h.b16 %v37
  %v140 = vunpack.c.l.b16 %v38
  %v141 = vunpack.c.h.b16 %v38
  %v142 = vunpack.c.l.b16 %v39
  %v143 = vunpack.c.h.b16 %v39
  %v144 = vunpack.c.l.b16 %v40
  %v145 = vunpack.c.h.b16 %v40
  %v146 = vunpack.c.l.b16 %v41
  %v147 = vunpack.c.h.b16 %v41
  %v148 = vunpack.c.l.b16 %v42
  %v149 = vunpack.c.h.b16 %v42
  %v150 = vunpack.c.l.b16 %v43
  %v151 = vunpack.c.h.b16 %v43
  %v152 = vunpack.c.l.b16 %v44
  %v153 = vunpack.c.h.b16 %v44
  %v154 = vunpack.c.l.b16 %v45
  %v155 = vunpack.c.h.b16 %v45
  %v156 = vunpack.c.l.b16 %v46
  %v157 = vunpack.c.h.b16 %v46
  %v158 = vunpack.c.l.b16 %v47
  %v159 = vunpack.c.h.b16 %v47
  %v160 = vunpack.c.l.b16 %v48
  %v161 = vunpack.c.h.b16 %v48
  %v162 = vunpack.c.l.b16 %v49
  %v163 = vunpack.c.h.b16 %v49
  %v164 = vunpack.c.l.b16 %v50
  %v165 = vunpack.c.h.b16 %v50
  %v166 = vunpack.c.l.b16 %v51
  %v167 = vunpack.c.h.b16 %v51
  %v168 = vunpack.c.l.b16 %v52
  %v169 = vunpack.c.h.b16 %v52
  %v170 = vunpack.c.l.b16 %v53
  %v171 = vunpack.c.h.b16 %v53
  %v172 = vpack.c.b16 %v110, %v108
  %v173 = vpack.c.b16 %v111, %v109
  %v174 = vpack.c.b16 %v114, %v112
  %v175 = vpack.c.b16 %v115, %v113
  %v176 = vpack.c.b16 %v118, %v116
  %v177 = vpack.c.b16 %v119, %v117
  %v178 = vpack.c.b16 %v122, %v120
  %v179 = vpack.c.b16 %v123, %v121
  %v180 = vpack.c.b16 %v126, %v124
  %v181 = vpack.c.b16 %v127, %v125
  %v182 = vpack.c.b16 %v130, %v128
  %v183 = vpack.c.b16 %v131, %v129
  %v184 = vpack.c.b16 %v134, %v132
  %v185 = vpack.c.b16 %v135, %v133
  %v186 = vpack.c.b16 %v138, %v136
  %v187 = vpack.c.b16 %v139, %v137
  %v188 = vpack.c.b16 %v142, %v140
  %v189 = vpack.c.b16 %v143, %v141
  %v190 = vpack.c.b16 %v146, %v144
  %v191 = vpack.c.b16 %v147, %v145
  %v192 = vpack.c.b16 %v150, %v148
  %v193 = vpack.c.b16 %v151, %v149
  %v194 = vpack.c.b16 %v154, %v152
  %v195 = vpack.c.b16 %v155, %v153
  %v196 = vpack.c.b16 %v158, %v156
  %v197 = vpack.c.b16 %v159, %v157
  %v198 = vpack.c.b16 %v162, %v160
  %v199 = vpack.c.b16 %v163, %v161
  %v200 = vpack.c.b16 %v166, %v164
  %v201 = vpack.c.b16 %v167, %v165
  %v202 = vpack.c.b16 %v170, %v168
  %v203 = vpack.c.b16 %v171, %v169
  %236 = vmatprep.subr.bf16.mxu0 %v173
  %237 = vmatpush1.bf16.msra.mxu0 %v172
  %238 = vmatprep.subr.bf16.mxu0 %v175
  %239 = vmatpush1.bf16.msra.mxu0 %v174
  %240 = vmatprep.subr.bf16.mxu0 %v177
  %241 = vmatpush1.bf16.msra.mxu0 %v176
  %242 = vmatprep.subr.bf16.mxu0 %v179
  %243 = vmatpush1.bf16.msra.mxu0 %v178
  %244 = vmatprep.subr.bf16.mxu0 %v181
  %245 = vmatpush1.bf16.msra.mxu0 %v180
  %246 = vmatprep.subr.bf16.mxu0 %v183
  %247 = vmatpush1.bf16.msra.mxu0 %v182
  %248 = vmatprep.subr.bf16.mxu0 %v185
  %249 = vmatpush1.bf16.msra.mxu0 %v184
  %250 = vmatprep.subr.bf16.mxu0 %v187
  %251 = vmatpush1.bf16.msra.mxu0 %v186
  %252 = vmatprep.subr.bf16.mxu0 %v189
  %253 = vmatpush1.bf16.msra.mxu0 %v188
  %254 = vmatprep.subr.bf16.mxu0 %v191
  %255 = vmatpush1.bf16.msra.mxu0 %v190
  %256 = vmatprep.subr.bf16.mxu0 %v193
  %257 = vmatpush1.bf16.msra.mxu0 %v192
  %258 = vmatprep.subr.bf16.mxu0 %v195
  %259 = vmatpush1.bf16.msra.mxu0 %v194
  %260 = vmatprep.subr.bf16.mxu0 %v197
  %261 = vmatpush1.bf16.msra.mxu0 %v196
  %262 = vmatprep.subr.bf16.mxu0 %v199
  %263 = vmatpush1.bf16.msra.mxu0 %v198
  %264 = vmatprep.subr.bf16.mxu0 %v201
  %265 = vmatpush1.bf16.msra.mxu0 %v200
  %266 = vmatprep.subr.bf16.mxu0 %v203
  %267 = vmatpush1.bf16.msra.mxu0 %v202
  %268 = vmatprep.mubr.bf16.mxu0 %v73
  %269 = vmatmul.mubr.bf16.gmra.mrb[0].mxu0 %v72
  %v270 = vpop.f32.mrb[0].mxu0
  %v271 = vadd.f32 %v59, %v270
  %v272 = vpop.f32.mrb[0].mxu0
  %v273 = vadd.f32 %v63, %v272
  %v274 = vpop.f32.mrb[0].mxu0
  %v275 = vadd.f32 %v59, %v274
  %v276 = vpop.f32.mrb[0].mxu0
  %v277 = vadd.f32 %v63, %v276
  %278 = vdwg.mxu0
  %v279 = vmax.f32 %v271, 0.0
  %v280 = vmax.f32 %v275, 0.0
  %v281 = vmax.f32 %v273, 0.0
  %v282 = vmax.f32 %v277, 0.0
  %v283 = vadd.f32 %v279, %v281
  %v284 = vadd.f32 %v280, %v282
  %v285 = vld [vmem:[%s4] sm:$0x1]
  %v286 = vld [vmem:[%s3] sm:$0xf]
  %v287 = vld [vmem:[%s3 + $0x4] sm:$0xf]
  %v288 = vunpack.c.l.bf16 %v286
  %v289 = vunpack.c.l.bf16 %v287
  %v291 = vlaneseq
  %v292 = vshrl.u32 %v291, 7
  %v293 = vsub.s32 0, %v292
  %v294 = vrot.slane %v285, %v293
  %v296 = vmul.f32 %v294, %v288
  %v297 = vmul.f32 %v294, %v289
  %v298 = vadd.f32 %v283, %v296
  %v299 = vadd.f32 %v284, %v297
  %v300 = vpack.c.bf16 %v299, %v298
  %v302 = vunpack.c.l.b16 %v300
  %v303 = vunpack.c.h.b16 %v300
  %v304 = vpack.c.b16 %v302, %v302
  %v305 = vpack.c.b16 %v303, %v303
  %308 = vst [vmem:[%s5] sm:$0xf] %v304
  %309 = vst [vmem:[%s5 + $0x4] sm:$0xf] %v305
  // Predicated region
  $region22: #{_lambda_.20} parent=0 // pred_check
    _
  $region23: #{_lambda_.20} parent=0 // pred_check_branch
    %311 = sbr.rel (0) target = $region25
  $region24: #{_lambda_.20} parent=0 // pred_region
    _
  $region25: #{_lambda_.20} parent=0 // pred_fallthru
    _
  // Predicated region
  $region26: #{_lambda_.20} parent=0 // pred_check
    _
  $region27: #{_lambda_.20} parent=0 // pred_check_branch
    %313 = sbr.rel (0) target = $region29
  $region28: #{_lambda_.20} parent=0 // pred_region
    _
  $region29: #{_lambda_.20} parent=0 // pred_fallthru
    _

// kernel: _lambda_.23
$region0: #{_lambda_.23}
  #allocation0 [shape = 'u32[]', space=smem, size = 0x4, offset = 0x4, fixed_abs, tag = 'smem constant byte address 0x4 - core index']
  #allocation1 [shape = 'u32[144,128]{1,0:T(1,128)}', space=vmem, size = 0x12000, scoped, tag = 'internal scratch']
  %s0 = inlined_call_operand.vmem [shape: bf16[16,128], index: 0, kind: input, shape index: {}]
  %s1 = inlined_call_operand.vmem [shape: bf16[128,256], index: 1, kind: input, shape index: {}]
  %s2 = inlined_call_operand.vmem [shape: f32[1,256], index: 2, kind: input, shape index: {}]
  %s3 = inlined_call_operand.vmem [shape: bf16[16,128], index: 3, kind: output, shape index: {}]
  %s4 = sld [smem:[#allocation0]]
  $region22: #{_lambda_.23} parent=0
    _
  %s6 = ssub.s32 1, %s4
  %s7 = scalar_select 0, %s6, %s4
  // Predicated region
  $region2: #{_lambda_.23} parent=0 // pred_check
    _
  $region3: #{_lambda_.23} parent=0 // pred_check_branch
    %9 = sbr.rel (0) target = $region5
  $region4: #{_lambda_.23} parent=0 // pred_region
    _
  $region5: #{_lambda_.23} parent=0 // pred_fallthru
    _
  // Predicated region
  $region6: #{_lambda_.23} parent=0 // pred_check
    _
  $region7: #{_lambda_.23} parent=0 // pred_check_branch
    %11 = sbr.rel (0) target = $region9
  $region8: #{_lambda_.23} parent=0 // pred_region
    _
  $region9: #{_lambda_.23} parent=0 // pred_fallthru
    _
  // Predicated region
  $region10: #{_lambda_.23} parent=0 // pred_check
    _
  $region11: #{_lambda_.23} parent=0 // pred_check_branch
    %13 = sbr.rel (0) target = $region13
  $region12: #{_lambda_.23} parent=0 // pred_region
    _
  $region13: #{_lambda_.23} parent=0 // pred_fallthru
    _
  %v15 = vld [vmem:[%s0] sm:$0xf]
  %v16 = vld [vmem:[%s0 + $0x4] sm:$0xf]
  %v17 = vld [vmem:[%s1] sm:$0xff]
  %v18 = vld [vmem:[%s1 + $0x8] sm:$0xff]
  %v19 = vld [vmem:[%s1 + $0x10] sm:$0xff]
  %v20 = vld [vmem:[%s1 + $0x18] sm:$0xff]
  %v21 = vld [vmem:[%s1 + $0x20] sm:$0xff]
  %v22 = vld [vmem:[%s1 + $0x28] sm:$0xff]
  %v23 = vld [vmem:[%s1 + $0x30] sm:$0xff]
  %v24 = vld [vmem:[%s1 + $0x38] sm:$0xff]
  %v25 = vld [vmem:[%s1 + $0x40] sm:$0xff]
  %v26 = vld [vmem:[%s1 + $0x48] sm:$0xff]
  %v27 = vld [vmem:[%s1 + $0x50] sm:$0xff]
  %v28 = vld [vmem:[%s1 + $0x58] sm:$0xff]
  %v29 = vld [vmem:[%s1 + $0x60] sm:$0xff]
  %v30 = vld [vmem:[%s1 + $0x68] sm:$0xff]
  %v31 = vld [vmem:[%s1 + $0x70] sm:$0xff]
  %v32 = vld [vmem:[%s1 + $0x78] sm:$0xff]
  %v33 = vld [vmem:[%s2] sm:$0x3]
  %v35 = vlaneseq
  %v36 = vshrl.u32 %v35, 7
  %v37 = vsub.s32 0, %v36
  %v38 = vrot.slane %v33, %v37
  %v39 = vlaneseq
  %v40 = vshrl.u32 %v39, 7
  %v41 = vsub.s32 1, %v40
  %v42 = vrot.slane %v33, %v41
  %v47 = vunpack.c.l.b16 %v15
  %v48 = vunpack.c.l.b16 %v16
  %v49 = vpack.c.b16 %v48, %v47
  %v67 = vunpack.c.l.b16 %v17
  %v68 = vunpack.c.h.b16 %v17
  %v69 = vunpack.c.l.b16 %v18
  %v70 = vunpack.c.h.b16 %v18
  %v71 = vunpack.c.l.b16 %v19
  %v72 = vunpack.c.h.b16 %v19
  %v73 = vunpack.c.l.b16 %v20
  %v74 = vunpack.c.h.b16 %v20
  %v75 = vunpack.c.l.b16 %v21
  %v76 = vunpack.c.h.b16 %v21
  %v77 = vunpack.c.l.b16 %v22
  %v78 = vunpack.c.h.b16 %v22
  %v79 = vunpack.c.l.b16 %v23
  %v80 = vunpack.c.h.b16 %v23
  %v81 = vunpack.c.l.b16 %v24
  %v82 = vunpack.c.h.b16 %v24
  %v83 = vunpack.c.l.b16 %v25
  %v84 = vunpack.c.h.b16 %v25
  %v85 = vunpack.c.l.b16 %v26
  %v86 = vunpack.c.h.b16 %v26
  %v87 = vunpack.c.l.b16 %v27
  %v88 = vunpack.c.h.b16 %v27
  %v89 = vunpack.c.l.b16 %v28
  %v90 = vunpack.c.h.b16 %v28
  %v91 = vunpack.c.l.b16 %v29
  %v92 = vunpack.c.h.b16 %v29
  %v93 = vunpack.c.l.b16 %v30
  %v94 = vunpack.c.h.b16 %v30
  %v95 = vunpack.c.l.b16 %v31
  %v96 = vunpack.c.h.b16 %v31
  %v97 = vunpack.c.l.b16 %v32
  %v98 = vunpack.c.h.b16 %v32
  %v99 = vpack.c.b16 %v69, %v67
  %v100 = vpack.c.b16 %v70, %v68
  %v101 = vpack.c.b16 %v73, %v71
  %v102 = vpack.c.b16 %v74, %v72
  %v103 = vpack.c.b16 %v77, %v75
  %v104 = vpack.c.b16 %v78, %v76
  %v105 = vpack.c.b16 %v81, %v79
  %v106 = vpack.c.b16 %v82, %v80
  %v107 = vpack.c.b16 %v85, %v83
  %v108 = vpack.c.b16 %v86, %v84
  %v109 = vpack.c.b16 %v89, %v87
  %v110 = vpack.c.b16 %v90, %v88
  %v111 = vpack.c.b16 %v93, %v91
  %v112 = vpack.c.b16 %v94, %v92
  %v113 = vpack.c.b16 %v97, %v95
  %v114 = vpack.c.b16 %v98, %v96
  %131 = vmatprep.subr.bf16.mxu0 %v100
  %132 = vmatpush1.bf16.msra.mxu0 %v99
  %133 = vmatprep.subr.bf16.mxu0 %v102
  %134 = vmatpush1.bf16.msra.mxu0 %v101
  %135 = vmatprep.subr.bf16.mxu0 %v104
  %136 = vmatpush1.bf16.msra.mxu0 %v103
  %137 = vmatprep.subr.bf16.mxu0 %v106
  %138 = vmatpush1.bf16.msra.mxu0 %v105
  %139 = vmatprep.subr.bf16.mxu0 %v108
  %140 = vmatpush1.bf16.msra.mxu0 %v107
  %141 = vmatprep.subr.bf16.mxu0 %v110
  %142 = vmatpush1.bf16.msra.mxu0 %v109
  %143 = vmatprep.subr.bf16.mxu0 %v112
  %144 = vmatpush1.bf16.msra.mxu0 %v111
  %145 = vmatprep.subr.bf16.mxu0 %v114
  %146 = vmatpush1.bf16.msra.mxu0 %v113
  %147 = vmatprep.subr.bf16.mxu0 0
  %148 = vmatpush1.bf16.msra.mxu0 0
  %149 = vmatprep.subr.bf16.mxu0 0
  %150 = vmatpush1.bf16.msra.mxu0 0
  %151 = vmatprep.subr.bf16.mxu0 0
  %152 = vmatpush1.bf16.msra.mxu0 0
  %153 = vmatprep.subr.bf16.mxu0 0
  %154 = vmatpush1.bf16.msra.mxu0 0
  %155 = vmatprep.subr.bf16.mxu0 0
  %156 = vmatpush1.bf16.msra.mxu0 0
  %157 = vmatprep.subr.bf16.mxu0 0
  %158 = vmatpush1.bf16.msra.mxu0 0
  %159 = vmatprep.subr.bf16.mxu0 0
  %160 = vmatpush1.bf16.msra.mxu0 0
  %161 = vmatprep.subr.bf16.mxu0 0
  %162 = vmatpush1.bf16.msra.mxu0 0
  %163 = vmatprep.mubr.bf16.mxu0 0
  %164 = vmatmul.mubr.bf16.gmra.mrb[0].mxu0 %v49
  %v165 = vpop.f32.mrb[0].mxu0
  %v166 = vadd.f32 %v38, %v165
  %v167 = vpop.f32.mrb[0].mxu0
  %v168 = vadd.f32 %v42, %v167
  %v169 = vpop.f32.mrb[0].mxu0
  %v170 = vadd.f32 %v38, %v169
  %v171 = vpop.f32.mrb[0].mxu0
  %v172 = vadd.f32 %v42, %v171
  %173 = vdwg.mxu0
  %v174 = vmax.f32 %v166, 0.0
  %v175 = vmax.f32 %v170, 0.0
  %v176 = vmax.f32 %v168, 0.0
  %v177 = vmax.f32 %v172, 0.0
  %v178 = vadd.f32 %v174, %v176
  %v179 = vadd.f32 %v175, %v177
  %v180 = vpack.c.bf16 %v179, %v178
  %v182 = vunpack.c.l.b16 %v180
  %v183 = vunpack.c.h.b16 %v180
  %v184 = vpack.c.b16 %v182, %v182
  %v185 = vpack.c.b16 %v183, %v183
  %188 = vst [vmem:[%s3] sm:$0xf] %v184
  %189 = vst [vmem:[%s3 + $0x4] sm:$0xf] %v185
  // Predicated region
  $region14: #{_lambda_.23} parent=0 // pred_check
    _
  $region15: #{_lambda_.23} parent=0 // pred_check_branch
    %191 = sbr.rel (0) target = $region17
  $region16: #{_lambda_.23} parent=0 // pred_region
    _
  $region17: #{_lambda_.23} parent=0 // pred_fallthru
    _
  // Predicated region
  $region18: #{_lambda_.23} parent=0 // pred_check
    _
  $region19: #{_lambda_.23} parent=0 // pred_check_branch
    %193 = sbr.rel (0) target = $region21
  $region20: #{_lambda_.23} parent=0 // pred_region
    _
  $region21: #{_lambda_.23} parent=0 // pred_fallthru
    _

// kernel: _lambda_.25
$region0: #{_lambda_.25}
  #allocation0 [shape = 'u32[]', space=smem, size = 0x4, offset = 0x4, fixed_abs, tag = 'smem constant byte address 0x4 - core index']
  #allocation1 [shape = 'u32[144,128]{1,0:T(1,128)}', space=vmem, size = 0x12000, scoped, tag = 'internal scratch']
  %s0 = inlined_call_operand.vmem [shape: bf16[32,256], index: 0, kind: input, shape index: {}]
  %s1 = inlined_call_operand.vmem [shape: bf16[256,256], index: 1, kind: input, shape index: {}]
  %s2 = inlined_call_operand.vmem [shape: f32[1,256], index: 2, kind: input, shape index: {}]
  %s3 = inlined_call_operand.vmem [shape: bf16[32,256], index: 3, kind: output, shape index: {}]
  %s4 = sld [smem:[#allocation0]]
  $region45: #{_lambda_.25} parent=0
    _
  %s6 = ssub.s32 1, %s4
  %s7 = scalar_select 0, %s6, %s4
  loop: start=0, step=1, limit=4
  $region2: #{_lambda_.25} parent=0 // loop_pre_header
    _
  $region3: #{_lambda_.25} parent=0 // loop_header
    %s9 = sphi 0, %s13
    %p10 = scmp.ge.s32.totalorder %s9, 4
    %s19 = sphi 0, %s21
    %s22 = sphi 0, %s19
    %s23 = sphi 0, %s22
    %s39 = sphi 0, %s23
    %s43 = sphi 0, %s43
    %s45 = sphi 0, %s43
    %s46 = sphi 0, %s45
    %s60 = sphi 0, %s46
    %s64 = sphi 0, %s64
    %s66 = sphi 0, %s64
    %s67 = sphi 0, %s66
    %s81 = sphi 0, %s67
    %s87 = sphi 0, %s89
    %s90 = sphi 0, %s87
    %s91 = sphi 0, %s90
    %s107 = sphi 0, %s91
  $region4: #{_lambda_.25} parent=0 // loop_header_branch
    %12 = sbr.rel (%p10) target = $region8
  $region5: #{_lambda_.25} parent=0 // loop_body
    %s14 = ssub.s32 %s9, 1
    %s15 = ssub.s32 %s9, 2
    %s16 = sadd.s32 %s9, 1
    %s17 = ssub.s32 %s9, %s16
    %p18 = scmp.eq.s32.totalorder %s17, 0
    %s20 = sadd.s32 %s19, 1
    %s21 = scalar_select %p18, %s19, %s20
    %p24 = pneg %p18
    %p25 = scmp.eq.s32.totalorder %s9, 1
    %p26 = por %p24, %p25
    %p27 = scmp.ne.s32.totalorder %s19, %s22
    %p28 = scmp.eq.s32.totalorder %s9, 0
    %p29 = por %p27, %p28
    %p30 = scmp.ne.s32.totalorder %s19, %s22
    %p31 = scmp.eq.s32.totalorder %s14, 1
    %p32 = por %p30, %p31
    %p33 = scmp.ne.s32.totalorder %s22, %s23
    %p34 = scmp.eq.s32.totalorder %s14, 0
    %p35 = por %p33, %p34
    %p36 = scmp.ne.s32.totalorder %s22, %s23
    %p37 = scmp.eq.s32.totalorder %s15, 1
    %p38 = por %p36, %p37
    %p40 = scmp.ne.s32.totalorder %s23, %s39
    %p41 = scmp.eq.s32.totalorder %s15, 0
    %p42 = por %p40, %p41
    %s44 = sadd.s32 %s43, 1
    %p47 = scmp.eq.s32.totalorder %s9, 1
    %p48 = scmp.ne.s32.totalorder %s43, %s45
    %p49 = scmp.eq.s32.totalorder %s9, 0
    %p50 = por %p48, %p49
    %p51 = scmp.ne.s32.totalorder %s43, %s45
    %p52 = scmp.eq.s32.totalorder %s14, 1
    %p53 = por %p51, %p52
    %p54 = scmp.ne.s32.totalorder %s45, %s46
    %p55 = scmp.eq.s32.totalorder %s14, 0
    %p56 = por %p54, %p55
    %p57 = scmp.ne.s32.totalorder %s45, %s46
    %p58 = scmp.eq.s32.totalorder %s15, 1
    %p59 = por %p57, %p58
    %p61 = scmp.ne.s32.totalorder %s46, %s60
    %p62 = scmp.eq.s32.totalorder %s15, 0
    %p63 = por %p61, %p62
    %s65 = sadd.s32 %s64, 1
    %p68 = scmp.eq.s32.totalorder %s9, 1
    %p69 = scmp.ne.s32.totalorder %s64, %s66
    %p70 = scmp.eq.s32.totalorder %s9, 0
    %p71 = por %p69, %p70
    %p72 = scmp.ne.s32.totalorder %s64, %s66
    %p73 = scmp.eq.s32.totalorder %s14, 1
    %p74 = por %p72, %p73
    %p75 = scmp.ne.s32.totalorder %s66, %s67
    %p76 = scmp.eq.s32.totalorder %s14, 0
    %p77 = por %p75, %p76
    %p78 = scmp.ne.s32.totalorder %s66, %s67
    %p79 = scmp.eq.s32.totalorder %s15, 1
    %p80 = por %p78, %p79
    %p82 = scmp.ne.s32.totalorder %s67, %s81
    %p83 = scmp.eq.s32.totalorder %s15, 0
    %p84 = por %p82, %p83
    %s85 = ssub.s32 %s9, %s16
    %p86 = scmp.eq.s32.totalorder %s85, 0
    %s88 = sadd.s32 %s87, 1
    %s89 = scalar_select %p86, %s87, %s88
    %p92 = pneg %p86
    %p93 = scmp.eq.s32.totalorder %s9, 1
    %p94 = por %p92, %p93
    %p95 = scmp.ne.s32.totalorder %s87, %s90
    %p96 = scmp.eq.s32.totalorder %s9, 0
    %p97 = por %p95, %p96
    %p98 = scmp.ne.s32.totalorder %s87, %s90
    %p99 = scmp.eq.s32.totalorder %s14, 1
    %p100 = por %p98, %p99
    %p101 = scmp.ne.s32.totalorder %s90, %s91
    %p102 = scmp.eq.s32.totalorder %s14, 0
    %p103 = por %p101, %p102
    %p104 = scmp.ne.s32.totalorder %s90, %s91
    %p105 = scmp.eq.s32.totalorder %s15, 1
    %p106 = por %p104, %p105
    %p108 = scmp.ne.s32.totalorder %s91, %s107
    %p109 = scmp.eq.s32.totalorder %s15, 0
    %p110 = por %p108, %p109
    %p111 = scmp.le.s32.totalorder 1, %s9
    %p112 = scmp.lt.s32.totalorder %s9, 3
    %p113 = pnand %p111, %p112
    %p114 = pneg %p113
    // Predicated region
    $region9: #{_lambda_.25} parent=5 // pred_check
      _
    $region10: #{_lambda_.25} parent=5 // pred_check_branch
      %116 = sbr.rel (%p113) target = $region12
    $region11: #{_lambda_.25} parent=5 // pred_region
      %s117 = ssub.s32 %s9, 1
      // Predicated region
      $region13: #{_lambda_.25} parent=11 // pred_check
        %p118 = pneg %p56
      $region14: #{_lambda_.25} parent=11 // pred_check_branch
        %120 = sbr.rel (%p118) target = $region16
      $region15: #{_lambda_.25} parent=11 // pred_region
        _
      $region16: #{_lambda_.25} parent=11 // pred_fallthru
        _
      // Predicated region
      $region17: #{_lambda_.25} parent=11 // pred_check
        %p121 = pneg %p77
      $region18: #{_lambda_.25} parent=11 // pred_check_branch
        %123 = sbr.rel (%p121) target = $region20
      $region19: #{_lambda_.25} parent=11 // pred_region
        _
      $region20: #{_lambda_.25} parent=11 // pred_fallthru
        _
    $region12: #{_lambda_.25} parent=5 // pred_fallthru
      _
    %p124 = scmp.lt.s32.totalorder %s9, 2
    // Predicated region
    $region21: #{_lambda_.25} parent=5 // pred_check
      %p125 = pneg %p124
    $region22: #{_lambda_.25} parent=5 // pred_check_branch
      %127 = sbr.rel (%p125) target = $region24
    $region23: #{_lambda_.25} parent=5 // pred_region
      // Predicated region
      $region25: #{_lambda_.25} parent=23 // pred_check
        %p128 = pneg %p29
      $region26: #{_lambda_.25} parent=23 // pred_check_branch
        %130 = sbr.rel (%p128) target = $region28
      $region27: #{_lambda_.25} parent=23 // pred_region
        %s131 = smul.u32 2, %s9
        %p132 = scmp.lt.s32.totalorder %s131, 3
        %s133 = scalar_select %p132, %s131, 3
        %s134 = smul.addr %s133, 2
        %s135 = smul.addr %s134, 4
        %s136 = scalar_lea.vmem %s0, %s135
        %s137 = smul.u32 2, %s9
      $region28: #{_lambda_.25} parent=23 // pred_fallthru
        _
    $region24: #{_lambda_.25} parent=5 // pred_fallthru
      _
    %p138 = scmp.le.s32.totalorder 1, %s9
    %p139 = scmp.lt.s32.totalorder %s9, 3
    %p140 = pnand %p138, %p139
    %p141 = pneg %p140
    // Predicated region
    $region29: #{_lambda_.25} parent=5 // pred_check
      _
    $region30: #{_lambda_.25} parent=5 // pred_check_branch
      %143 = sbr.rel (%p140) target = $region32
    $region31: #{_lambda_.25} parent=5 // pred_region
      %s144 = ssub.s32 %s9, 1
      %s145 = smul.u32 2, %s14
      %p146 = scmp.lt.s32.totalorder %s145, 3
      %s147 = scalar_select %p146, %s145, 3
      %s148 = smul.addr %s147, 2
      %s149 = smul.addr %s148, 4
      %s150 = scalar_lea.vmem %s0, %s149
      %p151 = pneg %p35
      %p152 = pneg %p32
      %p153 = pneg %p56
      %p154 = pneg %p53
      %p155 = pneg %p77
      %p156 = pneg %p74
      %p157 = pneg %p103
      %p158 = pneg %p100
      %s159 = smul.u32 2, %s14
      %p160 = scmp.lt.s32.totalorder %s159, 3
      %s161 = scalar_select %p160, %s159, 3
      %s162 = smul.addr %s161, 2
      %s163 = smul.addr %s162, 4
      %s164 = scalar_lea.vmem %s3, %s163
      %s165 = smul.u32 2, %s14
      %p166 = scmp.lt.s32.totalorder %s165, 3
      %s167 = scalar_select %p166, %s165, 3
      %s168 = smul.addr %s167, 2
      %s169 = smul.addr %s168, 4
      %s170 = scalar_lea.vmem %s0, %s169
      %s171 = smul.u32 2, %s14
      %s172 = smul.u32 2, %s14
      %p173 = scmp.lt.s32.totalorder %s172, 3
      %s174 = scalar_select %p173, %s172, 3
      %s175 = smul.addr %s174, 2
      %s176 = smul.addr %s175, 4
      %s177 = scalar_lea.vmem %s3, %s176
      %s178 = smul.u32 2, %s14
      %v179 = vld [vmem:[%s170] sm:$0xff]
      %v180 = vld [vmem:[%s170 + $0x8] sm:$0xff]
      %v181 = vld [vmem:[%s1] sm:$0xff]
      %v182 = vld [vmem:[%s1 + $0x8] sm:$0xff]
      %v183 = vld [vmem:[%s1 + $0x10] sm:$0xff]
      %v184 = vld [vmem:[%s1 + $0x18] sm:$0xff]
      %v185 = vld [vmem:[%s1 + $0x20] sm:$0xff]
      %v186 = vld [vmem:[%s1 + $0x28] sm:$0xff]
      %v187 = vld [vmem:[%s1 + $0x30] sm:$0xff]
      %v188 = vld [vmem:[%s1 + $0x38] sm:$0xff]
      %v189 = vld [vmem:[%s1 + $0x40] sm:$0xff]
      %v190 = vld [vmem:[%s1 + $0x48] sm:$0xff]
      %v191 = vld [vmem:[%s1 + $0x50] sm:$0xff]
      %v192 = vld [vmem:[%s1 + $0x58] sm:$0xff]
      %v193 = vld [vmem:[%s1 + $0x60] sm:$0xff]
      %v194 = vld [vmem:[%s1 + $0x68] sm:$0xff]
      %v195 = vld [vmem:[%s1 + $0x70] sm:$0xff]
      %v196 = vld [vmem:[%s1 + $0x78] sm:$0xff]
      %v197 = vld [vmem:[%s1 + $0x80] sm:$0xff]
      %v198 = vld [vmem:[%s1 + $0x88] sm:$0xff]
      %v199 = vld [vmem:[%s1 + $0x90] sm:$0xff]
      %v200 = vld [vmem:[%s1 + $0x98] sm:$0xff]
      %v201 = vld [vmem:[%s1 + $0xa0] sm:$0xff]
      %v202 = vld [vmem:[%s1 + $0xa8] sm:$0xff]
      %v203 = vld [vmem:[%s1 + $0xb0] sm:$0xff]
      %v204 = vld [vmem:[%s1 + $0xb8] sm:$0xff]
      %v205 = vld [vmem:[%s1 + $0xc0] sm:$0xff]
      %v206 = vld [vmem:[%s1 + $0xc8] sm:$0xff]
      %v207 = vld [vmem:[%s1 + $0xd0] sm:$0xff]
      %v208 = vld [vmem:[%s1 + $0xd8] sm:$0xff]
      %v209 = vld [vmem:[%s1 + $0xe0] sm:$0xff]
      %v210 = vld [vmem:[%s1 + $0xe8] sm:$0xff]
      %v211 = vld [vmem:[%s1 + $0xf0] sm:$0xff]
      %v212 = vld [vmem:[%s1 + $0xf8] sm:$0xff]
      %v213 = vld [vmem:[%s2] sm:$0x3]
      %v215 = vlaneseq
      %v216 = vshrl.u32 %v215, 7
      %v217 = vsub.s32 0, %v216
      %v218 = vrot.slane %v213, %v217
      %v219 = vlaneseq
      %v220 = vshrl.u32 %v219, 7
      %v221 = vsub.s32 1, %v220
      %v222 = vrot.slane %v213, %v221
      %v227 = vunpack.c.l.b16 %v179
      %v228 = vunpack.c.h.b16 %v179
      %v229 = vunpack.c.l.b16 %v180
      %v230 = vunpack.c.h.b16 %v180
      %v231 = vpack.c.b16 %v229, %v227
      %v232 = vpack.c.b16 %v230, %v228
      %v267 = vunpack.c.l.b16 %v181
      %v268 = vunpack.c.h.b16 %v181
      %v269 = vunpack.c.l.b16 %v182
      %v270 = vunpack.c.h.b16 %v182
      %v271 = vunpack.c.l.b16 %v183
      %v272 = vunpack.c.h.b16 %v183
      %v273 = vunpack.c.l.b16 %v184
      %v274 = vunpack.c.h.b16 %v184
      %v275 = vunpack.c.l.b16 %v185
      %v276 = vunpack.c.h.b16 %v185
      %v277 = vunpack.c.l.b16 %v186
      %v278 = vunpack.c.h.b16 %v186
      %v279 = vunpack.c.l.b16 %v187
      %v280 = vunpack.c.h.b16 %v187
      %v281 = vunpack.c.l.b16 %v188
      %v282 = vunpack.c.h.b16 %v188
      %v283 = vunpack.c.l.b16 %v189
      %v284 = vunpack.c.h.b16 %v189
      %v285 = vunpack.c.l.b16 %v190
      %v286 = vunpack.c.h.b16 %v190
      %v287 = vunpack.c.l.b16 %v191
      %v288 = vunpack.c.h.b16 %v191
      %v289 = vunpack.c.l.b16 %v192
      %v290 = vunpack.c.h.b16 %v192
      %v291 = vunpack.c.l.b16 %v193
      %v292 = vunpack.c.h.b16 %v193
      %v293 = vunpack.c.l.b16 %v194
      %v294 = vunpack.c.h.b16 %v194
      %v295 = vunpack.c.l.b16 %v195
      %v296 = vunpack.c.h.b16 %v195
      %v297 = vunpack.c.l.b16 %v196
      %v298 = vunpack.c.h.b16 %v196
      %v299 = vunpack.c.l.b16 %v197
      %v300 = vunpack.c.h.b16 %v197
      %v301 = vunpack.c.l.b16 %v198
      %v302 = vunpack.c.h.b16 %v198
      %v303 = vunpack.c.l.b16 %v199
      %v304 = vunpack.c.h.b16 %v199
      %v305 = vunpack.c.l.b16 %v200
      %v306 = vunpack.c.h.b16 %v200
      %v307 = vunpack.c.l.b16 %v201
      %v308 = vunpack.c.h.b16 %v201
      %v309 = vunpack.c.l.b16 %v202
      %v310 = vunpack.c.h.b16 %v202
      %v311 = vunpack.c.l.b16 %v203
      %v312 = vunpack.c.h.b16 %v203
      %v313 = vunpack.c.l.b16 %v204
      %v314 = vunpack.c.h.b16 %v204
      %v315 = vunpack.c.l.b16 %v205
      %v316 = vunpack.c.h.b16 %v205
      %v317 = vunpack.c.l.b16 %v206
      %v318 = vunpack.c.h.b16 %v206
      %v319 = vunpack.c.l.b16 %v207
      %v320 = vunpack.c.h.b16 %v207
      %v321 = vunpack.c.l.b16 %v208
      %v322 = vunpack.c.h.b16 %v208
      %v323 = vunpack.c.l.b16 %v209
      %v324 = vunpack.c.h.b16 %v209
      %v325 = vunpack.c.l.b16 %v210
      %v326 = vunpack.c.h.b16 %v210
      %v327 = vunpack.c.l.b16 %v211
      %v328 = vunpack.c.h.b16 %v211
      %v329 = vunpack.c.l.b16 %v212
      %v330 = vunpack.c.h.b16 %v212
      %v331 = vpack.c.b16 %v269, %v267
      %v332 = vpack.c.b16 %v270, %v268
      %v333 = vpack.c.b16 %v273, %v271
      %v334 = vpack.c.b16 %v274, %v272
      %v335 = vpack.c.b16 %v277, %v275
      %v336 = vpack.c.b16 %v278, %v276
      %v337 = vpack.c.b16 %v281, %v279
      %v338 = vpack.c.b16 %v282, %v280
      %v339 = vpack.c.b16 %v285, %v283
      %v340 = vpack.c.b16 %v286, %v284
      %v341 = vpack.c.b16 %v289, %v287
      %v342 = vpack.c.b16 %v290, %v288
      %v343 = vpack.c.b16 %v293, %v291
      %v344 = vpack.c.b16 %v294, %v292
      %v345 = vpack.c.b16 %v297, %v295
      %v346 = vpack.c.b16 %v298, %v296
      %v347 = vpack.c.b16 %v301, %v299
      %v348 = vpack.c.b16 %v302, %v300
      %v349 = vpack.c.b16 %v305, %v303
      %v350 = vpack.c.b16 %v306, %v304
      %v351 = vpack.c.b16 %v309, %v307
      %v352 = vpack.c.b16 %v310, %v308
      %v353 = vpack.c.b16 %v313, %v311
      %v354 = vpack.c.b16 %v314, %v312
      %v355 = vpack.c.b16 %v317, %v315
      %v356 = vpack.c.b16 %v318, %v316
      %v357 = vpack.c.b16 %v321, %v319
      %v358 = vpack.c.b16 %v322, %v320
      %v359 = vpack.c.b16 %v325, %v323
      %v360 = vpack.c.b16 %v326, %v324
      %v361 = vpack.c.b16 %v329, %v327
      %v362 = vpack.c.b16 %v330, %v328
      %395 = vmatprep.subr.bf16.mxu0 %v332
      %396 = vmatpush1.bf16.msra.mxu0 %v331
      %397 = vmatprep.subr.bf16.mxu0 %v334
      %398 = vmatpush1.bf16.msra.mxu0 %v333
      %399 = vmatprep.subr.bf16.mxu0 %v336
      %400 = vmatpush1.bf16.msra.mxu0 %v335
      %401 = vmatprep.subr.bf16.mxu0 %v338
      %402 = vmatpush1.bf16.msra.mxu0 %v337
      %403 = vmatprep.subr.bf16.mxu0 %v340
      %404 = vmatpush1.bf16.msra.mxu0 %v339
      %405 = vmatprep.subr.bf16.mxu0 %v342
      %406 = vmatpush1.bf16.msra.mxu0 %v341
      %407 = vmatprep.subr.bf16.mxu0 %v344
      %408 = vmatpush1.bf16.msra.mxu0 %v343
      %409 = vmatprep.subr.bf16.mxu0 %v346
      %410 = vmatpush1.bf16.msra.mxu0 %v345
      %411 = vmatprep.subr.bf16.mxu0 %v348
      %412 = vmatpush1.bf16.msra.mxu0 %v347
      %413 = vmatprep.subr.bf16.mxu0 %v350
      %414 = vmatpush1.bf16.msra.mxu0 %v349
      %415 = vmatprep.subr.bf16.mxu0 %v352
      %416 = vmatpush1.bf16.msra.mxu0 %v351
      %417 = vmatprep.subr.bf16.mxu0 %v354
      %418 = vmatpush1.bf16.msra.mxu0 %v353
      %419 = vmatprep.subr.bf16.mxu0 %v356
      %420 = vmatpush1.bf16.msra.mxu0 %v355
      %421 = vmatprep.subr.bf16.mxu0 %v358
      %422 = vmatpush1.bf16.msra.mxu0 %v357
      %423 = vmatprep.subr.bf16.mxu0 %v360
      %424 = vmatpush1.bf16.msra.mxu0 %v359
      %425 = vmatprep.subr.bf16.mxu0 %v362
      %426 = vmatpush1.bf16.msra.mxu0 %v361
      %427 = vmatprep.mubr.bf16.mxu0 %v232
      %428 = vmatmul.mubr.bf16.gmra.mrb[0].mxu0 %v231
      %v429 = vpop.f32.mrb[0].mxu0
      %v430 = vadd.f32 %v218, %v429
      %v431 = vpop.f32.mrb[0].mxu0
      %v432 = vadd.f32 %v222, %v431
      %v433 = vpop.f32.mrb[0].mxu0
      %v434 = vadd.f32 %v218, %v433
      %v435 = vpop.f32.mrb[0].mxu0
      %v436 = vadd.f32 %v222, %v435
      %437 = vdwg.mxu0
      %v438 = vpack.c.bf16 %v434, %v430
      %v439 = vpack.c.bf16 %v436, %v432
      %v442 = vunpack.c.l.b16 %v438
      %v443 = vunpack.c.l.b16 %v439
      %v444 = vunpack.c.h.b16 %v438
      %v445 = vunpack.c.h.b16 %v439
      %v446 = vpack.c.b16 %v443, %v442
      %v447 = vpack.c.b16 %v445, %v444
      %450 = vst [vmem:[%s177] sm:$0xff] %v446
      %451 = vst [vmem:[%s177 + $0x8] sm:$0xff] %v447
      %s452 = smul.u32 2, %s14
      %p453 = scmp.lt.s32.totalorder %s452, 3
      %s454 = scalar_select %p453, %s452, 3
      %s455 = smul.addr %s454, 2
      %s456 = smul.addr %s455, 4
      %s457 = scalar_lea.vmem %s3, %s456
      // Predicated region
      $region33: #{_lambda_.25} parent=31 // pred_check
        %p458 = pneg %p100
      $region34: #{_lambda_.25} parent=31 // pred_check_branch
        %460 = sbr.rel (%p458) target = $region36
      $region35: #{_lambda_.25} parent=31 // pred_region
        %s461 = smul.u32 2, %s14
      $region36: #{_lambda_.25} parent=31 // pred_fallthru
        _
    $region32: #{_lambda_.25} parent=5 // pred_fallthru
      _
    %p462 = scmp.le.s32.totalorder 2, %s9
    // Predicated region
    $region37: #{_lambda_.25} parent=5 // pred_check
      %p463 = pneg %p462
    $region38: #{_lambda_.25} parent=5 // pred_check_branch
      %465 = sbr.rel (%p463) target = $region40
    $region39: #{_lambda_.25} parent=5 // pred_region
      %s466 = ssub.s32 %s9, 2
      // Predicated region
      $region41: #{_lambda_.25} parent=39 // pred_check
        %p467 = pneg %p106
      $region42: #{_lambda_.25} parent=39 // pred_check_branch
        %469 = sbr.rel (%p467) target = $region44
      $region43: #{_lambda_.25} parent=39 // pred_region
        %s470 = smul.u32 2, %s15
        %p471 = scmp.lt.s32.totalorder %s470, 3
        %s472 = scalar_select %p471, %s470, 3
        %s473 = smul.addr %s472, 2
        %s474 = smul.addr %s473, 4
        %s475 = scalar_lea.vmem %s3, %s474
      $region44: #{_lambda_.25} parent=39 // pred_fallthru
        _
    $region40: #{_lambda_.25} parent=5 // pred_fallthru
      _
  $region6: #{_lambda_.25} parent=0 // loop_footer
    %s13 = sadd.s32 1, %s9
  $region7: #{_lambda_.25} parent=0 // loop_footer_branch
    %8 = sbr.rel target = $region3
  $region8: #{_lambda_.25} parent=0 // loop_exit
    _

// kernel: _lambda_.26
$region0: #{_lambda_.26}
  #allocation0 [shape = 'u32[]', space=smem, size = 0x4, offset = 0x4, fixed_abs, tag = 'smem constant byte address 0x4 - core index']
  #allocation1 [shape = 'u32[144,128]{1,0:T(1,128)}', space=vmem, size = 0x12000, scoped, tag = 'internal scratch']
  #allocation2 [shape = 'f32[16,256]{1,0:T(8,128)}', space=vmem, size = 0x4000, scoped, tag = 'scratch operand']
  %s0 = inlined_call_operand.vmem [shape: bf16[32,2304], index: 0, kind: input, shape index: {}]
  %s1 = inlined_call_operand.vmem [shape: bf16[2304,256], index: 1, kind: input, shape index: {}]
  %s2 = inlined_call_operand.vmem [shape: f32[1,256], index: 2, kind: input, shape index: {}]
  %s3 = inlined_call_operand.vmem [shape: bf16[32,256], index: 3, kind: output, shape index: {}]
  %s4 = sld [smem:[#allocation0]]
  $region91: #{_lambda_.26} parent=0
    _
  %s6 = ssub.s32 1, %s4
  %s7 = scalar_select 0, %s6, %s4
  $region1: #{_lambda_.26} parent=0
    #allocation3 [shape = 'u8[16384]{0}', space=vmem, size = 0x4000, scoped, tag = 'input window, operand 0']
    loop: start=0, step=1, limit=20
    $region2: #{_lambda_.26} parent=1 // loop_pre_header
      _
    $region3: #{_lambda_.26} parent=1 // loop_header
      %s9 = sphi 0, %s13
      %p10 = scmp.ge.s32.totalorder %s9, 20
      %s16 = sphi 0, %s28
      %s17 = sphi 0, %s24
      %s18 = sphi 0, %s16
      %s19 = sphi 0, %s17
      %s20 = sphi 0, %s18
      %s21 = sphi 0, %s19
      %s33 = sphi 0, %s35
      %s36 = sphi 0, %s33
      %s37 = sphi 0, %s36
      %s53 = sphi 0, %s37
      %s57 = sphi 0, %s57
      %s59 = sphi 0, %s57
      %s60 = sphi 0, %s59
      %s74 = sphi 0, %s60
      %s78 = sphi 0, %s78
      %s80 = sphi 0, %s78
      %s81 = sphi 0, %s80
      %s95 = sphi 0, %s81
      %s101 = sphi 0, %s103
      %s104 = sphi 0, %s101
      %s105 = sphi 0, %s104
      %s121 = sphi 0, %s105
    $region4: #{_lambda_.26} parent=1 // loop_header_branch
      %12 = sbr.rel (%p10) target = $region8
    $region5: #{_lambda_.26} parent=1 // loop_body
      %s14 = ssub.s32 %s9, 1
      %s15 = ssub.s32 %s9, 2
      %s22 = sadd.s32 1, %s17
      %p23 = scmp.ge.s32.totalorder %s22, 9
      %s24 = scalar_select %p23, 0, %s22
      %s25 = sadd.s32 1, %s16
      %s26 = scalar_select %p23, %s25, %s16
      %p27 = scmp.ge.s32.totalorder %s26, 2
      %s28 = scalar_select %p27, 0, %s26
      %s29 = ssub.s32 %s16, %s28
      %s30 = ssub.s32 %s17, %s24
      %s31 = sor.u32 %s29, %s30
      %p32 = scmp.eq.s32.totalorder %s31, 0
      %s34 = sadd.s32 %s33, 1
      %s35 = scalar_select %p32, %s33, %s34
      %p38 = pneg %p32
      %p39 = scmp.eq.s32.totalorder %s9, 17
      %p40 = por %p38, %p39
      %p41 = scmp.ne.s32.totalorder %s33, %s36
      %p42 = scmp.eq.s32.totalorder %s9, 0
      %p43 = por %p41, %p42
      %p44 = scmp.ne.s32.totalorder %s33, %s36
      %p45 = scmp.eq.s32.totalorder %s14, 17
      %p46 = por %p44, %p45
      %p47 = scmp.ne.s32.totalorder %s36, %s37
      %p48 = scmp.eq.s32.totalorder %s14, 0
      %p49 = por %p47, %p48
      %p50 = scmp.ne.s32.totalorder %s36, %s37
      %p51 = scmp.eq.s32.totalorder %s15, 17
      %p52 = por %p50, %p51
      %p54 = scmp.ne.s32.totalorder %s37, %s53
      %p55 = scmp.eq.s32.totalorder %s15, 0
      %p56 = por %p54, %p55
      %s58 = sadd.s32 %s57, 1
      %p61 = scmp.eq.s32.totalorder %s9, 17
      %p62 = scmp.ne.s32.totalorder %s57, %s59
      %p63 = scmp.eq.s32.totalorder %s9, 0
      %p64 = por %p62, %p63
      %p65 = scmp.ne.s32.totalorder %s57, %s59
      %p66 = scmp.eq.s32.totalorder %s14, 17
      %p67 = por %p65, %p66
      %p68 = scmp.ne.s32.totalorder %s59, %s60
      %p69 = scmp.eq.s32.totalorder %s14, 0
      %p70 = por %p68, %p69
      %p71 = scmp.ne.s32.totalorder %s59, %s60
      %p72 = scmp.eq.s32.totalorder %s15, 17
      %p73 = por %p71, %p72
      %p75 = scmp.ne.s32.totalorder %s60, %s74
      %p76 = scmp.eq.s32.totalorder %s15, 0
      %p77 = por %p75, %p76
      %s79 = sadd.s32 %s78, 1
      %p82 = scmp.eq.s32.totalorder %s9, 17
      %p83 = scmp.ne.s32.totalorder %s78, %s80
      %p84 = scmp.eq.s32.totalorder %s9, 0
      %p85 = por %p83, %p84
      %p86 = scmp.ne.s32.totalorder %s78, %s80
      %p87 = scmp.eq.s32.totalorder %s14, 17
      %p88 = por %p86, %p87
      %p89 = scmp.ne.s32.totalorder %s80, %s81
      %p90 = scmp.eq.s32.totalorder %s14, 0
      %p91 = por %p89, %p90
      %p92 = scmp.ne.s32.totalorder %s80, %s81
      %p93 = scmp.eq.s32.totalorder %s15, 17
      %p94 = por %p92, %p93
      %p96 = scmp.ne.s32.totalorder %s81, %s95
      %p97 = scmp.eq.s32.totalorder %s15, 0
      %p98 = por %p96, %p97
      %s99 = ssub.s32 %s16, %s28
      %p100 = scmp.eq.s32.totalorder %s99, 0
      %s102 = sadd.s32 %s101, 1
      %s103 = scalar_select %p100, %s101, %s102
      %p106 = pneg %p100
      %p107 = scmp.eq.s32.totalorder %s9, 17
      %p108 = por %p106, %p107
      %p109 = scmp.ne.s32.totalorder %s101, %s104
      %p110 = scmp.eq.s32.totalorder %s9, 0
      %p111 = por %p109, %p110
      %p112 = scmp.ne.s32.totalorder %s101, %s104
      %p113 = scmp.eq.s32.totalorder %s14, 17
      %p114 = por %p112, %p113
      %p115 = scmp.ne.s32.totalorder %s104, %s105
      %p116 = scmp.eq.s32.totalorder %s14, 0
      %p117 = por %p115, %p116
      %p118 = scmp.ne.s32.totalorder %s104, %s105
      %p119 = scmp.eq.s32.totalorder %s15, 17
      %p120 = por %p118, %p119
      %p122 = scmp.ne.s32.totalorder %s105, %s121
      %p123 = scmp.eq.s32.totalorder %s15, 0
      %p124 = por %p122, %p123
      %p125 = scmp.le.s32.totalorder 1, %s9
      %p126 = scmp.lt.s32.totalorder %s9, 19
      %p127 = pnand %p125, %p126
      %p128 = pneg %p127
      // Predicated region
      $region9: #{_lambda_.26} parent=5 // pred_check
        _
      $region10: #{_lambda_.26} parent=5 // pred_check_branch
        %130 = sbr.rel (%p127) target = $region12
      $region11: #{_lambda_.26} parent=5 // pred_region
        %s131 = ssub.s32 %s9, 1
        // Predicated region
        $region13: #{_lambda_.26} parent=11 // pred_check
          %p132 = pneg %p70
        $region14: #{_lambda_.26} parent=11 // pred_check_branch
          %134 = sbr.rel (%p132) target = $region16
        $region15: #{_lambda_.26} parent=11 // pred_region
          _
        $region16: #{_lambda_.26} parent=11 // pred_fallthru
          _
        // Predicated region
        $region17: #{_lambda_.26} parent=11 // pred_check
          %p135 = pneg %p91
        $region18: #{_lambda_.26} parent=11 // pred_check_branch
          %137 = sbr.rel (%p135) target = $region20
        $region19: #{_lambda_.26} parent=11 // pred_region
          _
        $region20: #{_lambda_.26} parent=11 // pred_fallthru
          _
      $region12: #{_lambda_.26} parent=5 // pred_fallthru
        _
      %p138 = scmp.lt.s32.totalorder %s9, 18
      // Predicated region
      $region21: #{_lambda_.26} parent=5 // pred_check
        %p139 = pneg %p138
      $region22: #{_lambda_.26} parent=5 // pred_check_branch
        %141 = sbr.rel (%p139) target = $region24
      $region23: #{_lambda_.26} parent=5 // pred_region
        // Predicated region
        $region25: #{_lambda_.26} parent=23 // pred_check
          %p142 = pneg %p43
        $region26: #{_lambda_.26} parent=23 // pred_check_branch
          %144 = sbr.rel (%p142) target = $region28
        $region27: #{_lambda_.26} parent=23 // pred_region
          %s145 = sand.u32 %s33, 1
          %s146 = sand.u32 %s33, 1
          %s147 = smul.addr %s146, 16
          %s148 = scalar_lea.vmem [#allocation3], %s147
          %s149 = smul.u32 2, %s16
          %s150 = smul.u32 2, %s17
          %s151 = smul.addr %s149, 18
          %s152 = sadd.s32 %s150, %s151
          %s153 = smul.addr %s152, 4
          %s154 = scalar_lea.vmem %s0, %s153
          // Predicated region
          $region29: #{_lambda_.26} parent=27 // pred_check
            _
          $region30: #{_lambda_.26} parent=27 // pred_check_branch
            %156 = sbr.rel (0) target = $region32
          $region31: #{_lambda_.26} parent=27 // pred_region
            // Predicated region
            $region33: #{_lambda_.26} parent=31 // pred_check
              _
            $region34: #{_lambda_.26} parent=31 // pred_check_branch
              %158 = sbr.rel (0) target = $region36
            $region35: #{_lambda_.26} parent=31 // pred_region
              // Predicated region
              $region48: #{_lambda_.26} parent=35 // pred_check
                _
              $region49: #{_lambda_.26} parent=35 // pred_check_branch
                %175 = sbr.rel (0) target = $region51
              $region50: #{_lambda_.26} parent=35 // pred_region
                loop: start=0, step=1, limit=1
                $region52: #{_lambda_.26} parent=50 // loop_pre_header
                  _
                $region53: #{_lambda_.26} parent=50 // loop_header
                  %s177 = sphi 0, %s181
                  %p178 = scmp.ge.s32.totalorder %s177, 1
                  %s182 = sphi %s154, %s154
                  %s183 = sphi %s148, %s148
                $region54: #{_lambda_.26} parent=50 // loop_header_branch
                  %180 = sbr.rel (%p178) target = $region58
                $region55: #{_lambda_.26} parent=50 // loop_body
                  %v184 = vld [vmem:[%s182] sm:$0xff]
                  %185 = vst [vmem:[%s183] sm:$0xff] %v184
                  %v186 = vld [vmem:[%s182 + $0x48] sm:$0xff]
                  %187 = vst [vmem:[%s183 + $0x8] sm:$0xff] %v186
                $region56: #{_lambda_.26} parent=50 // loop_footer
                  %s181 = sadd.s32 1, %s177
                $region57: #{_lambda_.26} parent=50 // loop_footer_branch
                  %176 = sbr.rel target = $region53
                $region58: #{_lambda_.26} parent=50 // loop_exit
                  _
              $region51: #{_lambda_.26} parent=35 // pred_fallthru
                _
              // Predicated region
              $region59: #{_lambda_.26} parent=35 // pred_check
                _
              $region60: #{_lambda_.26} parent=35 // pred_check_branch
                %189 = sbr.rel target = $region62
              $region61: #{_lambda_.26} parent=35 // pred_region
                _
              $region62: #{_lambda_.26} parent=35 // pred_fallthru
                _
            $region36: #{_lambda_.26} parent=31 // pred_fallthru
              _
            // Predicated region
            $region37: #{_lambda_.26} parent=31 // pred_check
              _
            $region38: #{_lambda_.26} parent=31 // pred_check_branch
              %160 = sbr.rel target = $region40
            $region39: #{_lambda_.26} parent=31 // pred_region
              loop: start=0, step=1, limit=1
              $region41: #{_lambda_.26} parent=39 // loop_pre_header
                _
              $region42: #{_lambda_.26} parent=39 // loop_header
                %s163 = sphi 0, %s167
                %p164 = scmp.ge.s32.totalorder %s163, 1
                %s168 = sphi %s154, %s154
                %s169 = sphi %s148, %s148
              $region43: #{_lambda_.26} parent=39 // loop_header_branch
                %166 = sbr.rel (%p164) target = $region47
              $region44: #{_lambda_.26} parent=39 // loop_body
                %v170 = vld [vmem:[%s168] sm:$0xff]
                %171 = vst [vmem:[%s169] sm:$0xff] %v170
                %v172 = vld [vmem:[%s168 + $0x48] sm:$0xff]
                %173 = vst [vmem:[%s169 + $0x8] sm:$0xff] %v172
              $region45: #{_lambda_.26} parent=39 // loop_footer
                %s167 = sadd.s32 1, %s163
              $region46: #{_lambda_.26} parent=39 // loop_footer_branch
                %162 = sbr.rel target = $region42
              $region47: #{_lambda_.26} parent=39 // loop_exit
                _
            $region40: #{_lambda_.26} parent=31 // pred_fallthru
              _
          $region32: #{_lambda_.26} parent=27 // pred_fallthru
            _
          %190 = vnop
        $region28: #{_lambda_.26} parent=23 // pred_fallthru
          _
      $region24: #{_lambda_.26} parent=5 // pred_fallthru
        _
      %p191 = scmp.le.s32.totalorder 1, %s9
      %p192 = scmp.lt.s32.totalorder %s9, 19
      %p193 = pnand %p191, %p192
      %p194 = pneg %p193
      // Predicated region
      $region63: #{_lambda_.26} parent=5 // pred_check
        _
      $region64: #{_lambda_.26} parent=5 // pred_check_branch
        %196 = sbr.rel (%p193) target = $region66
      $region65: #{_lambda_.26} parent=5 // pred_region
        %s197 = ssub.s32 %s9, 1
        %s198 = sand.u32 %s36, 1
        %s199 = sand.u32 %s36, 1
        %s200 = smul.addr %s199, 16
        %s201 = scalar_lea.vmem [#allocation3], %s200
        // Predicated region
        $region67: #{_lambda_.26} parent=65 // pred_check
          %p202 = pneg %p49
        $region68: #{_lambda_.26} parent=65 // pred_check_branch
          %204 = sbr.rel (%p202) target = $region70
        $region69: #{_lambda_.26} parent=65 // pred_region
          _
        $region70: #{_lambda_.26} parent=65 // pred_fallthru
          _
        %s205 = sand.u32 %s36, 1
        %s206 = sand.u32 %s36, 1
        %s207 = smul.addr %s206, 16
        %s208 = scalar_lea.vmem [#allocation3], %s207
        %p209 = pneg %p49
        %p210 = pneg %p46
        %p211 = pneg %p70
        %p212 = pneg %p67
        %p213 = pneg %p91
        %p214 = pneg %p88
        %p215 = pneg %p117
        %p216 = pneg %p114
        %s217 = smul.u32 2, %s18
        %p218 = scmp.lt.s32.totalorder %s217, 3
        %s219 = scalar_select %p218, %s217, 3
        %s220 = smul.addr %s219, 2
        %s221 = smul.addr %s220, 4
        %s222 = scalar_lea.vmem %s3, %s221
        %s223 = smul.u32 2, %s18
        %s224 = smul.u32 2, %s19
        %s225 = smul.u32 2, %s18
        %p226 = scmp.lt.s32.totalorder %s225, 3
        %s227 = scalar_select %p226, %s225, 3
        %s228 = smul.addr %s227, 2
        %s229 = smul.addr %s228, 4
        %s230 = scalar_lea.vmem %s3, %s229
        %s231 = smul.u32 2, %s18
        %p232 = scmp.eq.s32.totalorder %s19, 0
        // Predicated region
        $region71: #{_lambda_.26} parent=65 // pred_check
          %p233 = pneg %p232
        $region72: #{_lambda_.26} parent=65 // pred_check_branch
          %235 = sbr.rel (%p233) target = $region74
        $region73: #{_lambda_.26} parent=65 // pred_region
          %v236 = vld [vmem:[%s2] sm:$0x3]
          %v238 = vlaneseq
          %v239 = vshrl.u32 %v238, 7
          %v240 = vsub.s32 0, %v239
          %v241 = vrot.slane %v236, %v240
          %v242 = vlaneseq
          %v243 = vshrl.u32 %v242, 7
          %v244 = vsub.s32 1, %v243
          %v245 = vrot.slane %v236, %v244
          %248 = vst [vmem:[#allocation2] sm:$0xff] %v241
          %249 = vst [vmem:[#allocation2 + $0x8] sm:$0xff] %v245
          %250 = vst [vmem:[#allocation2 + $0x10] sm:$0xff] %v241
          %251 = vst [vmem:[#allocation2 + $0x18] sm:$0xff] %v245
        $region74: #{_lambda_.26} parent=65 // pred_fallthru
          _
        %s252 = smul.u32 %s19, 256
        %v253 = vld [vmem:[#allocation2] sm:$0xff]
        %v254 = vld [vmem:[#allocation2 + $0x8] sm:$0xff]
        %v255 = vld [vmem:[#allocation2 + $0x10] sm:$0xff]
        %v256 = vld [vmem:[#allocation2 + $0x18] sm:$0xff]
        %v257 = vld [vmem:[%s201] sm:$0xff]
        %v258 = vld [vmem:[%s201 + $0x8] sm:$0xff]
        %s259 = sshra.s32 %s252, 3
        %s260 = sand.u32 %s252, 7
        %s261 = smul.u32 %s259, 2
        %s262 = smul.addr %s261, 4
        %s263 = scalar_lea.vmem %s1, %s262
        %v264 = vld [vmem:[%s263] sm:$0xff]
        %v265 = vld [vmem:[%s263 + $0x8] sm:$0xff]
        %v266 = vld [vmem:[%s263 + $0x10] sm:$0xff]
        %v267 = vld [vmem:[%s263 + $0x18] sm:$0xff]
        %v268 = vld [vmem:[%s263 + $0x20] sm:$0xff]
        %v269 = vld [vmem:[%s263 + $0x28] sm:$0xff]
        %v270 = vld [vmem:[%s263 + $0x30] sm:$0xff]
        %v271 = vld [vmem:[%s263 + $0x38] sm:$0xff]
        %v272 = vld [vmem:[%s263 + $0x40] sm:$0xff]
        %v273 = vld [vmem:[%s263 + $0x48] sm:$0xff]
        %v274 = vld [vmem:[%s263 + $0x50] sm:$0xff]
        %v275 = vld [vmem:[%s263 + $0x58] sm:$0xff]
        %v276 = vld [vmem:[%s263 + $0x60] sm:$0xff]
        %v277 = vld [vmem:[%s263 + $0x68] sm:$0xff]
        %v278 = vld [vmem:[%s263 + $0x70] sm:$0xff]
        %v279 = vld [vmem:[%s263 + $0x78] sm:$0xff]
        %v280 = vld [vmem:[%s263 + $0x80] sm:$0xff]
        %v281 = vld [vmem:[%s263 + $0x88] sm:$0xff]
        %v282 = vld [vmem:[%s263 + $0x90] sm:$0xff]
        %v283 = vld [vmem:[%s263 + $0x98] sm:$0xff]
        %v284 = vld [vmem:[%s263 + $0xa0] sm:$0xff]
        %v285 = vld [vmem:[%s263 + $0xa8] sm:$0xff]
        %v286 = vld [vmem:[%s263 + $0xb0] sm:$0xff]
        %v287 = vld [vmem:[%s263 + $0xb8] sm:$0xff]
        %v288 = vld [vmem:[%s263 + $0xc0] sm:$0xff]
        %v289 = vld [vmem:[%s263 + $0xc8] sm:$0xff]
        %v290 = vld [vmem:[%s263 + $0xd0] sm:$0xff]
        %v291 = vld [vmem:[%s263 + $0xd8] sm:$0xff]
        %v292 = vld [vmem:[%s263 + $0xe0] sm:$0xff]
        %v293 = vld [vmem:[%s263 + $0xe8] sm:$0xff]
        %v294 = vld [vmem:[%s263 + $0xf0] sm:$0xff]
        %v295 = vld [vmem:[%s263 + $0xf8] sm:$0xff]
        %v298 = vunpack.c.l.b16 %v257
        %v299 = vunpack.c.h.b16 %v257
        %v300 = vunpack.c.l.b16 %v258
        %v301 = vunpack.c.h.b16 %v258
        %v302 = vpack.c.b16 %v300, %v298
        %v303 = vpack.c.b16 %v301, %v299
        %v338 = vunpack.c.l.b16 %v264
        %v339 = vunpack.c.h.b16 %v264
        %v340 = vunpack.c.l.b16 %v265
        %v341 = vunpack.c.h.b16 %v265
        %v342 = vunpack.c.l.b16 %v266
        %v343 = vunpack.c.h.b16 %v266
        %v344 = vunpack.c.l.b16 %v267
        %v345 = vunpack.c.h.b16 %v267
        %v346 = vunpack.c.l.b16 %v268
        %v347 = vunpack.c.h.b16 %v268
        %v348 = vunpack.c.l.b16 %v269
        %v349 = vunpack.c.h.b16 %v269
        %v350 = vunpack.c.l.b16 %v270
        %v351 = vunpack.c.h.b16 %v270
        %v352 = vunpack.c.l.b16 %v271
        %v353 = vunpack.c.h.b16 %v271
        %v354 = vunpack.c.l.b16 %v272
        %v355 = vunpack.c.h.b16 %v272
        %v356 = vunpack.c.l.b16 %v273
        %v357 = vunpack.c.h.b16 %v273
        %v358 = vunpack.c.l.b16 %v274
        %v359 = vunpack.c.h.b16 %v274
        %v360 = vunpack.c.l.b16 %v275
        %v361 = vunpack.c.h.b16 %v275
        %v362 = vunpack.c.l.b16 %v276
        %v363 = vunpack.c.h.b16 %v276
        %v364 = vunpack.c.l.b16 %v277
        %v365 = vunpack.c.h.b16 %v277
        %v366 = vunpack.c.l.b16 %v278
        %v367 = vunpack.c.h.b16 %v278
        %v368 = vunpack.c.l.b16 %v279
        %v369 = vunpack.c.h.b16 %v279
        %v370 = vunpack.c.l.b16 %v280
        %v371 = vunpack.c.h.b16 %v280
        %v372 = vunpack.c.l.b16 %v281
        %v373 = vunpack.c.h.b16 %v281
        %v374 = vunpack.c.l.b16 %v282
        %v375 = vunpack.c.h.b16 %v282
        %v376 = vunpack.c.l.b16 %v283
        %v377 = vunpack.c.h.b16 %v283
        %v378 = vunpack.c.l.b16 %v284
        %v379 = vunpack.c.h.b16 %v284
        %v380 = vunpack.c.l.b16 %v285
        %v381 = vunpack.c.h.b16 %v285
        %v382 = vunpack.c.l.b16 %v286
        %v383 = vunpack.c.h.b16 %v286
        %v384 = vunpack.c.l.b16 %v287
        %v385 = vunpack.c.h.b16 %v287
        %v386 = vunpack.c.l.b16 %v288
        %v387 = vunpack.c.h.b16 %v288
        %v388 = vunpack.c.l.b16 %v289
        %v389 = vunpack.c.h.b16 %v289
        %v390 = vunpack.c.l.b16 %v290
        %v391 = vunpack.c.h.b16 %v290
        %v392 = vunpack.c.l.b16 %v291
        %v393 = vunpack.c.h.b16 %v291
        %v394 = vunpack.c.l.b16 %v292
        %v395 = vunpack.c.h.b16 %v292
        %v396 = vunpack.c.l.b16 %v293
        %v397 = vunpack.c.h.b16 %v293
        %v398 = vunpack.c.l.b16 %v294
        %v399 = vunpack.c.h.b16 %v294
        %v400 = vunpack.c.l.b16 %v295
        %v401 = vunpack.c.h.b16 %v295
        %v402 = vpack.c.b16 %v340, %v338
        %v403 = vpack.c.b16 %v341, %v339
        %v404 = vpack.c.b16 %v344, %v342
        %v405 = vpack.c.b16 %v345, %v343
        %v406 = vpack.c.b16 %v348, %v346
        %v407 = vpack.c.b16 %v349, %v347
        %v408 = vpack.c.b16 %v352, %v350
        %v409 = vpack.c.b16 %v353, %v351
        %v410 = vpack.c.b16 %v356, %v354
        %v411 = vpack.c.b16 %v357, %v355
        %v412 = vpack.c.b16 %v360, %v358
        %v413 = vpack.c.b16 %v361, %v359
        %v414 = vpack.c.b16 %v364, %v362
        %v415 = vpack.c.b16 %v365, %v363
        %v416 = vpack.c.b16 %v368, %v366
        %v417 = vpack.c.b16 %v369, %v367
        %v418 = vpack.c.b16 %v372, %v370
        %v419 = vpack.c.b16 %v373, %v371
        %v420 = vpack.c.b16 %v376, %v374
        %v421 = vpack.c.b16 %v377, %v375
        %v422 = vpack.c.b16 %v380, %v378
        %v423 = vpack.c.b16 %v381, %v379
        %v424 = vpack.c.b16 %v384, %v382
        %v425 = vpack.c.b16 %v385, %v383
        %v426 = vpack.c.b16 %v388, %v386
        %v427 = vpack.c.b16 %v389, %v387
        %v428 = vpack.c.b16 %v392, %v390
        %v429 = vpack.c.b16 %v393, %v391
        %v430 = vpack.c.b16 %v396, %v394
        %v431 = vpack.c.b16 %v397, %v395
        %v432 = vpack.c.b16 %v400, %v398
        %v433 = vpack.c.b16 %v401, %v399
        %466 = vmatprep.subr.bf16.mxu0 %v403
        %467 = vmatpush1.bf16.msra.mxu0 %v402
        %468 = vmatprep.subr.bf16.mxu0 %v405
        %469 = vmatpush1.bf16.msra.mxu0 %v404
        %470 = vmatprep.subr.bf16.mxu0 %v407
        %471 = vmatpush1.bf16.msra.mxu0 %v406
        %472 = vmatprep.subr.bf16.mxu0 %v409
        %473 = vmatpush1.bf16.msra.mxu0 %v408
        %474 = vmatprep.subr.bf16.mxu0 %v411
        %475 = vmatpush1.bf16.msra.mxu0 %v410
        %476 = vmatprep.subr.bf16.mxu0 %v413
        %477 = vmatpush1.bf16.msra.mxu0 %v412
        %478 = vmatprep.subr.bf16.mxu0 %v415
        %479 = vmatpush1.bf16.msra.mxu0 %v414
        %480 = vmatprep.subr.bf16.mxu0 %v417
        %481 = vmatpush1.bf16.msra.mxu0 %v416
        %482 = vmatprep.subr.bf16.mxu0 %v419
        %483 = vmatpush1.bf16.msra.mxu0 %v418
        %484 = vmatprep.subr.bf16.mxu0 %v421
        %485 = vmatpush1.bf16.msra.mxu0 %v420
        %486 = vmatprep.subr.bf16.mxu0 %v423
        %487 = vmatpush1.bf16.msra.mxu0 %v422
        %488 = vmatprep.subr.bf16.mxu0 %v425
        %489 = vmatpush1.bf16.msra.mxu0 %v424
        %490 = vmatprep.subr.bf16.mxu0 %v427
        %491 = vmatpush1.bf16.msra.mxu0 %v426
        %492 = vmatprep.subr.bf16.mxu0 %v429
        %493 = vmatpush1.bf16.msra.mxu0 %v428
        %494 = vmatprep.subr.bf16.mxu0 %v431
        %495 = vmatpush1.bf16.msra.mxu0 %v430
        %496 = vmatprep.subr.bf16.mxu0 %v433
        %497 = vmatpush1.bf16.msra.mxu0 %v432
        %498 = vmatprep.mubr.bf16.mxu0 %v303
        %499 = vmatmul.mubr.bf16.gmra.mrb[0].mxu0 %v302
        %v500 = vpop.f32.mrb[0].mxu0
        %v501 = vadd.f32 0.0, %v500
        %v502 = vpop.f32.mrb[0].mxu0
        %v503 = vadd.f32 0.0, %v502
        %v504 = vpop.f32.mrb[0].mxu0
        %v505 = vadd.f32 0.0, %v504
        %v506 = vpop.f32.mrb[0].mxu0
        %v507 = vadd.f32 0.0, %v506
        %508 = vdwg.mxu0
        %v509 = vadd.f32 %v253, %v501
        %v510 = vadd.f32 %v254, %v503
        %v511 = vadd.f32 %v255, %v505
        %v512 = vadd.f32 %v256, %v507
        %513 = vst [vmem:[#allocation2] sm:$0xff] %v509
        %514 = vst [vmem:[#allocation2 + $0x8] sm:$0xff] %v510
        %515 = vst [vmem:[#allocation2 + $0x10] sm:$0xff] %v511
        %516 = vst [vmem:[#allocation2 + $0x18] sm:$0xff] %v512
        %p517 = scmp.eq.s32.totalorder %s19, 8
        // Predicated region
        $region75: #{_lambda_.26} parent=65 // pred_check
          %p518 = pneg %p517
        $region76: #{_lambda_.26} parent=65 // pred_check_branch
          %520 = sbr.rel (%p518) target = $region78
        $region77: #{_lambda_.26} parent=65 // pred_region
          %v521 = vld [vmem:[#allocation2] sm:$0xff]
          %v522 = vld [vmem:[#allocation2 + $0x8] sm:$0xff]
          %v523 = vld [vmem:[#allocation2 + $0x10] sm:$0xff]
          %v524 = vld [vmem:[#allocation2 + $0x18] sm:$0xff]
          %v525 = vpack.c.bf16 %v523, %v521
          %v526 = vpack.c.bf16 %v524, %v522
          %v529 = vunpack.c.l.b16 %v525
          %v530 = vunpack.c.l.b16 %v526
          %v531 = vunpack.c.h.b16 %v525
          %v532 = vunpack.c.h.b16 %v526
          %v533 = vpack.c.b16 %v530, %v529
          %v534 = vpack.c.b16 %v532, %v531
          %537 = vst [vmem:[%s230] sm:$0xff] %v533
          %538 = vst [vmem:[%s230 + $0x8] sm:$0xff] %v534
        $region78: #{_lambda_.26} parent=65 // pred_fallthru
          _
        %s539 = smul.u32 2, %s18
        %p540 = scmp.lt.s32.totalorder %s539, 3
        %s541 = scalar_select %p540, %s539, 3
        %s542 = smul.addr %s541, 2
        %s543 = smul.addr %s542, 4
        %s544 = scalar_lea.vmem %s3, %s543
        // Predicated region
        $region79: #{_lambda_.26} parent=65 // pred_check
          %p545 = pneg %p114
        $region80: #{_lambda_.26} parent=65 // pred_check_branch
          %547 = sbr.rel (%p545) target = $region82
        $region81: #{_lambda_.26} parent=65 // pred_region
          %s548 = smul.u32 2, %s18
        $region82: #{_lambda_.26} parent=65 // pred_fallthru
          _
      $region66: #{_lambda_.26} parent=5 // pred_fallthru
        _
      %p549 = scmp.le.s32.totalorder 2, %s9
      // Predicated region
      $region83: #{_lambda_.26} parent=5 // pred_check
        %p550 = pneg %p549
      $region84: #{_lambda_.26} parent=5 // pred_check_branch
        %552 = sbr.rel (%p550) target = $region86
      $region85: #{_lambda_.26} parent=5 // pred_region
        %s553 = ssub.s32 %s9, 2
        // Predicated region
        $region87: #{_lambda_.26} parent=85 // pred_check
          %p554 = pneg %p120
        $region88: #{_lambda_.26} parent=85 // pred_check_branch
          %556 = sbr.rel (%p554) target = $region90
        $region89: #{_lambda_.26} parent=85 // pred_region
          %s557 = smul.u32 2, %s20
          %p558 = scmp.lt.s32.totalorder %s557, 3
          %s559 = scalar_select %p558, %s557, 3
          %s560 = smul.addr %s559, 2
          %s561 = smul.addr %s560, 4
          %s562 = scalar_lea.vmem %s3, %s561
        $region90: #{_lambda_.26} parent=85 // pred_fallthru
          _
      $region86: #{_lambda_.26} parent=5 // pred_fallthru
        _
    $region6: #{_lambda_.26} parent=1 // loop_footer
      %s13 = sadd.s32 1, %s9
    $region7: #{_lambda_.26} parent=1 // loop_footer_branch
      %8 = sbr.rel target = $region3
    $region8: #{_lambda_.26} parent=1 // loop_exit
      _

// kernel: _lambda_.27
$region0: #{_lambda_.27}
  #allocation0 [shape = 'u32[]', space=smem, size = 0x4, offset = 0x4, fixed_abs, tag = 'smem constant byte address 0x4 - core index']
  #allocation1 [shape = 'u32[144,128]{1,0:T(1,128)}', space=vmem, size = 0x12000, scoped, tag = 'internal scratch']
  %s0 = inlined_call_operand.vmem [shape: bf16[32,256], index: 0, kind: input, shape index: {}]
  %s1 = inlined_call_operand.vmem [shape: bf16[256,128], index: 1, kind: input, shape index: {}]
  %s2 = inlined_call_operand.vmem [shape: f32[1,128], index: 2, kind: input, shape index: {}]
  %s3 = inlined_call_operand.vmem [shape: bf16[32,128], index: 3, kind: output, shape index: {}]
  %s4 = sld [smem:[#allocation0]]
  $region45: #{_lambda_.27} parent=0
    _
  %s6 = ssub.s32 1, %s4
  %s7 = scalar_select 0, %s6, %s4
  loop: start=0, step=1, limit=4
  $region2: #{_lambda_.27} parent=0 // loop_pre_header
    _
  $region3: #{_lambda_.27} parent=0 // loop_header
    %s9 = sphi 0, %s13
    %p10 = scmp.ge.s32.totalorder %s9, 4
    %s19 = sphi 0, %s21
    %s22 = sphi 0, %s19
    %s23 = sphi 0, %s22
    %s39 = sphi 0, %s23
    %s43 = sphi 0, %s43
    %s45 = sphi 0, %s43
    %s46 = sphi 0, %s45
    %s60 = sphi 0, %s46
    %s64 = sphi 0, %s64
    %s66 = sphi 0, %s64
    %s67 = sphi 0, %s66
    %s81 = sphi 0, %s67
    %s87 = sphi 0, %s89
    %s90 = sphi 0, %s87
    %s91 = sphi 0, %s90
    %s107 = sphi 0, %s91
  $region4: #{_lambda_.27} parent=0 // loop_header_branch
    %12 = sbr.rel (%p10) target = $region8
  $region5: #{_lambda_.27} parent=0 // loop_body
    %s14 = ssub.s32 %s9, 1
    %s15 = ssub.s32 %s9, 2
    %s16 = sadd.s32 %s9, 1
    %s17 = ssub.s32 %s9, %s16
    %p18 = scmp.eq.s32.totalorder %s17, 0
    %s20 = sadd.s32 %s19, 1
    %s21 = scalar_select %p18, %s19, %s20
    %p24 = pneg %p18
    %p25 = scmp.eq.s32.totalorder %s9, 1
    %p26 = por %p24, %p25
    %p27 = scmp.ne.s32.totalorder %s19, %s22
    %p28 = scmp.eq.s32.totalorder %s9, 0
    %p29 = por %p27, %p28
    %p30 = scmp.ne.s32.totalorder %s19, %s22
    %p31 = scmp.eq.s32.totalorder %s14, 1
    %p32 = por %p30, %p31
    %p33 = scmp.ne.s32.totalorder %s22, %s23
    %p34 = scmp.eq.s32.totalorder %s14, 0
    %p35 = por %p33, %p34
    %p36 = scmp.ne.s32.totalorder %s22, %s23
    %p37 = scmp.eq.s32.totalorder %s15, 1
    %p38 = por %p36, %p37
    %p40 = scmp.ne.s32.totalorder %s23, %s39
    %p41 = scmp.eq.s32.totalorder %s15, 0
    %p42 = por %p40, %p41
    %s44 = sadd.s32 %s43, 1
    %p47 = scmp.eq.s32.totalorder %s9, 1
    %p48 = scmp.ne.s32.totalorder %s43, %s45
    %p49 = scmp.eq.s32.totalorder %s9, 0
    %p50 = por %p48, %p49
    %p51 = scmp.ne.s32.totalorder %s43, %s45
    %p52 = scmp.eq.s32.totalorder %s14, 1
    %p53 = por %p51, %p52
    %p54 = scmp.ne.s32.totalorder %s45, %s46
    %p55 = scmp.eq.s32.totalorder %s14, 0
    %p56 = por %p54, %p55
    %p57 = scmp.ne.s32.totalorder %s45, %s46
    %p58 = scmp.eq.s32.totalorder %s15, 1
    %p59 = por %p57, %p58
    %p61 = scmp.ne.s32.totalorder %s46, %s60
    %p62 = scmp.eq.s32.totalorder %s15, 0
    %p63 = por %p61, %p62
    %s65 = sadd.s32 %s64, 1
    %p68 = scmp.eq.s32.totalorder %s9, 1
    %p69 = scmp.ne.s32.totalorder %s64, %s66
    %p70 = scmp.eq.s32.totalorder %s9, 0
    %p71 = por %p69, %p70
    %p72 = scmp.ne.s32.totalorder %s64, %s66
    %p73 = scmp.eq.s32.totalorder %s14, 1
    %p74 = por %p72, %p73
    %p75 = scmp.ne.s32.totalorder %s66, %s67
    %p76 = scmp.eq.s32.totalorder %s14, 0
    %p77 = por %p75, %p76
    %p78 = scmp.ne.s32.totalorder %s66, %s67
    %p79 = scmp.eq.s32.totalorder %s15, 1
    %p80 = por %p78, %p79
    %p82 = scmp.ne.s32.totalorder %s67, %s81
    %p83 = scmp.eq.s32.totalorder %s15, 0
    %p84 = por %p82, %p83
    %s85 = ssub.s32 %s9, %s16
    %p86 = scmp.eq.s32.totalorder %s85, 0
    %s88 = sadd.s32 %s87, 1
    %s89 = scalar_select %p86, %s87, %s88
    %p92 = pneg %p86
    %p93 = scmp.eq.s32.totalorder %s9, 1
    %p94 = por %p92, %p93
    %p95 = scmp.ne.s32.totalorder %s87, %s90
    %p96 = scmp.eq.s32.totalorder %s9, 0
    %p97 = por %p95, %p96
    %p98 = scmp.ne.s32.totalorder %s87, %s90
    %p99 = scmp.eq.s32.totalorder %s14, 1
    %p100 = por %p98, %p99
    %p101 = scmp.ne.s32.totalorder %s90, %s91
    %p102 = scmp.eq.s32.totalorder %s14, 0
    %p103 = por %p101, %p102
    %p104 = scmp.ne.s32.totalorder %s90, %s91
    %p105 = scmp.eq.s32.totalorder %s15, 1
    %p106 = por %p104, %p105
    %p108 = scmp.ne.s32.totalorder %s91, %s107
    %p109 = scmp.eq.s32.totalorder %s15, 0
    %p110 = por %p108, %p109
    %p111 = scmp.le.s32.totalorder 1, %s9
    %p112 = scmp.lt.s32.totalorder %s9, 3
    %p113 = pnand %p111, %p112
    %p114 = pneg %p113
    // Predicated region
    $region9: #{_lambda_.27} parent=5 // pred_check
      _
    $region10: #{_lambda_.27} parent=5 // pred_check_branch
      %116 = sbr.rel (%p113) target = $region12
    $region11: #{_lambda_.27} parent=5 // pred_region
      %s117 = ssub.s32 %s9, 1
      // Predicated region
      $region13: #{_lambda_.27} parent=11 // pred_check
        %p118 = pneg %p56
      $region14: #{_lambda_.27} parent=11 // pred_check_branch
        %120 = sbr.rel (%p118) target = $region16
      $region15: #{_lambda_.27} parent=11 // pred_region
        _
      $region16: #{_lambda_.27} parent=11 // pred_fallthru
        _
      // Predicated region
      $region17: #{_lambda_.27} parent=11 // pred_check
        %p121 = pneg %p77
      $region18: #{_lambda_.27} parent=11 // pred_check_branch
        %123 = sbr.rel (%p121) target = $region20
      $region19: #{_lambda_.27} parent=11 // pred_region
        _
      $region20: #{_lambda_.27} parent=11 // pred_fallthru
        _
    $region12: #{_lambda_.27} parent=5 // pred_fallthru
      _
    %p124 = scmp.lt.s32.totalorder %s9, 2
    // Predicated region
    $region21: #{_lambda_.27} parent=5 // pred_check
      %p125 = pneg %p124
    $region22: #{_lambda_.27} parent=5 // pred_check_branch
      %127 = sbr.rel (%p125) target = $region24
    $region23: #{_lambda_.27} parent=5 // pred_region
      // Predicated region
      $region25: #{_lambda_.27} parent=23 // pred_check
        %p128 = pneg %p29
      $region26: #{_lambda_.27} parent=23 // pred_check_branch
        %130 = sbr.rel (%p128) target = $region28
      $region27: #{_lambda_.27} parent=23 // pred_region
        %s131 = smul.u32 2, %s9
        %p132 = scmp.lt.s32.totalorder %s131, 3
        %s133 = scalar_select %p132, %s131, 3
        %s134 = smul.addr %s133, 2
        %s135 = smul.addr %s134, 4
        %s136 = scalar_lea.vmem %s0, %s135
        %s137 = smul.u32 2, %s9
      $region28: #{_lambda_.27} parent=23 // pred_fallthru
        _
    $region24: #{_lambda_.27} parent=5 // pred_fallthru
      _
    %p138 = scmp.le.s32.totalorder 1, %s9
    %p139 = scmp.lt.s32.totalorder %s9, 3
    %p140 = pnand %p138, %p139
    %p141 = pneg %p140
    // Predicated region
    $region29: #{_lambda_.27} parent=5 // pred_check
      _
    $region30: #{_lambda_.27} parent=5 // pred_check_branch
      %143 = sbr.rel (%p140) target = $region32
    $region31: #{_lambda_.27} parent=5 // pred_region
      %s144 = ssub.s32 %s9, 1
      %s145 = smul.u32 2, %s14
      %p146 = scmp.lt.s32.totalorder %s145, 3
      %s147 = scalar_select %p146, %s145, 3
      %s148 = smul.addr %s147, 2
      %s149 = smul.addr %s148, 4
      %s150 = scalar_lea.vmem %s0, %s149
      %p151 = pneg %p35
      %p152 = pneg %p32
      %p153 = pneg %p56
      %p154 = pneg %p53
      %p155 = pneg %p77
      %p156 = pneg %p74
      %p157 = pneg %p103
      %p158 = pneg %p100
      %s159 = smul.u32 2, %s14
      %p160 = scmp.lt.s32.totalorder %s159, 3
      %s161 = scalar_select %p160, %s159, 3
      %s162 = smul.addr %s161, 4
      %s163 = scalar_lea.vmem %s3, %s162
      %s164 = smul.u32 2, %s14
      %p165 = scmp.lt.s32.totalorder %s164, 3
      %s166 = scalar_select %p165, %s164, 3
      %s167 = smul.addr %s166, 2
      %s168 = smul.addr %s167, 4
      %s169 = scalar_lea.vmem %s0, %s168
      %s170 = smul.u32 2, %s14
      %s171 = smul.u32 2, %s14
      %p172 = scmp.lt.s32.totalorder %s171, 3
      %s173 = scalar_select %p172, %s171, 3
      %s174 = smul.addr %s173, 4
      %s175 = scalar_lea.vmem %s3, %s174
      %s176 = smul.u32 2, %s14
      %v178 = vld [vmem:[%s169] sm:$0xff]
      %v179 = vld [vmem:[%s169 + $0x8] sm:$0xff]
      %v180 = vld [vmem:[%s1] sm:$0xf]
      %v181 = vld [vmem:[%s1 + $0x4] sm:$0xf]
      %v182 = vld [vmem:[%s1 + $0x8] sm:$0xf]
      %v183 = vld [vmem:[%s1 + $0xc] sm:$0xf]
      %v184 = vld [vmem:[%s1 + $0x10] sm:$0xf]
      %v185 = vld [vmem:[%s1 + $0x14] sm:$0xf]
      %v186 = vld [vmem:[%s1 + $0x18] sm:$0xf]
      %v187 = vld [vmem:[%s1 + $0x1c] sm:$0xf]
      %v188 = vld [vmem:[%s1 + $0x20] sm:$0xf]
      %v189 = vld [vmem:[%s1 + $0x24] sm:$0xf]
      %v190 = vld [vmem:[%s1 + $0x28] sm:$0xf]
      %v191 = vld [vmem:[%s1 + $0x2c] sm:$0xf]
      %v192 = vld [vmem:[%s1 + $0x30] sm:$0xf]
      %v193 = vld [vmem:[%s1 + $0x34] sm:$0xf]
      %v194 = vld [vmem:[%s1 + $0x38] sm:$0xf]
      %v195 = vld [vmem:[%s1 + $0x3c] sm:$0xf]
      %v196 = vld [vmem:[%s1 + $0x40] sm:$0xf]
      %v197 = vld [vmem:[%s1 + $0x44] sm:$0xf]
      %v198 = vld [vmem:[%s1 + $0x48] sm:$0xf]
      %v199 = vld [vmem:[%s1 + $0x4c] sm:$0xf]
      %v200 = vld [vmem:[%s1 + $0x50] sm:$0xf]
      %v201 = vld [vmem:[%s1 + $0x54] sm:$0xf]
      %v202 = vld [vmem:[%s1 + $0x58] sm:$0xf]
      %v203 = vld [vmem:[%s1 + $0x5c] sm:$0xf]
      %v204 = vld [vmem:[%s1 + $0x60] sm:$0xf]
      %v205 = vld [vmem:[%s1 + $0x64] sm:$0xf]
      %v206 = vld [vmem:[%s1 + $0x68] sm:$0xf]
      %v207 = vld [vmem:[%s1 + $0x6c] sm:$0xf]
      %v208 = vld [vmem:[%s1 + $0x70] sm:$0xf]
      %v209 = vld [vmem:[%s1 + $0x74] sm:$0xf]
      %v210 = vld [vmem:[%s1 + $0x78] sm:$0xf]
      %v211 = vld [vmem:[%s1 + $0x7c] sm:$0xf]
      %v212 = vld [vmem:[%s2] sm:$0x1]
      %v214 = vlaneseq
      %v215 = vshrl.u32 %v214, 7
      %v216 = vsub.s32 0, %v215
      %v217 = vrot.slane %v212, %v216
      %v221 = vunpack.c.l.b16 %v178
      %v222 = vunpack.c.h.b16 %v178
      %v223 = vunpack.c.l.b16 %v179
      %v224 = vunpack.c.h.b16 %v179
      %v225 = vpack.c.b16 %v223, %v221
      %v226 = vpack.c.b16 %v224, %v222
      %v261 = vunpack.c.l.b16 %v180
      %v262 = vunpack.c.l.b16 %v181
      %v263 = vunpack.c.l.b16 %v182
      %v264 = vunpack.c.l.b16 %v183
      %v265 = vunpack.c.l.b16 %v184
      %v266 = vunpack.c.l.b16 %v185
      %v267 = vunpack.c.l.b16 %v186
      %v268 = vunpack.c.l.b16 %v187
      %v269 = vunpack.c.l.b16 %v188
      %v270 = vunpack.c.l.b16 %v189
      %v271 = vunpack.c.l.b16 %v190
      %v272 = vunpack.c.l.b16 %v191
      %v273 = vunpack.c.l.b16 %v192
      %v274 = vunpack.c.l.b16 %v193
      %v275 = vunpack.c.l.b16 %v194
      %v276 = vunpack.c.l.b16 %v195
      %v277 = vunpack.c.l.b16 %v196
      %v278 = vunpack.c.l.b16 %v197
      %v279 = vunpack.c.l.b16 %v198
      %v280 = vunpack.c.l.b16 %v199
      %v281 = vunpack.c.l.b16 %v200
      %v282 = vunpack.c.l.b16 %v201
      %v283 = vunpack.c.l.b16 %v202
      %v284 = vunpack.c.l.b16 %v203
      %v285 = vunpack.c.l.b16 %v204
      %v286 = vunpack.c.l.b16 %v205
      %v287 = vunpack.c.l.b16 %v206
      %v288 = vunpack.c.l.b16 %v207
      %v289 = vunpack.c.l.b16 %v208
      %v290 = vunpack.c.l.b16 %v209
      %v291 = vunpack.c.l.b16 %v210
      %v292 = vunpack.c.l.b16 %v211
      %v293 = vpack.c.b16 %v262, %v261
      %v294 = vpack.c.b16 %v264, %v263
      %v295 = vpack.c.b16 %v266, %v265
      %v296 = vpack.c.b16 %v268, %v267
      %v297 = vpack.c.b16 %v270, %v269
      %v298 = vpack.c.b16 %v272, %v271
      %v299 = vpack.c.b16 %v274, %v273
      %v300 = vpack.c.b16 %v276, %v275
      %v301 = vpack.c.b16 %v278, %v277
      %v302 = vpack.c.b16 %v280, %v279
      %v303 = vpack.c.b16 %v282, %v281
      %v304 = vpack.c.b16 %v284, %v283
      %v305 = vpack.c.b16 %v286, %v285
      %v306 = vpack.c.b16 %v288, %v287
      %v307 = vpack.c.b16 %v290, %v289
      %v308 = vpack.c.b16 %v292, %v291
      %325 = vmatprep.subr.bf16.mxu0 0
      %326 = vmatpush1.bf16.msra.mxu0 %v293
      %327 = vmatprep.subr.bf16.mxu0 0
      %328 = vmatpush1.bf16.msra.mxu0 %v294
      %329 = vmatprep.subr.bf16.mxu0 0
      %330 = vmatpush1.bf16.msra.mxu0 %v295
      %331 = vmatprep.subr.bf16.mxu0 0
      %332 = vmatpush1.bf16.msra.mxu0 %v296
      %333 = vmatprep.subr.bf16.mxu0 0
      %334 = vmatpush1.bf16.msra.mxu0 %v297
      %335 = vmatprep.subr.bf16.mxu0 0
      %336 = vmatpush1.bf16.msra.mxu0 %v298
      %337 = vmatprep.subr.bf16.mxu0 0
      %338 = vmatpush1.bf16.msra.mxu0 %v299
      %339 = vmatprep.subr.bf16.mxu0 0
      %340 = vmatpush1.bf16.msra.mxu0 %v300
      %341 = vmatprep.subr.bf16.mxu0 0
      %342 = vmatpush1.bf16.msra.mxu0 %v301
      %343 = vmatprep.subr.bf16.mxu0 0
      %344 = vmatpush1.bf16.msra.mxu0 %v302
      %345 = vmatprep.subr.bf16.mxu0 0
      %346 = vmatpush1.bf16.msra.mxu0 %v303
      %347 = vmatprep.subr.bf16.mxu0 0
      %348 = vmatpush1.bf16.msra.mxu0 %v304
      %349 = vmatprep.subr.bf16.mxu0 0
      %350 = vmatpush1.bf16.msra.mxu0 %v305
      %351 = vmatprep.subr.bf16.mxu0 0
      %352 = vmatpush1.bf16.msra.mxu0 %v306
      %353 = vmatprep.subr.bf16.mxu0 0
      %354 = vmatpush1.bf16.msra.mxu0 %v307
      %355 = vmatprep.subr.bf16.mxu0 0
      %356 = vmatpush1.bf16.msra.mxu0 %v308
      %357 = vmatprep.mubr.bf16.mxu0 %v226
      %358 = vmatmul.mubr.bf16.gmra.mrb[0].mxu0 %v225
      %v359 = vpop.f32.mrb[0].mxu0
      %v360 = vadd.f32 %v217, %v359
      %v361 = vpop.f32.mrb[0].mxu0
      %v362 = vpop.f32.mrb[0].mxu0
      %v363 = vadd.f32 %v217, %v362
      %v364 = vpop.f32.mrb[0].mxu0
      %365 = vdwg.mxu0
      %v366 = vpack.c.bf16 %v363, %v360
      %v368 = vunpack.c.l.b16 %v366
      %v369 = vunpack.c.h.b16 %v366
      %v370 = vpack.c.b16 %v368, %v368
      %v371 = vpack.c.b16 %v369, %v369
      %374 = vst [vmem:[%s175] sm:$0xf] %v370
      %375 = vst [vmem:[%s175 + $0x4] sm:$0xf] %v371
      %s376 = smul.u32 2, %s14
      %p377 = scmp.lt.s32.totalorder %s376, 3
      %s378 = scalar_select %p377, %s376, 3
      %s379 = smul.addr %s378, 4
      %s380 = scalar_lea.vmem %s3, %s379
      // Predicated region
      $region33: #{_lambda_.27} parent=31 // pred_check
        %p381 = pneg %p100
      $region34: #{_lambda_.27} parent=31 // pred_check_branch
        %383 = sbr.rel (%p381) target = $region36
      $region35: #{_lambda_.27} parent=31 // pred_region
        %s384 = smul.u32 2, %s14
      $region36: #{_lambda_.27} parent=31 // pred_fallthru
        _
    $region32: #{_lambda_.27} parent=5 // pred_fallthru
      _
    %p385 = scmp.le.s32.totalorder 2, %s9
    // Predicated region
    $region37: #{_lambda_.27} parent=5 // pred_check
      %p386 = pneg %p385
    $region38: #{_lambda_.27} parent=5 // pred_check_branch
      %388 = sbr.rel (%p386) target = $region40
    $region39: #{_lambda_.27} parent=5 // pred_region
      %s389 = ssub.s32 %s9, 2
      // Predicated region
      $region41: #{_lambda_.27} parent=39 // pred_check
        %p390 = pneg %p106
      $region42: #{_lambda_.27} parent=39 // pred_check_branch
        %392 = sbr.rel (%p390) target = $region44
      $region43: #{_lambda_.27} parent=39 // pred_region
        %s393 = smul.u32 2, %s15
        %p394 = scmp.lt.s32.totalorder %s393, 3
        %s395 = scalar_select %p394, %s393, 3
        %s396 = smul.addr %s395, 4
        %s397 = scalar_lea.vmem %s3, %s396
      $region44: #{_lambda_.27} parent=39 // pred_fallthru
        _
    $region40: #{_lambda_.27} parent=5 // pred_fallthru
      _
  $region6: #{_lambda_.27} parent=0 // loop_footer
    %s13 = sadd.s32 1, %s9
  $region7: #{_lambda_.27} parent=0 // loop_footer_branch
    %8 = sbr.rel target = $region3
  $region8: #{_lambda_.27} parent=0 // loop_exit
    _

</llo_original>
